<compile_context>
chip_gen: v7x
topology: tpu7x:2x2x1
jax: 0.10.0
libtpu: 0.0.40
codegen_flags: <defaults>
</compile_context>

<pallas_src>
import math

import jax
import jax.numpy as jnp
from jax.experimental import pallas as pl
from jax.experimental.pallas import tpu as pltpu

# Gate order inside every packed LSTM weight: [i | f | o | g]
# (PyTorch LSTMCell source order is [i, f, g, o]).
_SRC2DST = (0, 1, 3, 2)


def _round8(x):
    return (x + 7) // 8 * 8


# ----------------------------------------------------------------------------
# Fused forward kernel
# ----------------------------------------------------------------------------

def make_fused_kernel(dims, t, n, zy_size, fy_size, output_dim, layout):
    d_l, d_a, d_v, dh_l, dh_a, dh_v, mem_dim = dims
    d_total = d_l + d_a + d_v
    total_h = dh_l + dh_a + dh_v
    dec_h = 3 * fy_size                       # fused hidden width of the 3 decoders
    f32 = jnp.float32

    def kernel(x_ref, p_ref, zy_real_ref, xhat_ref, yhat_ref, mmd_ref):
        # zero-cost static slices of the single packed parameter buffer
        def W(name):
            off, r, c = layout[name]
            return p_ref[off:off + r, :c]

        # ---- hoist every weight load / bias broadcast out of the recurrences ----
        w_enc = W('w_enc')
        b_enc = jnp.broadcast_to(W('b_enc'), (n, 4 * total_h))
        a1w1 = W('a1w1'); a1b1 = jnp.broadcast_to(W('a1b1'), (n, layout['a1w1'][2]))
        a1w2 = W('a1w2'); a1b2 = jnp.broadcast_to(W('a1b2'), (n, 2 * total_h))
        a2w1 = W('a2w1'); a2b1 = jnp.broadcast_to(W('a2b1'), (n, layout['a2w1'][2]))
        a2w2 = W('a2w2'); a2b2 = jnp.broadcast_to(W('a2b2'), (n, mem_dim))
        wg1 = W('wg1'); bg1 = jnp.broadcast_to(W('bg1'), (n, layout['wg1'][2]))
        wg2 = W('wg2'); bg2 = jnp.broadcast_to(W('bg2'), (n, 2 * mem_dim))
        wzy = W('wzy'); bzy = W('bzy')
        wfy1 = W('wfy1'); bfy1 = W('bfy1')
        wfy2 = W('wfy2'); bfy2 = W('bfy2')
        wy1 = W('wy1'); by1 = W('by1')
        wy2 = W('wy2'); by2 = W('by2')
        wd0 = W('wd0')
        wdr = W('wdr')
        bd = jnp.broadcast_to(W('bd'), (n, 4 * dec_h))
        wfc = W('wfc'); bfc = W('bfc')

        # ---- MFN encoder (3 LSTMCells == one block-diag matmul per step),
        #      fully unrolled: sigmoid once over the [i|f|o] slab, tanh once ----
        h_all = jnp.zeros((n, total_h), f32)
        c_all = jnp.zeros((n, total_h), f32)
        mem = jnp.zeros((n, mem_dim), f32)
        for i in range(t):
            xt = x_ref[i]                                       # (n, d_total)
            xh = jnp.concatenate([xt, h_all], axis=1)           # (n, d_total+total_h)
            gates = jnp.dot(xh, w_enc, preferred_element_type=f32) + b_enc
            sig = jax.nn.sigmoid(gates[:, :3 * total_h])        # one EUP slab
            i_g = sig[:, :total_h]
            f_g = sig[:, total_h:2 * total_h]
            o_g = sig[:, 2 * total_h:]
            g_g = jnp.tanh(gates[:, 3 * total_h:])
            c_new = f_g * c_all + i_g * g_g
            h_new = o_g * jnp.tanh(c_new)

            c_star = jnp.concatenate([c_all, c_new], axis=1)    # (n, 2*total_h)
            att_h = jnp.maximum(
                jnp.dot(c_star, a1w1, preferred_element_type=f32) + a1b1, 0.0)
            logits = jnp.dot(att_h, a1w2, preferred_element_type=f32) + a1b2
            # explicit softmax: divide replaced by an EUP approximate reciprocal
            e = jnp.exp(logits - jnp.max(logits, axis=1, keepdims=True))
            attention = e * pl.reciprocal(jnp.sum(e, axis=1, keepdims=True),
                                          approx=True)
            attended = attention * c_star
            ch_h = jnp.maximum(
                jnp.dot(attended, a2w1, preferred_element_type=f32) + a2b1, 0.0)
            c_hat = jnp.tanh(
                jnp.dot(ch_h, a2w2, preferred_element_type=f32) + a2b2)
            both = jnp.concatenate([attended, mem], axis=1)     # (n, 2*total_h+mem)
            # gamma1/gamma2 fused: concat first layers, block-diag second layers
            g_h = jnp.maximum(
                jnp.dot(both, wg1, preferred_element_type=f32) + bg1, 0.0)
            gam = jax.nn.sigmoid(
                jnp.dot(g_h, wg2, preferred_element_type=f32) + bg2)
            mem = gam[:, :mem_dim] * mem + gam[:, mem_dim:] * c_hat
            h_all, c_all = h_new, c_new

        mfn_last = jnp.concatenate([h_all, mem], axis=1)        # (n, total_h+mem)
        zy = jnp.dot(mfn_last, wzy, preferred_element_type=f32) + bzy

        # ---- MMD: ONE Gram matmul + ONE exp covers all three kernel terms ----
        zr = zy_real_ref[...]
        ab = jnp.concatenate([zr, zy], axis=0)                  # (2n, dim)
        sq = jnp.sum(ab * ab, axis=1, keepdims=True)            # (2n, 1)
        ones = jnp.ones((2 * n, 1), f32)
        a_ext = jnp.concatenate([-2.0 * ab, sq, ones], axis=1)  # (2n, dim+2)
        b_ext = jnp.concatenate([ab, ones, sq], axis=1)         # (2n, dim+2)
        d2 = jnp.dot(a_ext, b_ext.T, preferred_element_type=f32)
        d2 = jnp.maximum(d2, 0.0)            # cancellation guard (exact parity)
        kmat = jnp.exp(d2 * (-1.0 / float(zy_size * zy_size)))  # mean over dim, /dim
        k_rr = jnp.mean(kmat[:n, :n])
        k_ff = jnp.mean(kmat[n:, n:])
        k_rf = jnp.mean(kmat[:n, n:])
        mmd_ref[0, 0] = k_rr + k_ff - 2.0 * k_rf

        # ---- zy -> fy -> y (dropouts are identity in eval mode) ----
        fh = jnp.maximum(jnp.dot(zy, wfy1, preferred_element_type=f32) + bfy1, 0.0)
        fy = jnp.maximum(jnp.dot(fh, wfy2, preferred_element_type=f32) + bfy2, 0.0)
        yh = jnp.maximum(jnp.dot(fy, wy1, preferred_element_type=f32) + by1, 0.0)
        yhat_ref[...] = jnp.dot(yh, wy2, preferred_element_type=f32) + by2

        # ---- 3 decoder LSTMs: fused block-diag recurrence, fully unrolled.
        #      Hidden states stay in vregs; one output projection + one store. ----
        def dec_gates(pre):
            sig = jax.nn.sigmoid(pre[:, :3 * dec_h])            # one EUP slab
            return (sig[:, :dec_h], sig[:, dec_h:2 * dec_h],
                    sig[:, 2 * dec_h:], jnp.tanh(pre[:, 3 * dec_h:]))

        # step 0 peeled: input is fy, hidden/cell are zero (f*c term drops)
        gates0 = jnp.dot(fy, wd0, preferred_element_type=f32) + bd
        i0, _, o0, g0 = dec_gates(gates0)
        c = i0 * g0
        h = o0 * jnp.tanh(c)
        hs = [h]
        for _ in range(1, t):
            # input == previous hidden for s >= 1, so W_ih + W_hh pre-summed (wdr)
            gates = jnp.dot(h, wdr, preferred_element_type=f32) + bd
            i_g, f_g, o_g, g_g = dec_gates(gates)
            c = f_g * c + i_g * g_g
            h = o_g * jnp.tanh(c)
            hs.append(h)
        h_stack = jnp.concatenate(hs, axis=0)                   # (t*n, dec_h)
        # single fused output projection + single dense store of x_hat
        xhat_ref[...] = jnp.dot(h_stack, wfc, preferred_element_type=f32) + bfc

    return kernel


# ----------------------------------------------------------------------------
# pallas_call wrapper (everything fits trivially in VMEM at these sizes)
# ----------------------------------------------------------------------------

def _vmem():
    return pl.BlockSpec(memory_space=pltpu.MemorySpace.VMEM)


def m_c_forward(x, params_buf, layout, dims, zy_size, fy_size, output_dim, rng_key):
    d_l, d_a, d_v = dims[:3]
    d_total = d_l + d_a + d_v
    t, n, _ = x.shape

    # glue: deterministic gaussian replacing torch.randn in loss_MMD
    zy_real = jax.random.normal(rng_key, (n, zy_size), dtype=jnp.float32)

    kernel = make_fused_kernel(dims, t, n, zy_size, fy_size, output_dim, layout)
    x_hat_flat, y_hat, mmd = pl.pallas_call(
        kernel,
        out_shape=(jax.ShapeDtypeStruct((t * n, d_total), jnp.float32),
                   jax.ShapeDtypeStruct((n, output_dim), jnp.float32),
                   jax.ShapeDtypeStruct((1, 1), jnp.float32)),
        in_specs=[_vmem(), _vmem(), _vmem()],
        out_specs=(_vmem(), _vmem(),
                   pl.BlockSpec(memory_space=pltpu.MemorySpace.SMEM)),
    )(x, params_buf, zy_real)

    x_hat = x_hat_flat.reshape(t, n, d_total)
    x_l_hat = x_hat[:, :, :d_l]
    x_a_hat = x_hat[:, :, d_l:d_l + d_a]
    x_v_hat = x_hat[:, :, d_l + d_a:]
    decoded = [x_l_hat, x_a_hat, x_v_hat, y_hat]
    missing_loss = 0.0
    return decoded, mmd[0, 0], missing_loss


# ----------------------------------------------------------------------------
# Parameter init (PyTorch-style uniform bounds) + host-side weight packing
# ----------------------------------------------------------------------------

def init_linear(key, in_dim, out_dim):
    k1, k2 = jax.random.split(key)
    bound = 1.0 / math.sqrt(in_dim)
    w = jax.random.uniform(k1, (in_dim, out_dim), jnp.float32, -bound, bound)
    b = jax.random.uniform(k2, (1, out_dim), jnp.float32, -bound, bound)
    return w, b


def init_lstm(key, in_dim, hidden):
    k1, k2, k3 = jax.random.split(key, 3)
    bound = 1.0 / math.sqrt(hidden)
    wih = jax.random.uniform(k1, (in_dim, 4 * hidden), jnp.float32, -bound, bound)
    whh = jax.random.uniform(k2, (hidden, 4 * hidden), jnp.float32, -bound, bound)
    b = jax.random.uniform(k3, (1, 4 * hidden), jnp.float32, -bound, bound)
    # NOTE: real nn.LSTMCell has separate b_ih/b_hh that must be SUMMED when
    # loading trained weights into this packed single-bias layout.
    return wih, whh, b


def pack_mfn_lstms(lstm_params, d_ins, d_hs):
    """Block-diagonal pack of the 3 modality LSTMCells, gate order [i|f|o|g]."""
    d_total = sum(d_ins)
    total_h = sum(d_hs)
    w = jnp.zeros((d_total + total_h, 4 * total_h), jnp.float32)
    b = jnp.zeros((1, 4 * total_h), jnp.float32)
    row_x, row_h, col_h = 0, d_total, 0
    for (wih, whh, bb), din, dh in zip(lstm_params, d_ins, d_hs):
        for g in range(4):
            col = _SRC2DST[g] * total_h + col_h
            w = w.at[row_x:row_x + din, col:col + dh].set(wih[:, g * dh:(g + 1) * dh])
            w = w.at[row_h:row_h + dh, col:col + dh].set(whh[:, g * dh:(g + 1) * dh])
            b = b.at[:, col:col + dh].set(bb[:, g * dh:(g + 1) * dh])
        row_x += din
        row_h += dh
        col_h += dh
    return w, b


def pack_gammas(g1w1, g1b1, g1w2, g1b2, g2w1, g2b1, g2w2, g2b2, mem_dim):
    """Fuse gamma1/gamma2 MLPs (shared input): concat layer 1, block-diag layer 2."""
    wg1 = jnp.concatenate([g1w1, g2w1], axis=1)
    bg1 = jnp.concatenate([g1b1, g2b1], axis=1)
    h1, h2 = g1w1.shape[1], g2w1.shape[1]
    wg2 = jnp.zeros((h1 + h2, 2 * mem_dim), jnp.float32)
    wg2 = wg2.at[:h1, :mem_dim].set(g1w2)
    wg2 = wg2.at[h1:, mem_dim:].set(g2w2)
    bg2 = jnp.concatenate([g1b2, g2b2], axis=1)
    return wg1, bg1, wg2, bg2


def pack_decoders(dec_params, h, d_outs):
    """Fuse the 3 decoderLSTMs: block-diag recurrence + block-diag output FC.

    w0: step-0 weight (input fy shared by all decoders), shape (h, 4*3h).
    wr: steps>=1 weight, W_ih + W_hh pre-summed (input == previous hidden).
    Gate order is [i|f|o|g].
    """
    nd = len(dec_params)
    dec_h = nd * h
    d_total = sum(d_outs)
    w0 = jnp.zeros((h, 4 * dec_h), jnp.float32)
    wr = jnp.zeros((dec_h, 4 * dec_h), jnp.float32)
    b = jnp.zeros((1, 4 * dec_h), jnp.float32)
    wfc = jnp.zeros((dec_h, d_total), jnp.float32)
    bfc = jnp.zeros((1, d_total), jnp.float32)
    col_d = 0
    for k, (p, d) in enumerate(zip(dec_params, d_outs)):
        for g in range(4):
            col = _SRC2DST[g] * dec_h + k * h
            w0 = w0.at[:, col:col + h].set(p['wih'][:, g * h:(g + 1) * h])
            wr = wr.at[k * h:(k + 1) * h, col:col + h].set(
                p['wih'][:, g * h:(g + 1) * h] + p['whh'][:, g * h:(g + 1) * h])
            b = b.at[:, col:col + h].set(p['b'][:, g * h:(g + 1) * h])
        wfc = wfc.at[k * h:(k + 1) * h, col_d:col_d + d].set(p['fcw'])
        bfc = bfc.at[:, col_d:col_d + d].set(p['fcb'])
        col_d += d
    return w0, wr, b, wfc, bfc


def pack_params(named, ncols):
    """Pack all weights/biases into one flat (rows, ncols) f32 buffer.

    Each entry starts at an 8-row-aligned offset so every in-kernel slice is
    a sublane-aligned static view. Returns (buffer, {name: (row_off, r, c)}).
    """
    layout = {}
    row = 0
    for name, arr in named:
        r, c = int(arr.shape[0]), int(arr.shape[1])
        assert c <= ncols
        layout[name] = (row, r, c)
        row += _round8(r)
    buf = jnp.zeros((_round8(row), ncols), jnp.float32)
    for name, arr in named:
        off, r, c = layout[name]
        buf = buf.at[off:off + r, :c].set(arr)
    return buf, layout


# ----------------------------------------------------------------------------
# main
# ----------------------------------------------------------------------------

if __name__ == "__main__":
    # Small config consistent with the module
    d_l, d_a, d_v = 8, 4, 4
    dh_l, dh_a, dh_v = 8, 8, 8
    mem_dim = 8
    window = 2
    output_dim = 1
    zy_size = 16
    fy_size = 16
    h_att1 = h_att2 = h_g1 = h_g2 = 16
    t, n = 6, 4

    total_h = dh_l + dh_a + dh_v
    att_in = total_h * window
    gamma_in = att_in + mem_dim
    last_mfn_size = total_h + mem_dim
    dims = (d_l, d_a, d_v, dh_l, dh_a, dh_v, mem_dim)

    key = jax.random.PRNGKey(0)
    keys = jax.random.split(key, 32)
    ki = iter(range(32))

    # raw (unpacked) parameters
    lstm_l = init_lstm(keys[next(ki)], d_l, dh_l)
    lstm_a = init_lstm(keys[next(ki)], d_a, dh_a)
    lstm_v = init_lstm(keys[next(ki)], d_v, dh_v)
    a1w1, a1b1 = init_linear(keys[next(ki)], att_in, h_att1)
    a1w2, a1b2 = init_linear(keys[next(ki)], h_att1, att_in)
    a2w1, a2b1 = init_linear(keys[next(ki)], att_in, h_att2)
    a2w2, a2b2 = init_linear(keys[next(ki)], h_att2, mem_dim)
    g1w1, g1b1 = init_linear(keys[next(ki)], gamma_in, h_g1)
    g1w2, g1b2 = init_linear(keys[next(ki)], h_g1, mem_dim)
    g2w1, g2b1 = init_linear(keys[next(ki)], gamma_in, h_g2)
    g2w2, g2b2 = init_linear(keys[next(ki)], h_g2, mem_dim)
    wzy, bzy = init_linear(keys[next(ki)], last_mfn_size, zy_size)
    wfy1, bfy1 = init_linear(keys[next(ki)], zy_size, fy_size)
    wfy2, bfy2 = init_linear(keys[next(ki)], fy_size, fy_size)
    wy1, by1 = init_linear(keys[next(ki)], fy_size, fy_size)
    wy2, by2 = init_linear(keys[next(ki)], fy_size, output_dim)

    def make_decoder_params(k, d):
        k1, k2 = jax.random.split(k)
        wih, whh, b = init_lstm(k1, fy_size, fy_size)
        fcw, fcb = init_linear(k2, fy_size, d)
        return {'wih': wih, 'whh': whh, 'b': b, 'fcw': fcw, 'fcb': fcb}

    dec_l = make_decoder_params(keys[next(ki)], d_l)
    dec_a = make_decoder_params(keys[next(ki)], d_a)
    dec_v = make_decoder_params(keys[next(ki)], d_v)

    # host-side pre-packing into fused / block-diagonal layouts
    w_enc, b_enc = pack_mfn_lstms([lstm_l, lstm_a, lstm_v],
                                  [d_l, d_a, d_v], [dh_l, dh_a, dh_v])
    wg1, bg1, wg2, bg2 = pack_gammas(g1w1, g1b1, g1w2, g1b2,
                                     g2w1, g2b1, g2w2, g2b2, mem_dim)
    wd0, wdr, bd, wfc, bfc = pack_decoders([dec_l, dec_a, dec_v], fy_size,
                                           [d_l, d_a, d_v])

    named = [
        ('w_enc', w_enc), ('b_enc', b_enc),
        ('a1w1', a1w1), ('a1b1', a1b1), ('a1w2', a1w2), ('a1b2', a1b2),
        ('a2w1', a2w1), ('a2b1', a2b1), ('a2w2', a2w2), ('a2b2', a2b2),
        ('wg1', wg1), ('bg1', bg1), ('wg2', wg2), ('bg2', bg2),
        ('wzy', wzy), ('bzy', bzy),
        ('wfy1', wfy1), ('bfy1', bfy1), ('wfy2', wfy2), ('bfy2', bfy2),
        ('wy1', wy1), ('by1', by1), ('wy2', wy2), ('by2', by2),
        ('wd0', wd0), ('wdr', wdr), ('bd', bd), ('wfc', wfc), ('bfc', bfc),
    ]
    ncols = max(int(a.shape[1]) for _, a in named)   # = 4 * 3 * fy_size = 192
    params_buf, layout = pack_params(named, ncols)   # one contiguous DMA

    kx, kmmd = jax.random.split(keys[next(ki)])
    x = jax.random.normal(kx, (t, n, d_l + d_a + d_v), dtype=jnp.float32)

    decoded, mmd_loss, missing_loss = m_c_forward(
        x, params_buf, layout, dims, zy_size, fy_size, output_dim, kmmd)
    jax.block_until_ready((decoded, mmd_loss))

    assert decoded[0].shape == (t, n, d_l)
    assert decoded[1].shape == (t, n, d_a)
    assert decoded[2].shape == (t, n, d_v)
    assert decoded[3].shape == (n, output_dim)
    assert bool(jnp.isfinite(mmd_loss))
    assert all(bool(jnp.all(jnp.isfinite(d))) for d in decoded)

    print("KERNEL_OK")
</pallas_src>

<mosaic_0001>
module attributes {stable_mosaic.version = 11 : i64} {
  func.func @kernel(%arg0: memref<6x4x16xf32, #tpu.memory_space<vmem>>, %arg1: memref<576x192xf32, #tpu.memory_space<vmem>>, %arg2: memref<4x16xf32, #tpu.memory_space<vmem>>, %arg3: memref<24x16xf32, #tpu.memory_space<vmem>>, %arg4: memref<4x1xf32, #tpu.memory_space<vmem>>, %arg5: memref<1x1xf32, #tpu.memory_space<smem>>) attributes {dimension_semantics = [], scalar_prefetch = 0 : i64, scratch_operands = 0 : i64, tpu.core_type = #tpu.core_type<tc>} {
    %c0 = arith.constant 0 : index
    %c0_0 = arith.constant 0 : index
    %0 = vector.load %arg1[%c0, %c0_0] : memref<576x192xf32, #tpu.memory_space<vmem>>, vector<40x96xf32>
    %c40 = arith.constant 40 : index
    %c0_1 = arith.constant 0 : index
    %1 = vector.load %arg1[%c40, %c0_1] : memref<576x192xf32, #tpu.memory_space<vmem>>, vector<1x96xf32>
    %2 = vector.shape_cast %1 : vector<1x96xf32> to vector<1x96xf32>
    %3 = vector.broadcast %2 : vector<1x96xf32> to vector<4x96xf32>
    %c48 = arith.constant 48 : index
    %c0_2 = arith.constant 0 : index
    %4 = vector.load %arg1[%c48, %c0_2] : memref<576x192xf32, #tpu.memory_space<vmem>>, vector<48x16xf32>
    %c96 = arith.constant 96 : index
    %c0_3 = arith.constant 0 : index
    %5 = vector.load %arg1[%c96, %c0_3] : memref<576x192xf32, #tpu.memory_space<vmem>>, vector<1x16xf32>
    %6 = vector.shape_cast %5 : vector<1x16xf32> to vector<1x16xf32>
    %7 = vector.broadcast %6 : vector<1x16xf32> to vector<4x16xf32>
    %c104 = arith.constant 104 : index
    %c0_4 = arith.constant 0 : index
    %8 = vector.load %arg1[%c104, %c0_4] : memref<576x192xf32, #tpu.memory_space<vmem>>, vector<16x48xf32>
    %c120 = arith.constant 120 : index
    %c0_5 = arith.constant 0 : index
    %9 = vector.load %arg1[%c120, %c0_5] : memref<576x192xf32, #tpu.memory_space<vmem>>, vector<1x48xf32>
    %10 = vector.shape_cast %9 : vector<1x48xf32> to vector<1x48xf32>
    %11 = vector.broadcast %10 : vector<1x48xf32> to vector<4x48xf32>
    %c128 = arith.constant 128 : index
    %c0_6 = arith.constant 0 : index
    %12 = vector.load %arg1[%c128, %c0_6] : memref<576x192xf32, #tpu.memory_space<vmem>>, vector<48x16xf32>
    %c176 = arith.constant 176 : index
    %c0_7 = arith.constant 0 : index
    %13 = vector.load %arg1[%c176, %c0_7] : memref<576x192xf32, #tpu.memory_space<vmem>>, vector<1x16xf32>
    %14 = vector.shape_cast %13 : vector<1x16xf32> to vector<1x16xf32>
    %15 = vector.broadcast %14 : vector<1x16xf32> to vector<4x16xf32>
    %c184 = arith.constant 184 : index
    %c0_8 = arith.constant 0 : index
    %16 = vector.load %arg1[%c184, %c0_8] : memref<576x192xf32, #tpu.memory_space<vmem>>, vector<16x8xf32>
    %c200 = arith.constant 200 : index
    %c0_9 = arith.constant 0 : index
    %17 = vector.load %arg1[%c200, %c0_9] : memref<576x192xf32, #tpu.memory_space<vmem>>, vector<1x8xf32>
    %18 = vector.shape_cast %17 : vector<1x8xf32> to vector<1x8xf32>
    %19 = vector.broadcast %18 : vector<1x8xf32> to vector<4x8xf32>
    %c208 = arith.constant 208 : index
    %c0_10 = arith.constant 0 : index
    %20 = vector.load %arg1[%c208, %c0_10] : memref<576x192xf32, #tpu.memory_space<vmem>>, vector<56x32xf32>
    %c264 = arith.constant 264 : index
    %c0_11 = arith.constant 0 : index
    %21 = vector.load %arg1[%c264, %c0_11] : memref<576x192xf32, #tpu.memory_space<vmem>>, vector<1x32xf32>
    %22 = vector.shape_cast %21 : vector<1x32xf32> to vector<1x32xf32>
    %23 = vector.broadcast %22 : vector<1x32xf32> to vector<4x32xf32>
    %c272 = arith.constant 272 : index
    %c0_12 = arith.constant 0 : index
    %24 = vector.load %arg1[%c272, %c0_12] : memref<576x192xf32, #tpu.memory_space<vmem>>, vector<32x16xf32>
    %c304 = arith.constant 304 : index
    %c0_13 = arith.constant 0 : index
    %25 = vector.load %arg1[%c304, %c0_13] : memref<576x192xf32, #tpu.memory_space<vmem>>, vector<1x16xf32>
    %26 = vector.shape_cast %25 : vector<1x16xf32> to vector<1x16xf32>
    %27 = vector.broadcast %26 : vector<1x16xf32> to vector<4x16xf32>
    %c312 = arith.constant 312 : index
    %c0_14 = arith.constant 0 : index
    %28 = vector.load %arg1[%c312, %c0_14] : memref<576x192xf32, #tpu.memory_space<vmem>>, vector<32x16xf32>
    %c344 = arith.constant 344 : index
    %c0_15 = arith.constant 0 : index
    %29 = vector.load %arg1[%c344, %c0_15] : memref<576x192xf32, #tpu.memory_space<vmem>>, vector<1x16xf32>
    %c352 = arith.constant 352 : index
    %c0_16 = arith.constant 0 : index
    %30 = vector.load %arg1[%c352, %c0_16] : memref<576x192xf32, #tpu.memory_space<vmem>>, vector<16x16xf32>
    %c368 = arith.constant 368 : index
    %c0_17 = arith.constant 0 : index
    %31 = vector.load %arg1[%c368, %c0_17] : memref<576x192xf32, #tpu.memory_space<vmem>>, vector<1x16xf32>
    %c376 = arith.constant 376 : index
    %c0_18 = arith.constant 0 : index
    %32 = vector.load %arg1[%c376, %c0_18] : memref<576x192xf32, #tpu.memory_space<vmem>>, vector<16x16xf32>
    %c392 = arith.constant 392 : index
    %c0_19 = arith.constant 0 : index
    %33 = vector.load %arg1[%c392, %c0_19] : memref<576x192xf32, #tpu.memory_space<vmem>>, vector<1x16xf32>
    %c400 = arith.constant 400 : index
    %c0_20 = arith.constant 0 : index
    %34 = vector.load %arg1[%c400, %c0_20] : memref<576x192xf32, #tpu.memory_space<vmem>>, vector<16x16xf32>
    %c416 = arith.constant 416 : index
    %c0_21 = arith.constant 0 : index
    %35 = vector.load %arg1[%c416, %c0_21] : memref<576x192xf32, #tpu.memory_space<vmem>>, vector<1x16xf32>
    %c424 = arith.constant 424 : index
    %c0_22 = arith.constant 0 : index
    %36 = vector.load %arg1[%c424, %c0_22] : memref<576x192xf32, #tpu.memory_space<vmem>>, vector<16x1xf32>
    %c440 = arith.constant 440 : index
    %c0_23 = arith.constant 0 : index
    %37 = vector.load %arg1[%c440, %c0_23] : memref<576x192xf32, #tpu.memory_space<vmem>>, vector<1x1xf32>
    %c448 = arith.constant 448 : index
    %c0_24 = arith.constant 0 : index
    %38 = vector.load %arg1[%c448, %c0_24] : memref<576x192xf32, #tpu.memory_space<vmem>>, vector<16x192xf32>
    %c464 = arith.constant 464 : index
    %c0_25 = arith.constant 0 : index
    %39 = vector.load %arg1[%c464, %c0_25] : memref<576x192xf32, #tpu.memory_space<vmem>>, vector<48x192xf32>
    %c512 = arith.constant 512 : index
    %c0_26 = arith.constant 0 : index
    %40 = vector.load %arg1[%c512, %c0_26] : memref<576x192xf32, #tpu.memory_space<vmem>>, vector<1x192xf32>
    %41 = vector.shape_cast %40 : vector<1x192xf32> to vector<1x192xf32>
    %42 = vector.broadcast %41 : vector<1x192xf32> to vector<4x192xf32>
    %c520 = arith.constant 520 : index
    %c0_27 = arith.constant 0 : index
    %43 = vector.load %arg1[%c520, %c0_27] : memref<576x192xf32, #tpu.memory_space<vmem>>, vector<48x16xf32>
    %c568 = arith.constant 568 : index
    %c0_28 = arith.constant 0 : index
    %44 = vector.load %arg1[%c568, %c0_28] : memref<576x192xf32, #tpu.memory_space<vmem>>, vector<1x16xf32>
    %cst = arith.constant 0.000000e+00 : f32
    %45 = vector.broadcast %cst : f32 to vector<4x24xf32>
    %cst_29 = arith.constant 0.000000e+00 : f32
    %46 = vector.broadcast %cst_29 : f32 to vector<4x24xf32>
    %cst_30 = arith.constant 0.000000e+00 : f32
    %47 = vector.broadcast %cst_30 : f32 to vector<4x8xf32>
    %c0_31 = arith.constant 0 : index
    %c0_32 = arith.constant 0 : index
    %c0_33 = arith.constant 0 : index
    %48 = vector.load %arg0[%c0_31, %c0_32, %c0_33] : memref<6x4x16xf32, #tpu.memory_space<vmem>>, vector<1x4x16xf32>
    %49 = vector.shape_cast %48 : vector<1x4x16xf32> to vector<4x16xf32>
    %50 = tpu.concatenate %49, %45 in 1 : vector<4x16xf32>, vector<4x24xf32> -> vector<4x40xf32>
    %cst_34 = arith.constant dense<0.000000e+00> : vector<4x96xf32>
    %51 = tpu.matmul %50, %0, %cst_34 {dimension_numbers = #tpu.dot_dimension_numbers<[1], [0], [0], [1], [0, 0, 1, 1], [], []>} : vector<4x40xf32>, vector<40x96xf32>, vector<4x96xf32> -> vector<4x96xf32>
    %52 = arith.addf %51, %3 : vector<4x96xf32>
    %53 = vector.extract_strided_slice %52 {offsets = [0, 0], sizes = [4, 72], strides = [1, 1]} : vector<4x96xf32> to vector<4x72xf32>
    %54 = arith.negf %53 : vector<4x72xf32>
    %55 = math.exp %54 : vector<4x72xf32>
    %cst_35 = arith.constant 1.000000e+00 : f32
    %56 = vector.broadcast %cst_35 : f32 to vector<4x72xf32>
    %57 = arith.addf %56, %55 : vector<4x72xf32>
    %58 = arith.divf %56, %57 : vector<4x72xf32>
    %59 = vector.extract_strided_slice %58 {offsets = [0, 0], sizes = [4, 24], strides = [1, 1]} : vector<4x72xf32> to vector<4x24xf32>
    %60 = vector.extract_strided_slice %58 {offsets = [0, 24], sizes = [4, 24], strides = [1, 1]} : vector<4x72xf32> to vector<4x24xf32>
    %61 = vector.extract_strided_slice %58 {offsets = [0, 48], sizes = [4, 24], strides = [1, 1]} : vector<4x72xf32> to vector<4x24xf32>
    %62 = vector.extract_strided_slice %52 {offsets = [0, 72], sizes = [4, 24], strides = [1, 1]} : vector<4x96xf32> to vector<4x24xf32>
    %63 = math.tanh %62 : vector<4x24xf32>
    %64 = arith.mulf %60, %46 : vector<4x24xf32>
    %65 = arith.mulf %59, %63 : vector<4x24xf32>
    %66 = arith.addf %64, %65 : vector<4x24xf32>
    %67 = math.tanh %66 : vector<4x24xf32>
    %68 = arith.mulf %61, %67 : vector<4x24xf32>
    %69 = tpu.concatenate %46, %66 in 1 : vector<4x24xf32>, vector<4x24xf32> -> vector<4x48xf32>
    %cst_36 = arith.constant dense<0.000000e+00> : vector<4x16xf32>
    %70 = tpu.matmul %69, %4, %cst_36 {dimension_numbers = #tpu.dot_dimension_numbers<[1], [0], [0], [1], [0, 0, 1, 1], [], []>} : vector<4x48xf32>, vector<48x16xf32>, vector<4x16xf32> -> vector<4x16xf32>
    %71 = arith.addf %70, %7 : vector<4x16xf32>
    %cst_37 = arith.constant 0.000000e+00 : f32
    %72 = vector.broadcast %cst_37 : f32 to vector<4x16xf32>
    %73 = arith.maximumf %71, %72 : vector<4x16xf32>
    %cst_38 = arith.constant dense<0.000000e+00> : vector<4x48xf32>
    %74 = tpu.matmul %73, %8, %cst_38 {dimension_numbers = #tpu.dot_dimension_numbers<[1], [0], [0], [1], [0, 0, 1, 1], [], []>} : vector<4x16xf32>, vector<16x48xf32>, vector<4x48xf32> -> vector<4x48xf32>
    %75 = arith.addf %74, %11 : vector<4x48xf32>
    %cst_39 = arith.constant dense<0xFF800000> : vector<4xf32>
    %76 = vector.multi_reduction <maximumf>, %75, %cst_39 [1] : vector<4x48xf32> to vector<4xf32>
    %77 = vector.shape_cast %76 : vector<4xf32> to vector<4x1xf32>
    %78 = vector.broadcast %77 : vector<4x1xf32> to vector<4x48xf32>
    %79 = arith.subf %75, %78 : vector<4x48xf32>
    %80 = math.exp %79 : vector<4x48xf32>
    %cst_40 = arith.constant dense<0.000000e+00> : vector<4xf32>
    %81 = vector.multi_reduction <add>, %80, %cst_40 [1] : vector<4x48xf32> to vector<4xf32>
    %82 = vector.shape_cast %81 : vector<4xf32> to vector<4x1xf32>
    %83 = tpu.reciprocal %82 {approx = true} : vector<4x1xf32> -> vector<4x1xf32>
    %84 = vector.broadcast %83 : vector<4x1xf32> to vector<4x48xf32>
    %85 = arith.mulf %80, %84 : vector<4x48xf32>
    %86 = arith.mulf %85, %69 : vector<4x48xf32>
    %cst_41 = arith.constant dense<0.000000e+00> : vector<4x16xf32>
    %87 = tpu.matmul %86, %12, %cst_41 {dimension_numbers = #tpu.dot_dimension_numbers<[1], [0], [0], [1], [0, 0, 1, 1], [], []>} : vector<4x48xf32>, vector<48x16xf32>, vector<4x16xf32> -> vector<4x16xf32>
    %88 = arith.addf %87, %15 : vector<4x16xf32>
    %cst_42 = arith.constant 0.000000e+00 : f32
    %89 = vector.broadcast %cst_42 : f32 to vector<4x16xf32>
    %90 = arith.maximumf %88, %89 : vector<4x16xf32>
    %cst_43 = arith.constant dense<0.000000e+00> : vector<4x8xf32>
    %91 = tpu.matmul %90, %16, %cst_43 {dimension_numbers = #tpu.dot_dimension_numbers<[1], [0], [0], [1], [0, 0, 1, 1], [], []>} : vector<4x16xf32>, vector<16x8xf32>, vector<4x8xf32> -> vector<4x8xf32>
    %92 = arith.addf %91, %19 : vector<4x8xf32>
    %93 = math.tanh %92 : vector<4x8xf32>
    %94 = tpu.concatenate %86, %47 in 1 : vector<4x48xf32>, vector<4x8xf32> -> vector<4x56xf32>
    %cst_44 = arith.constant dense<0.000000e+00> : vector<4x32xf32>
    %95 = tpu.matmul %94, %20, %cst_44 {dimension_numbers = #tpu.dot_dimension_numbers<[1], [0], [0], [1], [0, 0, 1, 1], [], []>} : vector<4x56xf32>, vector<56x32xf32>, vector<4x32xf32> -> vector<4x32xf32>
    %96 = arith.addf %95, %23 : vector<4x32xf32>
    %cst_45 = arith.constant 0.000000e+00 : f32
    %97 = vector.broadcast %cst_45 : f32 to vector<4x32xf32>
    %98 = arith.maximumf %96, %97 : vector<4x32xf32>
    %cst_46 = arith.constant dense<0.000000e+00> : vector<4x16xf32>
    %99 = tpu.matmul %98, %24, %cst_46 {dimension_numbers = #tpu.dot_dimension_numbers<[1], [0], [0], [1], [0, 0, 1, 1], [], []>} : vector<4x32xf32>, vector<32x16xf32>, vector<4x16xf32> -> vector<4x16xf32>
    %100 = arith.addf %99, %27 : vector<4x16xf32>
    %101 = arith.negf %100 : vector<4x16xf32>
    %102 = math.exp %101 : vector<4x16xf32>
    %cst_47 = arith.constant 1.000000e+00 : f32
    %103 = vector.broadcast %cst_47 : f32 to vector<4x16xf32>
    %104 = arith.addf %103, %102 : vector<4x16xf32>
    %105 = arith.divf %103, %104 : vector<4x16xf32>
    %106 = vector.extract_strided_slice %105 {offsets = [0, 0], sizes = [4, 8], strides = [1, 1]} : vector<4x16xf32> to vector<4x8xf32>
    %107 = arith.mulf %106, %47 : vector<4x8xf32>
    %108 = vector.extract_strided_slice %105 {offsets = [0, 8], sizes = [4, 8], strides = [1, 1]} : vector<4x16xf32> to vector<4x8xf32>
    %109 = arith.mulf %108, %93 : vector<4x8xf32>
    %110 = arith.addf %107, %109 : vector<4x8xf32>
    %c1 = arith.constant 1 : index
    %c0_48 = arith.constant 0 : index
    %c0_49 = arith.constant 0 : index
    %111 = vector.load %arg0[%c1, %c0_48, %c0_49] : memref<6x4x16xf32, #tpu.memory_space<vmem>>, vector<1x4x16xf32>
    %112 = vector.shape_cast %111 : vector<1x4x16xf32> to vector<4x16xf32>
    %113 = tpu.concatenate %112, %68 in 1 : vector<4x16xf32>, vector<4x24xf32> -> vector<4x40xf32>
    %cst_50 = arith.constant dense<0.000000e+00> : vector<4x96xf32>
    %114 = tpu.matmul %113, %0, %cst_50 {dimension_numbers = #tpu.dot_dimension_numbers<[1], [0], [0], [1], [0, 0, 1, 1], [], []>} : vector<4x40xf32>, vector<40x96xf32>, vector<4x96xf32> -> vector<4x96xf32>
    %115 = arith.addf %114, %3 : vector<4x96xf32>
    %116 = vector.extract_strided_slice %115 {offsets = [0, 0], sizes = [4, 72], strides = [1, 1]} : vector<4x96xf32> to vector<4x72xf32>
    %117 = arith.negf %116 : vector<4x72xf32>
    %118 = math.exp %117 : vector<4x72xf32>
    %cst_51 = arith.constant 1.000000e+00 : f32
    %119 = vector.broadcast %cst_51 : f32 to vector<4x72xf32>
    %120 = arith.addf %119, %118 : vector<4x72xf32>
    %121 = arith.divf %119, %120 : vector<4x72xf32>
    %122 = vector.extract_strided_slice %121 {offsets = [0, 0], sizes = [4, 24], strides = [1, 1]} : vector<4x72xf32> to vector<4x24xf32>
    %123 = vector.extract_strided_slice %121 {offsets = [0, 24], sizes = [4, 24], strides = [1, 1]} : vector<4x72xf32> to vector<4x24xf32>
    %124 = vector.extract_strided_slice %121 {offsets = [0, 48], sizes = [4, 24], strides = [1, 1]} : vector<4x72xf32> to vector<4x24xf32>
    %125 = vector.extract_strided_slice %115 {offsets = [0, 72], sizes = [4, 24], strides = [1, 1]} : vector<4x96xf32> to vector<4x24xf32>
    %126 = math.tanh %125 : vector<4x24xf32>
    %127 = arith.mulf %123, %66 : vector<4x24xf32>
    %128 = arith.mulf %122, %126 : vector<4x24xf32>
    %129 = arith.addf %127, %128 : vector<4x24xf32>
    %130 = math.tanh %129 : vector<4x24xf32>
    %131 = arith.mulf %124, %130 : vector<4x24xf32>
    %132 = tpu.concatenate %66, %129 in 1 : vector<4x24xf32>, vector<4x24xf32> -> vector<4x48xf32>
    %cst_52 = arith.constant dense<0.000000e+00> : vector<4x16xf32>
    %133 = tpu.matmul %132, %4, %cst_52 {dimension_numbers = #tpu.dot_dimension_numbers<[1], [0], [0], [1], [0, 0, 1, 1], [], []>} : vector<4x48xf32>, vector<48x16xf32>, vector<4x16xf32> -> vector<4x16xf32>
    %134 = arith.addf %133, %7 : vector<4x16xf32>
    %cst_53 = arith.constant 0.000000e+00 : f32
    %135 = vector.broadcast %cst_53 : f32 to vector<4x16xf32>
    %136 = arith.maximumf %134, %135 : vector<4x16xf32>
    %cst_54 = arith.constant dense<0.000000e+00> : vector<4x48xf32>
    %137 = tpu.matmul %136, %8, %cst_54 {dimension_numbers = #tpu.dot_dimension_numbers<[1], [0], [0], [1], [0, 0, 1, 1], [], []>} : vector<4x16xf32>, vector<16x48xf32>, vector<4x48xf32> -> vector<4x48xf32>
    %138 = arith.addf %137, %11 : vector<4x48xf32>
    %cst_55 = arith.constant dense<0xFF800000> : vector<4xf32>
    %139 = vector.multi_reduction <maximumf>, %138, %cst_55 [1] : vector<4x48xf32> to vector<4xf32>
    %140 = vector.shape_cast %139 : vector<4xf32> to vector<4x1xf32>
    %141 = vector.broadcast %140 : vector<4x1xf32> to vector<4x48xf32>
    %142 = arith.subf %138, %141 : vector<4x48xf32>
    %143 = math.exp %142 : vector<4x48xf32>
    %cst_56 = arith.constant dense<0.000000e+00> : vector<4xf32>
    %144 = vector.multi_reduction <add>, %143, %cst_56 [1] : vector<4x48xf32> to vector<4xf32>
    %145 = vector.shape_cast %144 : vector<4xf32> to vector<4x1xf32>
    %146 = tpu.reciprocal %145 {approx = true} : vector<4x1xf32> -> vector<4x1xf32>
    %147 = vector.broadcast %146 : vector<4x1xf32> to vector<4x48xf32>
    %148 = arith.mulf %143, %147 : vector<4x48xf32>
    %149 = arith.mulf %148, %132 : vector<4x48xf32>
    %cst_57 = arith.constant dense<0.000000e+00> : vector<4x16xf32>
    %150 = tpu.matmul %149, %12, %cst_57 {dimension_numbers = #tpu.dot_dimension_numbers<[1], [0], [0], [1], [0, 0, 1, 1], [], []>} : vector<4x48xf32>, vector<48x16xf32>, vector<4x16xf32> -> vector<4x16xf32>
    %151 = arith.addf %150, %15 : vector<4x16xf32>
    %cst_58 = arith.constant 0.000000e+00 : f32
    %152 = vector.broadcast %cst_58 : f32 to vector<4x16xf32>
    %153 = arith.maximumf %151, %152 : vector<4x16xf32>
    %cst_59 = arith.constant dense<0.000000e+00> : vector<4x8xf32>
    %154 = tpu.matmul %153, %16, %cst_59 {dimension_numbers = #tpu.dot_dimension_numbers<[1], [0], [0], [1], [0, 0, 1, 1], [], []>} : vector<4x16xf32>, vector<16x8xf32>, vector<4x8xf32> -> vector<4x8xf32>
    %155 = arith.addf %154, %19 : vector<4x8xf32>
    %156 = math.tanh %155 : vector<4x8xf32>
    %157 = tpu.concatenate %149, %110 in 1 : vector<4x48xf32>, vector<4x8xf32> -> vector<4x56xf32>
    %cst_60 = arith.constant dense<0.000000e+00> : vector<4x32xf32>
    %158 = tpu.matmul %157, %20, %cst_60 {dimension_numbers = #tpu.dot_dimension_numbers<[1], [0], [0], [1], [0, 0, 1, 1], [], []>} : vector<4x56xf32>, vector<56x32xf32>, vector<4x32xf32> -> vector<4x32xf32>
    %159 = arith.addf %158, %23 : vector<4x32xf32>
    %cst_61 = arith.constant 0.000000e+00 : f32
    %160 = vector.broadcast %cst_61 : f32 to vector<4x32xf32>
    %161 = arith.maximumf %159, %160 : vector<4x32xf32>
    %cst_62 = arith.constant dense<0.000000e+00> : vector<4x16xf32>
    %162 = tpu.matmul %161, %24, %cst_62 {dimension_numbers = #tpu.dot_dimension_numbers<[1], [0], [0], [1], [0, 0, 1, 1], [], []>} : vector<4x32xf32>, vector<32x16xf32>, vector<4x16xf32> -> vector<4x16xf32>
    %163 = arith.addf %162, %27 : vector<4x16xf32>
    %164 = arith.negf %163 : vector<4x16xf32>
    %165 = math.exp %164 : vector<4x16xf32>
    %cst_63 = arith.constant 1.000000e+00 : f32
    %166 = vector.broadcast %cst_63 : f32 to vector<4x16xf32>
    %167 = arith.addf %166, %165 : vector<4x16xf32>
    %168 = arith.divf %166, %167 : vector<4x16xf32>
    %169 = vector.extract_strided_slice %168 {offsets = [0, 0], sizes = [4, 8], strides = [1, 1]} : vector<4x16xf32> to vector<4x8xf32>
    %170 = arith.mulf %169, %110 : vector<4x8xf32>
    %171 = vector.extract_strided_slice %168 {offsets = [0, 8], sizes = [4, 8], strides = [1, 1]} : vector<4x16xf32> to vector<4x8xf32>
    %172 = arith.mulf %171, %156 : vector<4x8xf32>
    %173 = arith.addf %170, %172 : vector<4x8xf32>
    %c2 = arith.constant 2 : index
    %c0_64 = arith.constant 0 : index
    %c0_65 = arith.constant 0 : index
    %174 = vector.load %arg0[%c2, %c0_64, %c0_65] : memref<6x4x16xf32, #tpu.memory_space<vmem>>, vector<1x4x16xf32>
    %175 = vector.shape_cast %174 : vector<1x4x16xf32> to vector<4x16xf32>
    %176 = tpu.concatenate %175, %131 in 1 : vector<4x16xf32>, vector<4x24xf32> -> vector<4x40xf32>
    %cst_66 = arith.constant dense<0.000000e+00> : vector<4x96xf32>
    %177 = tpu.matmul %176, %0, %cst_66 {dimension_numbers = #tpu.dot_dimension_numbers<[1], [0], [0], [1], [0, 0, 1, 1], [], []>} : vector<4x40xf32>, vector<40x96xf32>, vector<4x96xf32> -> vector<4x96xf32>
    %178 = arith.addf %177, %3 : vector<4x96xf32>
    %179 = vector.extract_strided_slice %178 {offsets = [0, 0], sizes = [4, 72], strides = [1, 1]} : vector<4x96xf32> to vector<4x72xf32>
    %180 = arith.negf %179 : vector<4x72xf32>
    %181 = math.exp %180 : vector<4x72xf32>
    %cst_67 = arith.constant 1.000000e+00 : f32
    %182 = vector.broadcast %cst_67 : f32 to vector<4x72xf32>
    %183 = arith.addf %182, %181 : vector<4x72xf32>
    %184 = arith.divf %182, %183 : vector<4x72xf32>
    %185 = vector.extract_strided_slice %184 {offsets = [0, 0], sizes = [4, 24], strides = [1, 1]} : vector<4x72xf32> to vector<4x24xf32>
    %186 = vector.extract_strided_slice %184 {offsets = [0, 24], sizes = [4, 24], strides = [1, 1]} : vector<4x72xf32> to vector<4x24xf32>
    %187 = vector.extract_strided_slice %184 {offsets = [0, 48], sizes = [4, 24], strides = [1, 1]} : vector<4x72xf32> to vector<4x24xf32>
    %188 = vector.extract_strided_slice %178 {offsets = [0, 72], sizes = [4, 24], strides = [1, 1]} : vector<4x96xf32> to vector<4x24xf32>
    %189 = math.tanh %188 : vector<4x24xf32>
    %190 = arith.mulf %186, %129 : vector<4x24xf32>
    %191 = arith.mulf %185, %189 : vector<4x24xf32>
    %192 = arith.addf %190, %191 : vector<4x24xf32>
    %193 = math.tanh %192 : vector<4x24xf32>
    %194 = arith.mulf %187, %193 : vector<4x24xf32>
    %195 = tpu.concatenate %129, %192 in 1 : vector<4x24xf32>, vector<4x24xf32> -> vector<4x48xf32>
    %cst_68 = arith.constant dense<0.000000e+00> : vector<4x16xf32>
    %196 = tpu.matmul %195, %4, %cst_68 {dimension_numbers = #tpu.dot_dimension_numbers<[1], [0], [0], [1], [0, 0, 1, 1], [], []>} : vector<4x48xf32>, vector<48x16xf32>, vector<4x16xf32> -> vector<4x16xf32>
    %197 = arith.addf %196, %7 : vector<4x16xf32>
    %cst_69 = arith.constant 0.000000e+00 : f32
    %198 = vector.broadcast %cst_69 : f32 to vector<4x16xf32>
    %199 = arith.maximumf %197, %198 : vector<4x16xf32>
    %cst_70 = arith.constant dense<0.000000e+00> : vector<4x48xf32>
    %200 = tpu.matmul %199, %8, %cst_70 {dimension_numbers = #tpu.dot_dimension_numbers<[1], [0], [0], [1], [0, 0, 1, 1], [], []>} : vector<4x16xf32>, vector<16x48xf32>, vector<4x48xf32> -> vector<4x48xf32>
    %201 = arith.addf %200, %11 : vector<4x48xf32>
    %cst_71 = arith.constant dense<0xFF800000> : vector<4xf32>
    %202 = vector.multi_reduction <maximumf>, %201, %cst_71 [1] : vector<4x48xf32> to vector<4xf32>
    %203 = vector.shape_cast %202 : vector<4xf32> to vector<4x1xf32>
    %204 = vector.broadcast %203 : vector<4x1xf32> to vector<4x48xf32>
    %205 = arith.subf %201, %204 : vector<4x48xf32>
    %206 = math.exp %205 : vector<4x48xf32>
    %cst_72 = arith.constant dense<0.000000e+00> : vector<4xf32>
    %207 = vector.multi_reduction <add>, %206, %cst_72 [1] : vector<4x48xf32> to vector<4xf32>
    %208 = vector.shape_cast %207 : vector<4xf32> to vector<4x1xf32>
    %209 = tpu.reciprocal %208 {approx = true} : vector<4x1xf32> -> vector<4x1xf32>
    %210 = vector.broadcast %209 : vector<4x1xf32> to vector<4x48xf32>
    %211 = arith.mulf %206, %210 : vector<4x48xf32>
    %212 = arith.mulf %211, %195 : vector<4x48xf32>
    %cst_73 = arith.constant dense<0.000000e+00> : vector<4x16xf32>
    %213 = tpu.matmul %212, %12, %cst_73 {dimension_numbers = #tpu.dot_dimension_numbers<[1], [0], [0], [1], [0, 0, 1, 1], [], []>} : vector<4x48xf32>, vector<48x16xf32>, vector<4x16xf32> -> vector<4x16xf32>
    %214 = arith.addf %213, %15 : vector<4x16xf32>
    %cst_74 = arith.constant 0.000000e+00 : f32
    %215 = vector.broadcast %cst_74 : f32 to vector<4x16xf32>
    %216 = arith.maximumf %214, %215 : vector<4x16xf32>
    %cst_75 = arith.constant dense<0.000000e+00> : vector<4x8xf32>
    %217 = tpu.matmul %216, %16, %cst_75 {dimension_numbers = #tpu.dot_dimension_numbers<[1], [0], [0], [1], [0, 0, 1, 1], [], []>} : vector<4x16xf32>, vector<16x8xf32>, vector<4x8xf32> -> vector<4x8xf32>
    %218 = arith.addf %217, %19 : vector<4x8xf32>
    %219 = math.tanh %218 : vector<4x8xf32>
    %220 = tpu.concatenate %212, %173 in 1 : vector<4x48xf32>, vector<4x8xf32> -> vector<4x56xf32>
    %cst_76 = arith.constant dense<0.000000e+00> : vector<4x32xf32>
    %221 = tpu.matmul %220, %20, %cst_76 {dimension_numbers = #tpu.dot_dimension_numbers<[1], [0], [0], [1], [0, 0, 1, 1], [], []>} : vector<4x56xf32>, vector<56x32xf32>, vector<4x32xf32> -> vector<4x32xf32>
    %222 = arith.addf %221, %23 : vector<4x32xf32>
    %cst_77 = arith.constant 0.000000e+00 : f32
    %223 = vector.broadcast %cst_77 : f32 to vector<4x32xf32>
    %224 = arith.maximumf %222, %223 : vector<4x32xf32>
    %cst_78 = arith.constant dense<0.000000e+00> : vector<4x16xf32>
    %225 = tpu.matmul %224, %24, %cst_78 {dimension_numbers = #tpu.dot_dimension_numbers<[1], [0], [0], [1], [0, 0, 1, 1], [], []>} : vector<4x32xf32>, vector<32x16xf32>, vector<4x16xf32> -> vector<4x16xf32>
    %226 = arith.addf %225, %27 : vector<4x16xf32>
    %227 = arith.negf %226 : vector<4x16xf32>
    %228 = math.exp %227 : vector<4x16xf32>
    %cst_79 = arith.constant 1.000000e+00 : f32
    %229 = vector.broadcast %cst_79 : f32 to vector<4x16xf32>
    %230 = arith.addf %229, %228 : vector<4x16xf32>
    %231 = arith.divf %229, %230 : vector<4x16xf32>
    %232 = vector.extract_strided_slice %231 {offsets = [0, 0], sizes = [4, 8], strides = [1, 1]} : vector<4x16xf32> to vector<4x8xf32>
    %233 = arith.mulf %232, %173 : vector<4x8xf32>
    %234 = vector.extract_strided_slice %231 {offsets = [0, 8], sizes = [4, 8], strides = [1, 1]} : vector<4x16xf32> to vector<4x8xf32>
    %235 = arith.mulf %234, %219 : vector<4x8xf32>
    %236 = arith.addf %233, %235 : vector<4x8xf32>
    %c3 = arith.constant 3 : index
    %c0_80 = arith.constant 0 : index
    %c0_81 = arith.constant 0 : index
    %237 = vector.load %arg0[%c3, %c0_80, %c0_81] : memref<6x4x16xf32, #tpu.memory_space<vmem>>, vector<1x4x16xf32>
    %238 = vector.shape_cast %237 : vector<1x4x16xf32> to vector<4x16xf32>
    %239 = tpu.concatenate %238, %194 in 1 : vector<4x16xf32>, vector<4x24xf32> -> vector<4x40xf32>
    %cst_82 = arith.constant dense<0.000000e+00> : vector<4x96xf32>
    %240 = tpu.matmul %239, %0, %cst_82 {dimension_numbers = #tpu.dot_dimension_numbers<[1], [0], [0], [1], [0, 0, 1, 1], [], []>} : vector<4x40xf32>, vector<40x96xf32>, vector<4x96xf32> -> vector<4x96xf32>
    %241 = arith.addf %240, %3 : vector<4x96xf32>
    %242 = vector.extract_strided_slice %241 {offsets = [0, 0], sizes = [4, 72], strides = [1, 1]} : vector<4x96xf32> to vector<4x72xf32>
    %243 = arith.negf %242 : vector<4x72xf32>
    %244 = math.exp %243 : vector<4x72xf32>
    %cst_83 = arith.constant 1.000000e+00 : f32
    %245 = vector.broadcast %cst_83 : f32 to vector<4x72xf32>
    %246 = arith.addf %245, %244 : vector<4x72xf32>
    %247 = arith.divf %245, %246 : vector<4x72xf32>
    %248 = vector.extract_strided_slice %247 {offsets = [0, 0], sizes = [4, 24], strides = [1, 1]} : vector<4x72xf32> to vector<4x24xf32>
    %249 = vector.extract_strided_slice %247 {offsets = [0, 24], sizes = [4, 24], strides = [1, 1]} : vector<4x72xf32> to vector<4x24xf32>
    %250 = vector.extract_strided_slice %247 {offsets = [0, 48], sizes = [4, 24], strides = [1, 1]} : vector<4x72xf32> to vector<4x24xf32>
    %251 = vector.extract_strided_slice %241 {offsets = [0, 72], sizes = [4, 24], strides = [1, 1]} : vector<4x96xf32> to vector<4x24xf32>
    %252 = math.tanh %251 : vector<4x24xf32>
    %253 = arith.mulf %249, %192 : vector<4x24xf32>
    %254 = arith.mulf %248, %252 : vector<4x24xf32>
    %255 = arith.addf %253, %254 : vector<4x24xf32>
    %256 = math.tanh %255 : vector<4x24xf32>
    %257 = arith.mulf %250, %256 : vector<4x24xf32>
    %258 = tpu.concatenate %192, %255 in 1 : vector<4x24xf32>, vector<4x24xf32> -> vector<4x48xf32>
    %cst_84 = arith.constant dense<0.000000e+00> : vector<4x16xf32>
    %259 = tpu.matmul %258, %4, %cst_84 {dimension_numbers = #tpu.dot_dimension_numbers<[1], [0], [0], [1], [0, 0, 1, 1], [], []>} : vector<4x48xf32>, vector<48x16xf32>, vector<4x16xf32> -> vector<4x16xf32>
    %260 = arith.addf %259, %7 : vector<4x16xf32>
    %cst_85 = arith.constant 0.000000e+00 : f32
    %261 = vector.broadcast %cst_85 : f32 to vector<4x16xf32>
    %262 = arith.maximumf %260, %261 : vector<4x16xf32>
    %cst_86 = arith.constant dense<0.000000e+00> : vector<4x48xf32>
    %263 = tpu.matmul %262, %8, %cst_86 {dimension_numbers = #tpu.dot_dimension_numbers<[1], [0], [0], [1], [0, 0, 1, 1], [], []>} : vector<4x16xf32>, vector<16x48xf32>, vector<4x48xf32> -> vector<4x48xf32>
    %264 = arith.addf %263, %11 : vector<4x48xf32>
    %cst_87 = arith.constant dense<0xFF800000> : vector<4xf32>
    %265 = vector.multi_reduction <maximumf>, %264, %cst_87 [1] : vector<4x48xf32> to vector<4xf32>
    %266 = vector.shape_cast %265 : vector<4xf32> to vector<4x1xf32>
    %267 = vector.broadcast %266 : vector<4x1xf32> to vector<4x48xf32>
    %268 = arith.subf %264, %267 : vector<4x48xf32>
    %269 = math.exp %268 : vector<4x48xf32>
    %cst_88 = arith.constant dense<0.000000e+00> : vector<4xf32>
    %270 = vector.multi_reduction <add>, %269, %cst_88 [1] : vector<4x48xf32> to vector<4xf32>
    %271 = vector.shape_cast %270 : vector<4xf32> to vector<4x1xf32>
    %272 = tpu.reciprocal %271 {approx = true} : vector<4x1xf32> -> vector<4x1xf32>
    %273 = vector.broadcast %272 : vector<4x1xf32> to vector<4x48xf32>
    %274 = arith.mulf %269, %273 : vector<4x48xf32>
    %275 = arith.mulf %274, %258 : vector<4x48xf32>
    %cst_89 = arith.constant dense<0.000000e+00> : vector<4x16xf32>
    %276 = tpu.matmul %275, %12, %cst_89 {dimension_numbers = #tpu.dot_dimension_numbers<[1], [0], [0], [1], [0, 0, 1, 1], [], []>} : vector<4x48xf32>, vector<48x16xf32>, vector<4x16xf32> -> vector<4x16xf32>
    %277 = arith.addf %276, %15 : vector<4x16xf32>
    %cst_90 = arith.constant 0.000000e+00 : f32
    %278 = vector.broadcast %cst_90 : f32 to vector<4x16xf32>
    %279 = arith.maximumf %277, %278 : vector<4x16xf32>
    %cst_91 = arith.constant dense<0.000000e+00> : vector<4x8xf32>
    %280 = tpu.matmul %279, %16, %cst_91 {dimension_numbers = #tpu.dot_dimension_numbers<[1], [0], [0], [1], [0, 0, 1, 1], [], []>} : vector<4x16xf32>, vector<16x8xf32>, vector<4x8xf32> -> vector<4x8xf32>
    %281 = arith.addf %280, %19 : vector<4x8xf32>
    %282 = math.tanh %281 : vector<4x8xf32>
    %283 = tpu.concatenate %275, %236 in 1 : vector<4x48xf32>, vector<4x8xf32> -> vector<4x56xf32>
    %cst_92 = arith.constant dense<0.000000e+00> : vector<4x32xf32>
    %284 = tpu.matmul %283, %20, %cst_92 {dimension_numbers = #tpu.dot_dimension_numbers<[1], [0], [0], [1], [0, 0, 1, 1], [], []>} : vector<4x56xf32>, vector<56x32xf32>, vector<4x32xf32> -> vector<4x32xf32>
    %285 = arith.addf %284, %23 : vector<4x32xf32>
    %cst_93 = arith.constant 0.000000e+00 : f32
    %286 = vector.broadcast %cst_93 : f32 to vector<4x32xf32>
    %287 = arith.maximumf %285, %286 : vector<4x32xf32>
    %cst_94 = arith.constant dense<0.000000e+00> : vector<4x16xf32>
    %288 = tpu.matmul %287, %24, %cst_94 {dimension_numbers = #tpu.dot_dimension_numbers<[1], [0], [0], [1], [0, 0, 1, 1], [], []>} : vector<4x32xf32>, vector<32x16xf32>, vector<4x16xf32> -> vector<4x16xf32>
    %289 = arith.addf %288, %27 : vector<4x16xf32>
    %290 = arith.negf %289 : vector<4x16xf32>
    %291 = math.exp %290 : vector<4x16xf32>
    %cst_95 = arith.constant 1.000000e+00 : f32
    %292 = vector.broadcast %cst_95 : f32 to vector<4x16xf32>
    %293 = arith.addf %292, %291 : vector<4x16xf32>
    %294 = arith.divf %292, %293 : vector<4x16xf32>
    %295 = vector.extract_strided_slice %294 {offsets = [0, 0], sizes = [4, 8], strides = [1, 1]} : vector<4x16xf32> to vector<4x8xf32>
    %296 = arith.mulf %295, %236 : vector<4x8xf32>
    %297 = vector.extract_strided_slice %294 {offsets = [0, 8], sizes = [4, 8], strides = [1, 1]} : vector<4x16xf32> to vector<4x8xf32>
    %298 = arith.mulf %297, %282 : vector<4x8xf32>
    %299 = arith.addf %296, %298 : vector<4x8xf32>
    %c4 = arith.constant 4 : index
    %c0_96 = arith.constant 0 : index
    %c0_97 = arith.constant 0 : index
    %300 = vector.load %arg0[%c4, %c0_96, %c0_97] : memref<6x4x16xf32, #tpu.memory_space<vmem>>, vector<1x4x16xf32>
    %301 = vector.shape_cast %300 : vector<1x4x16xf32> to vector<4x16xf32>
    %302 = tpu.concatenate %301, %257 in 1 : vector<4x16xf32>, vector<4x24xf32> -> vector<4x40xf32>
    %cst_98 = arith.constant dense<0.000000e+00> : vector<4x96xf32>
    %303 = tpu.matmul %302, %0, %cst_98 {dimension_numbers = #tpu.dot_dimension_numbers<[1], [0], [0], [1], [0, 0, 1, 1], [], []>} : vector<4x40xf32>, vector<40x96xf32>, vector<4x96xf32> -> vector<4x96xf32>
    %304 = arith.addf %303, %3 : vector<4x96xf32>
    %305 = vector.extract_strided_slice %304 {offsets = [0, 0], sizes = [4, 72], strides = [1, 1]} : vector<4x96xf32> to vector<4x72xf32>
    %306 = arith.negf %305 : vector<4x72xf32>
    %307 = math.exp %306 : vector<4x72xf32>
    %cst_99 = arith.constant 1.000000e+00 : f32
    %308 = vector.broadcast %cst_99 : f32 to vector<4x72xf32>
    %309 = arith.addf %308, %307 : vector<4x72xf32>
    %310 = arith.divf %308, %309 : vector<4x72xf32>
    %311 = vector.extract_strided_slice %310 {offsets = [0, 0], sizes = [4, 24], strides = [1, 1]} : vector<4x72xf32> to vector<4x24xf32>
    %312 = vector.extract_strided_slice %310 {offsets = [0, 24], sizes = [4, 24], strides = [1, 1]} : vector<4x72xf32> to vector<4x24xf32>
    %313 = vector.extract_strided_slice %310 {offsets = [0, 48], sizes = [4, 24], strides = [1, 1]} : vector<4x72xf32> to vector<4x24xf32>
    %314 = vector.extract_strided_slice %304 {offsets = [0, 72], sizes = [4, 24], strides = [1, 1]} : vector<4x96xf32> to vector<4x24xf32>
    %315 = math.tanh %314 : vector<4x24xf32>
    %316 = arith.mulf %312, %255 : vector<4x24xf32>
    %317 = arith.mulf %311, %315 : vector<4x24xf32>
    %318 = arith.addf %316, %317 : vector<4x24xf32>
    %319 = math.tanh %318 : vector<4x24xf32>
    %320 = arith.mulf %313, %319 : vector<4x24xf32>
    %321 = tpu.concatenate %255, %318 in 1 : vector<4x24xf32>, vector<4x24xf32> -> vector<4x48xf32>
    %cst_100 = arith.constant dense<0.000000e+00> : vector<4x16xf32>
    %322 = tpu.matmul %321, %4, %cst_100 {dimension_numbers = #tpu.dot_dimension_numbers<[1], [0], [0], [1], [0, 0, 1, 1], [], []>} : vector<4x48xf32>, vector<48x16xf32>, vector<4x16xf32> -> vector<4x16xf32>
    %323 = arith.addf %322, %7 : vector<4x16xf32>
    %cst_101 = arith.constant 0.000000e+00 : f32
    %324 = vector.broadcast %cst_101 : f32 to vector<4x16xf32>
    %325 = arith.maximumf %323, %324 : vector<4x16xf32>
    %cst_102 = arith.constant dense<0.000000e+00> : vector<4x48xf32>
    %326 = tpu.matmul %325, %8, %cst_102 {dimension_numbers = #tpu.dot_dimension_numbers<[1], [0], [0], [1], [0, 0, 1, 1], [], []>} : vector<4x16xf32>, vector<16x48xf32>, vector<4x48xf32> -> vector<4x48xf32>
    %327 = arith.addf %326, %11 : vector<4x48xf32>
    %cst_103 = arith.constant dense<0xFF800000> : vector<4xf32>
    %328 = vector.multi_reduction <maximumf>, %327, %cst_103 [1] : vector<4x48xf32> to vector<4xf32>
    %329 = vector.shape_cast %328 : vector<4xf32> to vector<4x1xf32>
    %330 = vector.broadcast %329 : vector<4x1xf32> to vector<4x48xf32>
    %331 = arith.subf %327, %330 : vector<4x48xf32>
    %332 = math.exp %331 : vector<4x48xf32>
    %cst_104 = arith.constant dense<0.000000e+00> : vector<4xf32>
    %333 = vector.multi_reduction <add>, %332, %cst_104 [1] : vector<4x48xf32> to vector<4xf32>
    %334 = vector.shape_cast %333 : vector<4xf32> to vector<4x1xf32>
    %335 = tpu.reciprocal %334 {approx = true} : vector<4x1xf32> -> vector<4x1xf32>
    %336 = vector.broadcast %335 : vector<4x1xf32> to vector<4x48xf32>
    %337 = arith.mulf %332, %336 : vector<4x48xf32>
    %338 = arith.mulf %337, %321 : vector<4x48xf32>
    %cst_105 = arith.constant dense<0.000000e+00> : vector<4x16xf32>
    %339 = tpu.matmul %338, %12, %cst_105 {dimension_numbers = #tpu.dot_dimension_numbers<[1], [0], [0], [1], [0, 0, 1, 1], [], []>} : vector<4x48xf32>, vector<48x16xf32>, vector<4x16xf32> -> vector<4x16xf32>
    %340 = arith.addf %339, %15 : vector<4x16xf32>
    %cst_106 = arith.constant 0.000000e+00 : f32
    %341 = vector.broadcast %cst_106 : f32 to vector<4x16xf32>
    %342 = arith.maximumf %340, %341 : vector<4x16xf32>
    %cst_107 = arith.constant dense<0.000000e+00> : vector<4x8xf32>
    %343 = tpu.matmul %342, %16, %cst_107 {dimension_numbers = #tpu.dot_dimension_numbers<[1], [0], [0], [1], [0, 0, 1, 1], [], []>} : vector<4x16xf32>, vector<16x8xf32>, vector<4x8xf32> -> vector<4x8xf32>
    %344 = arith.addf %343, %19 : vector<4x8xf32>
    %345 = math.tanh %344 : vector<4x8xf32>
    %346 = tpu.concatenate %338, %299 in 1 : vector<4x48xf32>, vector<4x8xf32> -> vector<4x56xf32>
    %cst_108 = arith.constant dense<0.000000e+00> : vector<4x32xf32>
    %347 = tpu.matmul %346, %20, %cst_108 {dimension_numbers = #tpu.dot_dimension_numbers<[1], [0], [0], [1], [0, 0, 1, 1], [], []>} : vector<4x56xf32>, vector<56x32xf32>, vector<4x32xf32> -> vector<4x32xf32>
    %348 = arith.addf %347, %23 : vector<4x32xf32>
    %cst_109 = arith.constant 0.000000e+00 : f32
    %349 = vector.broadcast %cst_109 : f32 to vector<4x32xf32>
    %350 = arith.maximumf %348, %349 : vector<4x32xf32>
    %cst_110 = arith.constant dense<0.000000e+00> : vector<4x16xf32>
    %351 = tpu.matmul %350, %24, %cst_110 {dimension_numbers = #tpu.dot_dimension_numbers<[1], [0], [0], [1], [0, 0, 1, 1], [], []>} : vector<4x32xf32>, vector<32x16xf32>, vector<4x16xf32> -> vector<4x16xf32>
    %352 = arith.addf %351, %27 : vector<4x16xf32>
    %353 = arith.negf %352 : vector<4x16xf32>
    %354 = math.exp %353 : vector<4x16xf32>
    %cst_111 = arith.constant 1.000000e+00 : f32
    %355 = vector.broadcast %cst_111 : f32 to vector<4x16xf32>
    %356 = arith.addf %355, %354 : vector<4x16xf32>
    %357 = arith.divf %355, %356 : vector<4x16xf32>
    %358 = vector.extract_strided_slice %357 {offsets = [0, 0], sizes = [4, 8], strides = [1, 1]} : vector<4x16xf32> to vector<4x8xf32>
    %359 = arith.mulf %358, %299 : vector<4x8xf32>
    %360 = vector.extract_strided_slice %357 {offsets = [0, 8], sizes = [4, 8], strides = [1, 1]} : vector<4x16xf32> to vector<4x8xf32>
    %361 = arith.mulf %360, %345 : vector<4x8xf32>
    %362 = arith.addf %359, %361 : vector<4x8xf32>
    %c5 = arith.constant 5 : index
    %c0_112 = arith.constant 0 : index
    %c0_113 = arith.constant 0 : index
    %363 = vector.load %arg0[%c5, %c0_112, %c0_113] : memref<6x4x16xf32, #tpu.memory_space<vmem>>, vector<1x4x16xf32>
    %364 = vector.shape_cast %363 : vector<1x4x16xf32> to vector<4x16xf32>
    %365 = tpu.concatenate %364, %320 in 1 : vector<4x16xf32>, vector<4x24xf32> -> vector<4x40xf32>
    %cst_114 = arith.constant dense<0.000000e+00> : vector<4x96xf32>
    %366 = tpu.matmul %365, %0, %cst_114 {dimension_numbers = #tpu.dot_dimension_numbers<[1], [0], [0], [1], [0, 0, 1, 1], [], []>} : vector<4x40xf32>, vector<40x96xf32>, vector<4x96xf32> -> vector<4x96xf32>
    %367 = arith.addf %366, %3 : vector<4x96xf32>
    %368 = vector.extract_strided_slice %367 {offsets = [0, 0], sizes = [4, 72], strides = [1, 1]} : vector<4x96xf32> to vector<4x72xf32>
    %369 = arith.negf %368 : vector<4x72xf32>
    %370 = math.exp %369 : vector<4x72xf32>
    %cst_115 = arith.constant 1.000000e+00 : f32
    %371 = vector.broadcast %cst_115 : f32 to vector<4x72xf32>
    %372 = arith.addf %371, %370 : vector<4x72xf32>
    %373 = arith.divf %371, %372 : vector<4x72xf32>
    %374 = vector.extract_strided_slice %373 {offsets = [0, 0], sizes = [4, 24], strides = [1, 1]} : vector<4x72xf32> to vector<4x24xf32>
    %375 = vector.extract_strided_slice %373 {offsets = [0, 24], sizes = [4, 24], strides = [1, 1]} : vector<4x72xf32> to vector<4x24xf32>
    %376 = vector.extract_strided_slice %373 {offsets = [0, 48], sizes = [4, 24], strides = [1, 1]} : vector<4x72xf32> to vector<4x24xf32>
    %377 = vector.extract_strided_slice %367 {offsets = [0, 72], sizes = [4, 24], strides = [1, 1]} : vector<4x96xf32> to vector<4x24xf32>
    %378 = math.tanh %377 : vector<4x24xf32>
    %379 = arith.mulf %375, %318 : vector<4x24xf32>
    %380 = arith.mulf %374, %378 : vector<4x24xf32>
    %381 = arith.addf %379, %380 : vector<4x24xf32>
    %382 = math.tanh %381 : vector<4x24xf32>
    %383 = arith.mulf %376, %382 : vector<4x24xf32>
    %384 = tpu.concatenate %318, %381 in 1 : vector<4x24xf32>, vector<4x24xf32> -> vector<4x48xf32>
    %cst_116 = arith.constant dense<0.000000e+00> : vector<4x16xf32>
    %385 = tpu.matmul %384, %4, %cst_116 {dimension_numbers = #tpu.dot_dimension_numbers<[1], [0], [0], [1], [0, 0, 1, 1], [], []>} : vector<4x48xf32>, vector<48x16xf32>, vector<4x16xf32> -> vector<4x16xf32>
    %386 = arith.addf %385, %7 : vector<4x16xf32>
    %cst_117 = arith.constant 0.000000e+00 : f32
    %387 = vector.broadcast %cst_117 : f32 to vector<4x16xf32>
    %388 = arith.maximumf %386, %387 : vector<4x16xf32>
    %cst_118 = arith.constant dense<0.000000e+00> : vector<4x48xf32>
    %389 = tpu.matmul %388, %8, %cst_118 {dimension_numbers = #tpu.dot_dimension_numbers<[1], [0], [0], [1], [0, 0, 1, 1], [], []>} : vector<4x16xf32>, vector<16x48xf32>, vector<4x48xf32> -> vector<4x48xf32>
    %390 = arith.addf %389, %11 : vector<4x48xf32>
    %cst_119 = arith.constant dense<0xFF800000> : vector<4xf32>
    %391 = vector.multi_reduction <maximumf>, %390, %cst_119 [1] : vector<4x48xf32> to vector<4xf32>
    %392 = vector.shape_cast %391 : vector<4xf32> to vector<4x1xf32>
    %393 = vector.broadcast %392 : vector<4x1xf32> to vector<4x48xf32>
    %394 = arith.subf %390, %393 : vector<4x48xf32>
    %395 = math.exp %394 : vector<4x48xf32>
    %cst_120 = arith.constant dense<0.000000e+00> : vector<4xf32>
    %396 = vector.multi_reduction <add>, %395, %cst_120 [1] : vector<4x48xf32> to vector<4xf32>
    %397 = vector.shape_cast %396 : vector<4xf32> to vector<4x1xf32>
    %398 = tpu.reciprocal %397 {approx = true} : vector<4x1xf32> -> vector<4x1xf32>
    %399 = vector.broadcast %398 : vector<4x1xf32> to vector<4x48xf32>
    %400 = arith.mulf %395, %399 : vector<4x48xf32>
    %401 = arith.mulf %400, %384 : vector<4x48xf32>
    %cst_121 = arith.constant dense<0.000000e+00> : vector<4x16xf32>
    %402 = tpu.matmul %401, %12, %cst_121 {dimension_numbers = #tpu.dot_dimension_numbers<[1], [0], [0], [1], [0, 0, 1, 1], [], []>} : vector<4x48xf32>, vector<48x16xf32>, vector<4x16xf32> -> vector<4x16xf32>
    %403 = arith.addf %402, %15 : vector<4x16xf32>
    %cst_122 = arith.constant 0.000000e+00 : f32
    %404 = vector.broadcast %cst_122 : f32 to vector<4x16xf32>
    %405 = arith.maximumf %403, %404 : vector<4x16xf32>
    %cst_123 = arith.constant dense<0.000000e+00> : vector<4x8xf32>
    %406 = tpu.matmul %405, %16, %cst_123 {dimension_numbers = #tpu.dot_dimension_numbers<[1], [0], [0], [1], [0, 0, 1, 1], [], []>} : vector<4x16xf32>, vector<16x8xf32>, vector<4x8xf32> -> vector<4x8xf32>
    %407 = arith.addf %406, %19 : vector<4x8xf32>
    %408 = math.tanh %407 : vector<4x8xf32>
    %409 = tpu.concatenate %401, %362 in 1 : vector<4x48xf32>, vector<4x8xf32> -> vector<4x56xf32>
    %cst_124 = arith.constant dense<0.000000e+00> : vector<4x32xf32>
    %410 = tpu.matmul %409, %20, %cst_124 {dimension_numbers = #tpu.dot_dimension_numbers<[1], [0], [0], [1], [0, 0, 1, 1], [], []>} : vector<4x56xf32>, vector<56x32xf32>, vector<4x32xf32> -> vector<4x32xf32>
    %411 = arith.addf %410, %23 : vector<4x32xf32>
    %cst_125 = arith.constant 0.000000e+00 : f32
    %412 = vector.broadcast %cst_125 : f32 to vector<4x32xf32>
    %413 = arith.maximumf %411, %412 : vector<4x32xf32>
    %cst_126 = arith.constant dense<0.000000e+00> : vector<4x16xf32>
    %414 = tpu.matmul %413, %24, %cst_126 {dimension_numbers = #tpu.dot_dimension_numbers<[1], [0], [0], [1], [0, 0, 1, 1], [], []>} : vector<4x32xf32>, vector<32x16xf32>, vector<4x16xf32> -> vector<4x16xf32>
    %415 = arith.addf %414, %27 : vector<4x16xf32>
    %416 = arith.negf %415 : vector<4x16xf32>
    %417 = math.exp %416 : vector<4x16xf32>
    %cst_127 = arith.constant 1.000000e+00 : f32
    %418 = vector.broadcast %cst_127 : f32 to vector<4x16xf32>
    %419 = arith.addf %418, %417 : vector<4x16xf32>
    %420 = arith.divf %418, %419 : vector<4x16xf32>
    %421 = vector.extract_strided_slice %420 {offsets = [0, 0], sizes = [4, 8], strides = [1, 1]} : vector<4x16xf32> to vector<4x8xf32>
    %422 = arith.mulf %421, %362 : vector<4x8xf32>
    %423 = vector.extract_strided_slice %420 {offsets = [0, 8], sizes = [4, 8], strides = [1, 1]} : vector<4x16xf32> to vector<4x8xf32>
    %424 = arith.mulf %423, %408 : vector<4x8xf32>
    %425 = arith.addf %422, %424 : vector<4x8xf32>
    %426 = tpu.concatenate %383, %425 in 1 : vector<4x24xf32>, vector<4x8xf32> -> vector<4x32xf32>
    %cst_128 = arith.constant dense<0.000000e+00> : vector<4x16xf32>
    %427 = tpu.matmul %426, %28, %cst_128 {dimension_numbers = #tpu.dot_dimension_numbers<[1], [0], [0], [1], [0, 0, 1, 1], [], []>} : vector<4x32xf32>, vector<32x16xf32>, vector<4x16xf32> -> vector<4x16xf32>
    %428 = vector.broadcast %29 : vector<1x16xf32> to vector<4x16xf32>
    %429 = arith.addf %427, %428 : vector<4x16xf32>
    %c0_129 = arith.constant 0 : index
    %c0_130 = arith.constant 0 : index
    %430 = vector.load %arg2[%c0_129, %c0_130] : memref<4x16xf32, #tpu.memory_space<vmem>>, vector<4x16xf32>
    %431 = tpu.concatenate %430, %429 in 0 : vector<4x16xf32>, vector<4x16xf32> -> vector<8x16xf32>
    %432 = arith.mulf %431, %431 : vector<8x16xf32>
    %cst_131 = arith.constant dense<0.000000e+00> : vector<8xf32>
    %433 = vector.multi_reduction <add>, %432, %cst_131 [1] : vector<8x16xf32> to vector<8xf32>
    %434 = vector.shape_cast %433 : vector<8xf32> to vector<8x1xf32>
    %cst_132 = arith.constant 1.000000e+00 : f32
    %435 = vector.broadcast %cst_132 : f32 to vector<8x1xf32>
    %cst_133 = arith.constant -2.000000e+00 : f32
    %436 = vector.broadcast %cst_133 : f32 to vector<8x16xf32>
    %437 = arith.mulf %436, %431 : vector<8x16xf32>
    %438 = tpu.concatenate %437, %434, %435 in 1 : vector<8x16xf32>, vector<8x1xf32>, vector<8x1xf32> -> vector<8x18xf32>
    %439 = tpu.concatenate %431, %435, %434 in 1 : vector<8x16xf32>, vector<8x1xf32>, vector<8x1xf32> -> vector<8x18xf32>
    %440 = tpu.transpose %439, [1, 0] : vector<8x18xf32> -> vector<18x8xf32>
    %cst_134 = arith.constant dense<0.000000e+00> : vector<8x8xf32>
    %441 = tpu.matmul %438, %440, %cst_134 {dimension_numbers = #tpu.dot_dimension_numbers<[1], [0], [0], [1], [0, 0, 1, 1], [], []>} : vector<8x18xf32>, vector<18x8xf32>, vector<8x8xf32> -> vector<8x8xf32>
    %cst_135 = arith.constant 0.000000e+00 : f32
    %442 = vector.broadcast %cst_135 : f32 to vector<8x8xf32>
    %443 = arith.maximumf %441, %442 : vector<8x8xf32>
    %cst_136 = arith.constant -3.906250e-03 : f32
    %444 = vector.broadcast %cst_136 : f32 to vector<8x8xf32>
    %445 = arith.mulf %443, %444 : vector<8x8xf32>
    %446 = math.exp %445 : vector<8x8xf32>
    %447 = vector.extract_strided_slice %446 {offsets = [0, 0], sizes = [4, 4], strides = [1, 1]} : vector<8x8xf32> to vector<4x4xf32>
    %448 = vector.shape_cast %447 : vector<4x4xf32> to vector<1x4x4xf32>
    %cst_137 = arith.constant dense<0.000000e+00> : vector<1xf32>
    %449 = vector.multi_reduction <add>, %448, %cst_137 [1, 2] : vector<1x4x4xf32> to vector<1xf32>
    %450 = vector.shape_cast %449 : vector<1xf32> to vector<1x1x1xf32>
    %451 = vector.extract %450[0, 0, 0] : f32 from vector<1x1x1xf32>
    %cst_138 = arith.constant 1.600000e+01 : f32
    %452 = arith.divf %451, %cst_138 : f32
    %453 = vector.extract_strided_slice %446 {offsets = [4, 4], sizes = [4, 4], strides = [1, 1]} : vector<8x8xf32> to vector<4x4xf32>
    %454 = vector.shape_cast %453 : vector<4x4xf32> to vector<1x4x4xf32>
    %cst_139 = arith.constant dense<0.000000e+00> : vector<1xf32>
    %455 = vector.multi_reduction <add>, %454, %cst_139 [1, 2] : vector<1x4x4xf32> to vector<1xf32>
    %456 = vector.shape_cast %455 : vector<1xf32> to vector<1x1x1xf32>
    %457 = vector.extract %456[0, 0, 0] : f32 from vector<1x1x1xf32>
    %cst_140 = arith.constant 1.600000e+01 : f32
    %458 = arith.divf %457, %cst_140 : f32
    %459 = vector.extract_strided_slice %446 {offsets = [0, 4], sizes = [4, 4], strides = [1, 1]} : vector<8x8xf32> to vector<4x4xf32>
    %460 = vector.shape_cast %459 : vector<4x4xf32> to vector<1x4x4xf32>
    %cst_141 = arith.constant dense<0.000000e+00> : vector<1xf32>
    %461 = vector.multi_reduction <add>, %460, %cst_141 [1, 2] : vector<1x4x4xf32> to vector<1xf32>
    %462 = vector.shape_cast %461 : vector<1xf32> to vector<1x1x1xf32>
    %463 = vector.extract %462[0, 0, 0] : f32 from vector<1x1x1xf32>
    %cst_142 = arith.constant 1.600000e+01 : f32
    %464 = arith.divf %463, %cst_142 : f32
    %465 = arith.addf %452, %458 : f32
    %cst_143 = arith.constant 2.000000e+00 : f32
    %466 = arith.mulf %cst_143, %464 : f32
    %467 = arith.subf %465, %466 : f32
    %c0_144 = arith.constant 0 : index
    %c0_145 = arith.constant 0 : index
    %468 = memref.load %arg5[%c0_144, %c0_145] : memref<1x1xf32, #tpu.memory_space<smem>>
    memref.store %467, %arg5[%c0_144, %c0_145] : memref<1x1xf32, #tpu.memory_space<smem>>
    %cst_146 = arith.constant dense<0.000000e+00> : vector<4x16xf32>
    %469 = tpu.matmul %429, %30, %cst_146 {dimension_numbers = #tpu.dot_dimension_numbers<[1], [0], [0], [1], [0, 0, 1, 1], [], []>} : vector<4x16xf32>, vector<16x16xf32>, vector<4x16xf32> -> vector<4x16xf32>
    %470 = vector.broadcast %31 : vector<1x16xf32> to vector<4x16xf32>
    %471 = arith.addf %469, %470 : vector<4x16xf32>
    %cst_147 = arith.constant 0.000000e+00 : f32
    %472 = vector.broadcast %cst_147 : f32 to vector<4x16xf32>
    %473 = arith.maximumf %471, %472 : vector<4x16xf32>
    %cst_148 = arith.constant dense<0.000000e+00> : vector<4x16xf32>
    %474 = tpu.matmul %473, %32, %cst_148 {dimension_numbers = #tpu.dot_dimension_numbers<[1], [0], [0], [1], [0, 0, 1, 1], [], []>} : vector<4x16xf32>, vector<16x16xf32>, vector<4x16xf32> -> vector<4x16xf32>
    %475 = vector.broadcast %33 : vector<1x16xf32> to vector<4x16xf32>
    %476 = arith.addf %474, %475 : vector<4x16xf32>
    %cst_149 = arith.constant 0.000000e+00 : f32
    %477 = vector.broadcast %cst_149 : f32 to vector<4x16xf32>
    %478 = arith.maximumf %476, %477 : vector<4x16xf32>
    %cst_150 = arith.constant dense<0.000000e+00> : vector<4x16xf32>
    %479 = tpu.matmul %478, %34, %cst_150 {dimension_numbers = #tpu.dot_dimension_numbers<[1], [0], [0], [1], [0, 0, 1, 1], [], []>} : vector<4x16xf32>, vector<16x16xf32>, vector<4x16xf32> -> vector<4x16xf32>
    %480 = vector.broadcast %35 : vector<1x16xf32> to vector<4x16xf32>
    %481 = arith.addf %479, %480 : vector<4x16xf32>
    %cst_151 = arith.constant 0.000000e+00 : f32
    %482 = vector.broadcast %cst_151 : f32 to vector<4x16xf32>
    %483 = arith.maximumf %481, %482 : vector<4x16xf32>
    %cst_152 = arith.constant dense<0.000000e+00> : vector<4x1xf32>
    %484 = tpu.matmul %483, %36, %cst_152 {dimension_numbers = #tpu.dot_dimension_numbers<[1], [0], [0], [1], [0, 0, 1, 1], [], []>} : vector<4x16xf32>, vector<16x1xf32>, vector<4x1xf32> -> vector<4x1xf32>
    %485 = vector.broadcast %37 : vector<1x1xf32> to vector<4x1xf32>
    %486 = arith.addf %484, %485 : vector<4x1xf32>
    %c0_153 = arith.constant 0 : index
    %c0_154 = arith.constant 0 : index
    %487 = vector.load %arg4[%c0_153, %c0_154] : memref<4x1xf32, #tpu.memory_space<vmem>>, vector<4x1xf32>
    tpu.vector_store %arg4[%c0_153, %c0_154], %486 {strides = array<i32>} : memref<4x1xf32, #tpu.memory_space<vmem>>, vector<4x1xf32>,
    %cst_155 = arith.constant dense<0.000000e+00> : vector<4x192xf32>
    %488 = tpu.matmul %478, %38, %cst_155 {dimension_numbers = #tpu.dot_dimension_numbers<[1], [0], [0], [1], [0, 0, 1, 1], [], []>} : vector<4x16xf32>, vector<16x192xf32>, vector<4x192xf32> -> vector<4x192xf32>
    %489 = arith.addf %488, %42 : vector<4x192xf32>
    %490 = vector.extract_strided_slice %489 {offsets = [0, 0], sizes = [4, 144], strides = [1, 1]} : vector<4x192xf32> to vector<4x144xf32>
    %491 = arith.negf %490 : vector<4x144xf32>
    %492 = math.exp %491 : vector<4x144xf32>
    %cst_156 = arith.constant 1.000000e+00 : f32
    %493 = vector.broadcast %cst_156 : f32 to vector<4x144xf32>
    %494 = arith.addf %493, %492 : vector<4x144xf32>
    %495 = arith.divf %493, %494 : vector<4x144xf32>
    %496 = vector.extract_strided_slice %495 {offsets = [0, 0], sizes = [4, 48], strides = [1, 1]} : vector<4x144xf32> to vector<4x48xf32>
    %497 = vector.extract_strided_slice %495 {offsets = [0, 96], sizes = [4, 48], strides = [1, 1]} : vector<4x144xf32> to vector<4x48xf32>
    %498 = vector.extract_strided_slice %489 {offsets = [0, 144], sizes = [4, 48], strides = [1, 1]} : vector<4x192xf32> to vector<4x48xf32>
    %499 = math.tanh %498 : vector<4x48xf32>
    %500 = arith.mulf %496, %499 : vector<4x48xf32>
    %501 = math.tanh %500 : vector<4x48xf32>
    %502 = arith.mulf %497, %501 : vector<4x48xf32>
    %cst_157 = arith.constant dense<0.000000e+00> : vector<4x192xf32>
    %503 = tpu.matmul %502, %39, %cst_157 {dimension_numbers = #tpu.dot_dimension_numbers<[1], [0], [0], [1], [0, 0, 1, 1], [], []>} : vector<4x48xf32>, vector<48x192xf32>, vector<4x192xf32> -> vector<4x192xf32>
    %504 = arith.addf %503, %42 : vector<4x192xf32>
    %505 = vector.extract_strided_slice %504 {offsets = [0, 0], sizes = [4, 144], strides = [1, 1]} : vector<4x192xf32> to vector<4x144xf32>
    %506 = arith.negf %505 : vector<4x144xf32>
    %507 = math.exp %506 : vector<4x144xf32>
    %cst_158 = arith.constant 1.000000e+00 : f32
    %508 = vector.broadcast %cst_158 : f32 to vector<4x144xf32>
    %509 = arith.addf %508, %507 : vector<4x144xf32>
    %510 = arith.divf %508, %509 : vector<4x144xf32>
    %511 = vector.extract_strided_slice %510 {offsets = [0, 0], sizes = [4, 48], strides = [1, 1]} : vector<4x144xf32> to vector<4x48xf32>
    %512 = vector.extract_strided_slice %510 {offsets = [0, 48], sizes = [4, 48], strides = [1, 1]} : vector<4x144xf32> to vector<4x48xf32>
    %513 = vector.extract_strided_slice %510 {offsets = [0, 96], sizes = [4, 48], strides = [1, 1]} : vector<4x144xf32> to vector<4x48xf32>
    %514 = vector.extract_strided_slice %504 {offsets = [0, 144], sizes = [4, 48], strides = [1, 1]} : vector<4x192xf32> to vector<4x48xf32>
    %515 = math.tanh %514 : vector<4x48xf32>
    %516 = arith.mulf %512, %500 : vector<4x48xf32>
    %517 = arith.mulf %511, %515 : vector<4x48xf32>
    %518 = arith.addf %516, %517 : vector<4x48xf32>
    %519 = math.tanh %518 : vector<4x48xf32>
    %520 = arith.mulf %513, %519 : vector<4x48xf32>
    %cst_159 = arith.constant dense<0.000000e+00> : vector<4x192xf32>
    %521 = tpu.matmul %520, %39, %cst_159 {dimension_numbers = #tpu.dot_dimension_numbers<[1], [0], [0], [1], [0, 0, 1, 1], [], []>} : vector<4x48xf32>, vector<48x192xf32>, vector<4x192xf32> -> vector<4x192xf32>
    %522 = arith.addf %521, %42 : vector<4x192xf32>
    %523 = vector.extract_strided_slice %522 {offsets = [0, 0], sizes = [4, 144], strides = [1, 1]} : vector<4x192xf32> to vector<4x144xf32>
    %524 = arith.negf %523 : vector<4x144xf32>
    %525 = math.exp %524 : vector<4x144xf32>
    %cst_160 = arith.constant 1.000000e+00 : f32
    %526 = vector.broadcast %cst_160 : f32 to vector<4x144xf32>
    %527 = arith.addf %526, %525 : vector<4x144xf32>
    %528 = arith.divf %526, %527 : vector<4x144xf32>
    %529 = vector.extract_strided_slice %528 {offsets = [0, 0], sizes = [4, 48], strides = [1, 1]} : vector<4x144xf32> to vector<4x48xf32>
    %530 = vector.extract_strided_slice %528 {offsets = [0, 48], sizes = [4, 48], strides = [1, 1]} : vector<4x144xf32> to vector<4x48xf32>
    %531 = vector.extract_strided_slice %528 {offsets = [0, 96], sizes = [4, 48], strides = [1, 1]} : vector<4x144xf32> to vector<4x48xf32>
    %532 = vector.extract_strided_slice %522 {offsets = [0, 144], sizes = [4, 48], strides = [1, 1]} : vector<4x192xf32> to vector<4x48xf32>
    %533 = math.tanh %532 : vector<4x48xf32>
    %534 = arith.mulf %530, %518 : vector<4x48xf32>
    %535 = arith.mulf %529, %533 : vector<4x48xf32>
    %536 = arith.addf %534, %535 : vector<4x48xf32>
    %537 = math.tanh %536 : vector<4x48xf32>
    %538 = arith.mulf %531, %537 : vector<4x48xf32>
    %cst_161 = arith.constant dense<0.000000e+00> : vector<4x192xf32>
    %539 = tpu.matmul %538, %39, %cst_161 {dimension_numbers = #tpu.dot_dimension_numbers<[1], [0], [0], [1], [0, 0, 1, 1], [], []>} : vector<4x48xf32>, vector<48x192xf32>, vector<4x192xf32> -> vector<4x192xf32>
    %540 = arith.addf %539, %42 : vector<4x192xf32>
    %541 = vector.extract_strided_slice %540 {offsets = [0, 0], sizes = [4, 144], strides = [1, 1]} : vector<4x192xf32> to vector<4x144xf32>
    %542 = arith.negf %541 : vector<4x144xf32>
    %543 = math.exp %542 : vector<4x144xf32>
    %cst_162 = arith.constant 1.000000e+00 : f32
    %544 = vector.broadcast %cst_162 : f32 to vector<4x144xf32>
    %545 = arith.addf %544, %543 : vector<4x144xf32>
    %546 = arith.divf %544, %545 : vector<4x144xf32>
    %547 = vector.extract_strided_slice %546 {offsets = [0, 0], sizes = [4, 48], strides = [1, 1]} : vector<4x144xf32> to vector<4x48xf32>
    %548 = vector.extract_strided_slice %546 {offsets = [0, 48], sizes = [4, 48], strides = [1, 1]} : vector<4x144xf32> to vector<4x48xf32>
    %549 = vector.extract_strided_slice %546 {offsets = [0, 96], sizes = [4, 48], strides = [1, 1]} : vector<4x144xf32> to vector<4x48xf32>
    %550 = vector.extract_strided_slice %540 {offsets = [0, 144], sizes = [4, 48], strides = [1, 1]} : vector<4x192xf32> to vector<4x48xf32>
    %551 = math.tanh %550 : vector<4x48xf32>
    %552 = arith.mulf %548, %536 : vector<4x48xf32>
    %553 = arith.mulf %547, %551 : vector<4x48xf32>
    %554 = arith.addf %552, %553 : vector<4x48xf32>
    %555 = math.tanh %554 : vector<4x48xf32>
    %556 = arith.mulf %549, %555 : vector<4x48xf32>
    %cst_163 = arith.constant dense<0.000000e+00> : vector<4x192xf32>
    %557 = tpu.matmul %556, %39, %cst_163 {dimension_numbers = #tpu.dot_dimension_numbers<[1], [0], [0], [1], [0, 0, 1, 1], [], []>} : vector<4x48xf32>, vector<48x192xf32>, vector<4x192xf32> -> vector<4x192xf32>
    %558 = arith.addf %557, %42 : vector<4x192xf32>
    %559 = vector.extract_strided_slice %558 {offsets = [0, 0], sizes = [4, 144], strides = [1, 1]} : vector<4x192xf32> to vector<4x144xf32>
    %560 = arith.negf %559 : vector<4x144xf32>
    %561 = math.exp %560 : vector<4x144xf32>
    %cst_164 = arith.constant 1.000000e+00 : f32
    %562 = vector.broadcast %cst_164 : f32 to vector<4x144xf32>
    %563 = arith.addf %562, %561 : vector<4x144xf32>
    %564 = arith.divf %562, %563 : vector<4x144xf32>
    %565 = vector.extract_strided_slice %564 {offsets = [0, 0], sizes = [4, 48], strides = [1, 1]} : vector<4x144xf32> to vector<4x48xf32>
    %566 = vector.extract_strided_slice %564 {offsets = [0, 48], sizes = [4, 48], strides = [1, 1]} : vector<4x144xf32> to vector<4x48xf32>
    %567 = vector.extract_strided_slice %564 {offsets = [0, 96], sizes = [4, 48], strides = [1, 1]} : vector<4x144xf32> to vector<4x48xf32>
    %568 = vector.extract_strided_slice %558 {offsets = [0, 144], sizes = [4, 48], strides = [1, 1]} : vector<4x192xf32> to vector<4x48xf32>
    %569 = math.tanh %568 : vector<4x48xf32>
    %570 = arith.mulf %566, %554 : vector<4x48xf32>
    %571 = arith.mulf %565, %569 : vector<4x48xf32>
    %572 = arith.addf %570, %571 : vector<4x48xf32>
    %573 = math.tanh %572 : vector<4x48xf32>
    %574 = arith.mulf %567, %573 : vector<4x48xf32>
    %cst_165 = arith.constant dense<0.000000e+00> : vector<4x192xf32>
    %575 = tpu.matmul %574, %39, %cst_165 {dimension_numbers = #tpu.dot_dimension_numbers<[1], [0], [0], [1], [0, 0, 1, 1], [], []>} : vector<4x48xf32>, vector<48x192xf32>, vector<4x192xf32> -> vector<4x192xf32>
    %576 = arith.addf %575, %42 : vector<4x192xf32>
    %577 = vector.extract_strided_slice %576 {offsets = [0, 0], sizes = [4, 144], strides = [1, 1]} : vector<4x192xf32> to vector<4x144xf32>
    %578 = arith.negf %577 : vector<4x144xf32>
    %579 = math.exp %578 : vector<4x144xf32>
    %cst_166 = arith.constant 1.000000e+00 : f32
    %580 = vector.broadcast %cst_166 : f32 to vector<4x144xf32>
    %581 = arith.addf %580, %579 : vector<4x144xf32>
    %582 = arith.divf %580, %581 : vector<4x144xf32>
    %583 = vector.extract_strided_slice %582 {offsets = [0, 0], sizes = [4, 48], strides = [1, 1]} : vector<4x144xf32> to vector<4x48xf32>
    %584 = vector.extract_strided_slice %582 {offsets = [0, 48], sizes = [4, 48], strides = [1, 1]} : vector<4x144xf32> to vector<4x48xf32>
    %585 = vector.extract_strided_slice %582 {offsets = [0, 96], sizes = [4, 48], strides = [1, 1]} : vector<4x144xf32> to vector<4x48xf32>
    %586 = vector.extract_strided_slice %576 {offsets = [0, 144], sizes = [4, 48], strides = [1, 1]} : vector<4x192xf32> to vector<4x48xf32>
    %587 = math.tanh %586 : vector<4x48xf32>
    %588 = arith.mulf %584, %572 : vector<4x48xf32>
    %589 = arith.mulf %583, %587 : vector<4x48xf32>
    %590 = arith.addf %588, %589 : vector<4x48xf32>
    %591 = math.tanh %590 : vector<4x48xf32>
    %592 = arith.mulf %585, %591 : vector<4x48xf32>
    %593 = tpu.concatenate %502, %520, %538, %556, %574, %592 in 0 : vector<4x48xf32>, vector<4x48xf32>, vector<4x48xf32>, vector<4x48xf32>, vector<4x48xf32>, vector<4x48xf32> -> vector<24x48xf32>
    %cst_167 = arith.constant dense<0.000000e+00> : vector<24x16xf32>
    %594 = tpu.matmul %593, %43, %cst_167 {dimension_numbers = #tpu.dot_dimension_numbers<[1], [0], [0], [1], [0, 0, 1, 1], [], []>} : vector<24x48xf32>, vector<48x16xf32>, vector<24x16xf32> -> vector<24x16xf32>
    %595 = vector.broadcast %44 : vector<1x16xf32> to vector<24x16xf32>
    %596 = arith.addf %594, %595 : vector<24x16xf32>
    %c0_168 = arith.constant 0 : index
    %c0_169 = arith.constant 0 : index
    %597 = vector.load %arg3[%c0_168, %c0_169] : memref<24x16xf32, #tpu.memory_space<vmem>>, vector<24x16xf32>
    tpu.vector_store %arg3[%c0_168, %c0_169], %596 {strides = array<i32>} : memref<24x16xf32, #tpu.memory_space<vmem>>, vector<24x16xf32>,
    return
  }
}

</mosaic_0001>

<llo_original>
// kernel: tpu_custom_call.1
$region0: #{tpu_custom_call.1}
  #allocation0 [shape = 'u32[]', space=smem, size = 0x4, offset = 0x4, fixed_abs, tag = 'smem constant byte address 0x4 - core index']
  #allocation1 [shape = 'u32[144,128]{1,0:T(1,128)}', space=vmem, size = 0x12000, scoped, tag = 'internal scratch']
  %s0 = inlined_call_operand.vmem [shape: f32[6,4,16], index: 0, kind: input, shape index: {}]
  %s1 = inlined_call_operand.vmem [shape: f32[576,192], index: 1, kind: input, shape index: {}]
  %s2 = inlined_call_operand.vmem [shape: f32[4,16], index: 2, kind: input, shape index: {}]
  %s3 = inlined_call_operand.vmem [shape: f32[24,16], index: 3, kind: output, shape index: {0}]
  %s4 = inlined_call_operand.vmem [shape: f32[4,1], index: 4, kind: output, shape index: {1}]
  %s5 = inlined_call_operand.hbm [shape: f32[1,1], index: 5, kind: output, shape index: {2}]
  %6 = xla_tuple %s3, %s4, %s5
  %s7 = sld [smem:[#allocation0]]
  $region38: #{tpu_custom_call.1} parent=0
    _
  %s9 = ssub.s32 1, %s7
  %s10 = scalar_select 0, %s9, %s7
  $region1: #{tpu_custom_call.1} parent=0
    #allocation2 [shape = 'u8[512]{0}', space=smem, size = 0x200, scoped, tag = 'output window, operand 2, single buffered']
    #allocation3 [shape = 's32[1]{0}', space=sflag, size = 0x4, scoped, tag = 'scoped memory for tpu_custom_call.1']
    %11 = vsyncpa [#allocation3], 0
    // Predicated region
    $region2: #{tpu_custom_call.1} parent=1 // pred_check
      _
    $region3: #{tpu_custom_call.1} parent=1 // pred_check_branch
      %13 = sbr.rel (0) target = $region5
    $region4: #{tpu_custom_call.1} parent=1 // pred_region
      _
    $region5: #{tpu_custom_call.1} parent=1 // pred_fallthru
      _
    // Predicated region
    $region6: #{tpu_custom_call.1} parent=1 // pred_check
      _
    $region7: #{tpu_custom_call.1} parent=1 // pred_check_branch
      %15 = sbr.rel (0) target = $region9
    $region8: #{tpu_custom_call.1} parent=1 // pred_region
      _
    $region9: #{tpu_custom_call.1} parent=1 // pred_fallthru
      _
    // Predicated region
    $region10: #{tpu_custom_call.1} parent=1 // pred_check
      _
    $region11: #{tpu_custom_call.1} parent=1 // pred_check_branch
      %17 = sbr.rel (0) target = $region13
    $region12: #{tpu_custom_call.1} parent=1 // pred_region
      _
    $region13: #{tpu_custom_call.1} parent=1 // pred_fallthru
      _
    %v18 = vld [vmem:[%s1] sm:$0xff]
    %v19 = vld [vmem:[%s1 + $0x10] sm:$0xff]
    %v20 = vld [vmem:[%s1 + $0x20] sm:$0xff]
    %v21 = vld [vmem:[%s1 + $0x30] sm:$0xff]
    %v22 = vld [vmem:[%s1 + $0x40] sm:$0xff]
    %v23 = vld [vmem:[%s1 + $0x50] ss:$0 sm:$0xff]
    %v24 = vld [vmem:[%s1 + $0x60] sm:$0xff]
    %v25 = vld [vmem:[%s1 + $0x70] sm:$0xff]
    %v26 = vld [vmem:[%s1 + $0x80] sm:$0xff]
    %v27 = vld [vmem:[%s1 + $0x90] sm:$0xff]
    %v28 = vld [vmem:[%s1 + $0xa0] sm:$0xff]
    %v29 = vld [vmem:[%s1 + $0xb0] sm:$0xff]
    %v30 = vld [vmem:[%s1 + $0xc0] ss:$0 sm:$0xff]
    %v31 = vld [vmem:[%s1 + $0xd0] sm:$0xff]
    %v32 = vld [vmem:[%s1 + $0xe0] sm:$0xff]
    %v33 = vld [vmem:[%s1 + $0xf0] ss:$0 sm:$0xff]
    %v34 = vld [vmem:[%s1 + $0x100] sm:$0xff]
    %v35 = vld [vmem:[%s1 + $0x110] sm:$0xff]
    %v36 = vld [vmem:[%s1 + $0x120] sm:$0xff]
    %v37 = vld [vmem:[%s1 + $0x130] sm:$0xff]
    %v38 = vld [vmem:[%s1 + $0x140] sm:$0xff]
    %v39 = vld [vmem:[%s1 + $0x150] sm:$0xff]
    %v40 = vld [vmem:[%s1 + $0x160] ss:$0 sm:$0xff]
    %v41 = vld [vmem:[%s1 + $0x170] sm:$0xff]
    %v42 = vld [vmem:[%s1 + $0x180] sm:$0xff]
    %v43 = vld [vmem:[%s1 + $0x190] ss:$0 sm:$0xff]
    %v44 = vld [vmem:[%s1 + $0x1a0] sm:$0xff]
    %v45 = vld [vmem:[%s1 + $0x1b0] sm:$0xff]
    %v46 = vld [vmem:[%s1 + $0x1c0] sm:$0xff]
    %v47 = vld [vmem:[%s1 + $0x1d0] sm:$0xff]
    %v48 = vld [vmem:[%s1 + $0x1e0] sm:$0xff]
    %v49 = vld [vmem:[%s1 + $0x1f0] sm:$0xff]
    %v50 = vld [vmem:[%s1 + $0x200] sm:$0xff]
    %v51 = vld [vmem:[%s1 + $0x210] ss:$0 sm:$0xff]
    %v52 = vld [vmem:[%s1 + $0x220] sm:$0xff]
    %v53 = vld [vmem:[%s1 + $0x230] sm:$0xff]
    %v54 = vld [vmem:[%s1 + $0x240] sm:$0xff]
    %v55 = vld [vmem:[%s1 + $0x250] sm:$0xff]
    %v56 = vld [vmem:[%s1 + $0x260] ss:$0 sm:$0xff]
    %v57 = vld [vmem:[%s1 + $0x270] sm:$0xff]
    %v58 = vld [vmem:[%s1 + $0x280] sm:$0xff]
    %v59 = vld [vmem:[%s1 + $0x290] sm:$0xff]
    %v60 = vld [vmem:[%s1 + $0x2a0] sm:$0xff]
    %v61 = vld [vmem:[%s1 + $0x2b0] ss:$0 sm:$0xff]
    %v62 = vld [vmem:[%s1 + $0x2c0] sm:$0xff]
    %v63 = vld [vmem:[%s1 + $0x2d0] sm:$0xff]
    %v64 = vld [vmem:[%s1 + $0x2e0] ss:$0 sm:$0xff]
    %v65 = vld [vmem:[%s1 + $0x2f0] sm:$0xff]
    %v66 = vld [vmem:[%s1 + $0x300] sm:$0xff]
    %v67 = vld [vmem:[%s1 + $0x310] ss:$0 sm:$0xff]
    %v68 = vld [vmem:[%s1 + $0x320] sm:$0xff]
    %v69 = vld [vmem:[%s1 + $0x330] sm:$0xff]
    %v70 = vld [vmem:[%s1 + $0x340] ss:$0 sm:$0xff]
    %v71 = vld [vmem:[%s1 + $0x350] sm:$0xff]
    %v72 = vld [vmem:[%s1 + $0x360] sm:$0xff]
    %v73 = vld [vmem:[%s1 + $0x370] ss:$0 sm:$0xff]
    %v74 = vld [vmem:[%s1 + $0x380] sm:$0xff]
    %v75 = vld [vmem:[%s1 + $0x388] sm:$0xff]
    %v76 = vld [vmem:[%s1 + $0x390] sm:$0xff]
    %v77 = vld [vmem:[%s1 + $0x398] sm:$0xff]
    %v78 = vld [vmem:[%s1 + $0x3a0] sm:$0xff]
    %v79 = vld [vmem:[%s1 + $0x3a8] sm:$0xff]
    %v80 = vld [vmem:[%s1 + $0x3b0] sm:$0xff]
    %v81 = vld [vmem:[%s1 + $0x3b8] sm:$0xff]
    %v82 = vld [vmem:[%s1 + $0x3c0] sm:$0xff]
    %v83 = vld [vmem:[%s1 + $0x3c8] sm:$0xff]
    %v84 = vld [vmem:[%s1 + $0x3d0] sm:$0xff]
    %v85 = vld [vmem:[%s1 + $0x3d8] sm:$0xff]
    %v86 = vld [vmem:[%s1 + $0x3e0] sm:$0xff]
    %v87 = vld [vmem:[%s1 + $0x3e8] sm:$0xff]
    %v88 = vld [vmem:[%s1 + $0x3f0] sm:$0xff]
    %v89 = vld [vmem:[%s1 + $0x3f8] sm:$0xff]
    %s90 = scalar_lea.vmem %s1, 1024
    %v91 = vld [vmem:[%s90] ss:$8 sm:$0x3]
    %v93 = vlaneseq
    %v94 = vshrl.u32 %v93, 7
    %v95 = vsub.s32 0, %v94
    %v96 = vrot.slane %v91, %v95
    %v97 = vlaneseq
    %v98 = vshrl.u32 %v97, 7
    %v99 = vsub.s32 1, %v98
    %v100 = vrot.slane %v91, %v99
    %v103 = vld [vmem:[%s1 + $0x410] sm:$0xff]
    %v104 = vld [vmem:[%s1 + $0x420] sm:$0xff]
    %v105 = vld [vmem:[%s1 + $0x430] sm:$0xff]
    %v106 = vld [vmem:[%s1 + $0x440] sm:$0xff]
    %v107 = vld [vmem:[%s1 + $0x450] sm:$0xff]
    %v108 = vld [vmem:[%s1 + $0x460] sm:$0xff]
    %v109 = vld [vmem:[%s1 + $0x470] ss:$0 sm:$0xff]
    %v110 = vld [vmem:[%s0] sm:$0xf]
    %vm111 = vcmask 130048
    %v112 = vsel %vm111, %v110, 0.0
    %vm113 = vcmask 326656
    %v115 = vsel %vm113, %v112, 0
    %117 = vmatprep.subr.mxu0 0.0
    %118 = vmatpush1.msra.mxu0 %v18
    %119 = vmatprep.subr.mxu0 0.0
    %120 = vmatpush1.msra.mxu0 %v19
    %121 = vmatprep.subr.mxu0 0.0
    %122 = vmatpush1.msra.mxu0 %v20
    %123 = vmatprep.subr.mxu0 0.0
    %124 = vmatpush1.msra.mxu0 %v21
    %125 = vmatprep.subr.mxu0 0.0
    %126 = vmatpush1.msra.mxu0 %v22
    %127 = vmatprep.subr.mxu0 0.0
    %128 = vmatpush1.msra.mxu0 0.0
    %129 = vmatprep.subr.mxu0 0.0
    %130 = vmatpush1.msra.mxu0 0.0
    %131 = vmatprep.subr.mxu0 0.0
    %132 = vmatpush1.msra.mxu0 0.0
    %133 = vmatprep.subr.mxu0 0.0
    %134 = vmatpush1.msra.mxu0 0.0
    %135 = vmatprep.subr.mxu0 0.0
    %136 = vmatpush1.msra.mxu0 0.0
    %137 = vmatprep.subr.mxu0 0.0
    %138 = vmatpush1.msra.mxu0 0.0
    %139 = vmatprep.subr.mxu0 0.0
    %140 = vmatpush1.msra.mxu0 0.0
    %141 = vmatprep.subr.mxu0 0.0
    %142 = vmatpush1.msra.mxu0 0.0
    %143 = vmatprep.subr.mxu0 0.0
    %144 = vmatpush1.msra.mxu0 0.0
    %145 = vmatprep.subr.mxu0 0.0
    %146 = vmatpush1.msra.mxu0 0.0
    %147 = vmatprep.subr.mxu0 0.0
    %148 = vmatpush1.msra.mxu0 0.0
    %149 = vmatprep.subr.mxu0 0.0
    %150 = vmatpush1.msra.mxu0 0.0
    %151 = vmatprep.subr.mxu0 0.0
    %152 = vmatpush1.msra.mxu0 0.0
    %153 = vmatprep.subr.mxu0 0.0
    %154 = vmatpush1.msra.mxu0 0.0
    %155 = vmatprep.subr.mxu0 0.0
    %156 = vmatpush1.msra.mxu0 0.0
    %157 = vmatprep.subr.mxu0 0.0
    %158 = vmatpush1.msra.mxu0 0.0
    %159 = vmatprep.subr.mxu0 0.0
    %160 = vmatpush1.msra.mxu0 0.0
    %161 = vmatprep.subr.mxu0 0.0
    %162 = vmatpush1.msra.mxu0 0.0
    %163 = vmatprep.subr.mxu0 0.0
    %164 = vmatpush1.msra.mxu0 0.0
    %165 = vmatprep.subr.mxu0 0.0
    %166 = vmatpush1.msra.mxu0 0.0
    %167 = vmatprep.subr.mxu0 0.0
    %168 = vmatpush1.msra.mxu0 0.0
    %169 = vmatprep.subr.mxu0 0.0
    %170 = vmatpush1.msra.mxu0 0.0
    %171 = vmatprep.subr.mxu0 0.0
    %172 = vmatpush1.msra.mxu0 0.0
    %173 = vmatprep.subr.mxu0 0.0
    %174 = vmatpush1.msra.mxu0 0.0
    %175 = vmatprep.subr.mxu0 0.0
    %176 = vmatpush1.msra.mxu0 0.0
    %177 = vmatprep.subr.mxu0 0.0
    %178 = vmatpush1.msra.mxu0 0.0
    %179 = vmatprep.subr.mxu0 0.0
    %180 = vmatpush1.msra.mxu0 0.0
    %181 = vmatprep.mubr.f32.mxu0 0.0
    %182 = vmatmul.mubr.f32.gmra.mrb[0].mxu0 %v115
    %v183 = vpop.f32.mrb[0].mxu0
    %v184 = vadd.f32 %v23, %v183
    %v185 = vpop.f32.mrb[0].mxu0
    %186 = vdwg.mxu0
    %v187 = vxor.u32 %v184, 2147483648
    %v188 = vmul.f32 %v187, 1.442695
    %v189 = vpow.pop %v188
    %v190 = vadd.f32 %v189, 1.0
    %v191 = vrcp.pop %v190
    %v192 = vmul.f32 1.0, %v191
    %v193 = vtanh.pop %v184
    %v194 = vmul.f32 %v192, 0.0
    %196 = vrot.lane.b32.xlu0 %v193, 56
    %v197 = vpop.permute.xlu0 %196
    %v199 = vmul.f32 %v192, %v197
    %201 = vrot.lane.b32.xlu0 %v199, 24
    %v202 = vpop.permute.xlu0 %201
    %v204 = vadd.f32 %v194, %v202
    %v205 = vtanh.pop %v204
    %207 = vrot.lane.b32.xlu0 %v205, 24
    %v208 = vpop.permute.xlu0 %207
    %v210 = vmul.f32 %v192, %v208
    %vm211 = vcmask 195584
    %v212 = vsel %vm211, 0.0, %v204
    %vm213 = vcmask 392192
    %v215 = vsel %vm213, %v212, 0
    %217 = vmatprep.subr.mxu0 0.0
    %218 = vmatpush1.msra.mxu0 %v24
    %219 = vmatprep.subr.mxu0 0.0
    %220 = vmatpush1.msra.mxu0 %v25
    %221 = vmatprep.subr.mxu0 0.0
    %222 = vmatpush1.msra.mxu0 %v26
    %223 = vmatprep.subr.mxu0 0.0
    %224 = vmatpush1.msra.mxu0 %v27
    %225 = vmatprep.subr.mxu0 0.0
    %226 = vmatpush1.msra.mxu0 %v28
    %227 = vmatprep.subr.mxu0 0.0
    %228 = vmatpush1.msra.mxu0 %v29
    %229 = vmatprep.subr.mxu0 0.0
    %230 = vmatpush1.msra.mxu0 0.0
    %231 = vmatprep.subr.mxu0 0.0
    %232 = vmatpush1.msra.mxu0 0.0
    %233 = vmatprep.subr.mxu0 0.0
    %234 = vmatpush1.msra.mxu0 0.0
    %235 = vmatprep.subr.mxu0 0.0
    %236 = vmatpush1.msra.mxu0 0.0
    %237 = vmatprep.subr.mxu0 0.0
    %238 = vmatpush1.msra.mxu0 0.0
    %239 = vmatprep.subr.mxu0 0.0
    %240 = vmatpush1.msra.mxu0 0.0
    %241 = vmatprep.subr.mxu0 0.0
    %242 = vmatpush1.msra.mxu0 0.0
    %243 = vmatprep.subr.mxu0 0.0
    %244 = vmatpush1.msra.mxu0 0.0
    %245 = vmatprep.subr.mxu0 0.0
    %246 = vmatpush1.msra.mxu0 0.0
    %247 = vmatprep.subr.mxu0 0.0
    %248 = vmatpush1.msra.mxu0 0.0
    %249 = vmatprep.subr.mxu0 0.0
    %250 = vmatpush1.msra.mxu0 0.0
    %251 = vmatprep.subr.mxu0 0.0
    %252 = vmatpush1.msra.mxu0 0.0
    %253 = vmatprep.subr.mxu0 0.0
    %254 = vmatpush1.msra.mxu0 0.0
    %255 = vmatprep.subr.mxu0 0.0
    %256 = vmatpush1.msra.mxu0 0.0
    %257 = vmatprep.subr.mxu0 0.0
    %258 = vmatpush1.msra.mxu0 0.0
    %259 = vmatprep.subr.mxu0 0.0
    %260 = vmatpush1.msra.mxu0 0.0
    %261 = vmatprep.subr.mxu0 0.0
    %262 = vmatpush1.msra.mxu0 0.0
    %263 = vmatprep.subr.mxu0 0.0
    %264 = vmatpush1.msra.mxu0 0.0
    %265 = vmatprep.subr.mxu0 0.0
    %266 = vmatpush1.msra.mxu0 0.0
    %267 = vmatprep.subr.mxu0 0.0
    %268 = vmatpush1.msra.mxu0 0.0
    %269 = vmatprep.subr.mxu0 0.0
    %270 = vmatpush1.msra.mxu0 0.0
    %271 = vmatprep.subr.mxu0 0.0
    %272 = vmatpush1.msra.mxu0 0.0
    %273 = vmatprep.subr.mxu0 0.0
    %274 = vmatpush1.msra.mxu0 0.0
    %275 = vmatprep.subr.mxu0 0.0
    %276 = vmatpush1.msra.mxu0 0.0
    %277 = vmatprep.subr.mxu0 0.0
    %278 = vmatpush1.msra.mxu0 0.0
    %279 = vmatprep.subr.mxu0 0.0
    %280 = vmatpush1.msra.mxu0 0.0
    %281 = vmatprep.mubr.f32.mxu0 0.0
    %282 = vmatmul.mubr.f32.gmra.mrb[0].mxu0 %v215
    %v283 = vpop.f32.mrb[0].mxu0
    %v284 = vadd.f32 %v30, %v283
    %v285 = vpop.f32.mrb[0].mxu0
    %286 = vdwg.mxu0
    %v287 = vmax.f32 %v284, 0.0
    %v289 = vsel %vm111, %v287, 0
    %291 = vmatprep.subr.mxu0 0.0
    %292 = vmatpush1.msra.mxu0 %v31
    %293 = vmatprep.subr.mxu0 0.0
    %294 = vmatpush1.msra.mxu0 %v32
    %295 = vmatprep.subr.mxu0 0.0
    %296 = vmatpush1.msra.mxu0 0.0
    %297 = vmatprep.subr.mxu0 0.0
    %298 = vmatpush1.msra.mxu0 0.0
    %299 = vmatprep.subr.mxu0 0.0
    %300 = vmatpush1.msra.mxu0 0.0
    %301 = vmatprep.subr.mxu0 0.0
    %302 = vmatpush1.msra.mxu0 0.0
    %303 = vmatprep.subr.mxu0 0.0
    %304 = vmatpush1.msra.mxu0 0.0
    %305 = vmatprep.subr.mxu0 0.0
    %306 = vmatpush1.msra.mxu0 0.0
    %307 = vmatprep.subr.mxu0 0.0
    %308 = vmatpush1.msra.mxu0 0.0
    %309 = vmatprep.subr.mxu0 0.0
    %310 = vmatpush1.msra.mxu0 0.0
    %311 = vmatprep.subr.mxu0 0.0
    %312 = vmatpush1.msra.mxu0 0.0
    %313 = vmatprep.subr.mxu0 0.0
    %314 = vmatpush1.msra.mxu0 0.0
    %315 = vmatprep.subr.mxu0 0.0
    %316 = vmatpush1.msra.mxu0 0.0
    %317 = vmatprep.subr.mxu0 0.0
    %318 = vmatpush1.msra.mxu0 0.0
    %319 = vmatprep.subr.mxu0 0.0
    %320 = vmatpush1.msra.mxu0 0.0
    %321 = vmatprep.subr.mxu0 0.0
    %322 = vmatpush1.msra.mxu0 0.0
    %323 = vmatprep.subr.mxu0 0.0
    %324 = vmatpush1.msra.mxu0 0.0
    %325 = vmatprep.subr.mxu0 0.0
    %326 = vmatpush1.msra.mxu0 0.0
    %327 = vmatprep.subr.mxu0 0.0
    %328 = vmatpush1.msra.mxu0 0.0
    %329 = vmatprep.subr.mxu0 0.0
    %330 = vmatpush1.msra.mxu0 0.0
    %331 = vmatprep.subr.mxu0 0.0
    %332 = vmatpush1.msra.mxu0 0.0
    %333 = vmatprep.subr.mxu0 0.0
    %334 = vmatpush1.msra.mxu0 0.0
    %335 = vmatprep.subr.mxu0 0.0
    %336 = vmatpush1.msra.mxu0 0.0
    %337 = vmatprep.subr.mxu0 0.0
    %338 = vmatpush1.msra.mxu0 0.0
    %339 = vmatprep.subr.mxu0 0.0
    %340 = vmatpush1.msra.mxu0 0.0
    %341 = vmatprep.subr.mxu0 0.0
    %342 = vmatpush1.msra.mxu0 0.0
    %343 = vmatprep.subr.mxu0 0.0
    %344 = vmatpush1.msra.mxu0 0.0
    %345 = vmatprep.subr.mxu0 0.0
    %346 = vmatpush1.msra.mxu0 0.0
    %347 = vmatprep.subr.mxu0 0.0
    %348 = vmatpush1.msra.mxu0 0.0
    %349 = vmatprep.subr.mxu0 0.0
    %350 = vmatpush1.msra.mxu0 0.0
    %351 = vmatprep.subr.mxu0 0.0
    %352 = vmatpush1.msra.mxu0 0.0
    %353 = vmatprep.subr.mxu0 0.0
    %354 = vmatpush1.msra.mxu0 0.0
    %355 = vmatprep.mubr.f32.mxu0 0.0
    %356 = vmatmul.mubr.f32.gmra.mrb[0].mxu0 %v289
    %v357 = vpop.f32.mrb[0].mxu0
    %v358 = vadd.f32 %v33, %v357
    %v359 = vpop.f32.mrb[0].mxu0
    %360 = vdwg.mxu0
    %vm361 = vcmask 388096
    %v362 = vsel %vm361, %v358, -inf
    %363 = vmax.xlane.f32.xlu0 %v362
    %v364 = vpop.xlane.xlu0 %363
    %v365 = vsub.f32 %v358, %v364
    %v366 = vmul.f32 %v365, 1.442695
    %v367 = vpow.pop %v366
    %v368 = vsel %vm361, %v367, 0.0
    %369 = vadd.xlane.f32.xlu0 %v368
    %v370 = vpop.xlane.xlu0 %369
    %v371 = vrcp.pop %v370
    %v372 = vmul.f32 %v367, %v371
    %v373 = vmul.f32 %v372, %v212
    %v375 = vsel %vm213, %v373, 0
    %377 = vmatprep.subr.mxu0 0.0
    %378 = vmatpush1.msra.mxu0 %v34
    %379 = vmatprep.subr.mxu0 0.0
    %380 = vmatpush1.msra.mxu0 %v35
    %381 = vmatprep.subr.mxu0 0.0
    %382 = vmatpush1.msra.mxu0 %v36
    %383 = vmatprep.subr.mxu0 0.0
    %384 = vmatpush1.msra.mxu0 %v37
    %385 = vmatprep.subr.mxu0 0.0
    %386 = vmatpush1.msra.mxu0 %v38
    %387 = vmatprep.subr.mxu0 0.0
    %388 = vmatpush1.msra.mxu0 %v39
    %389 = vmatprep.subr.mxu0 0.0
    %390 = vmatpush1.msra.mxu0 0.0
    %391 = vmatprep.subr.mxu0 0.0
    %392 = vmatpush1.msra.mxu0 0.0
    %393 = vmatprep.subr.mxu0 0.0
    %394 = vmatpush1.msra.mxu0 0.0
    %395 = vmatprep.subr.mxu0 0.0
    %396 = vmatpush1.msra.mxu0 0.0
    %397 = vmatprep.subr.mxu0 0.0
    %398 = vmatpush1.msra.mxu0 0.0
    %399 = vmatprep.subr.mxu0 0.0
    %400 = vmatpush1.msra.mxu0 0.0
    %401 = vmatprep.subr.mxu0 0.0
    %402 = vmatpush1.msra.mxu0 0.0
    %403 = vmatprep.subr.mxu0 0.0
    %404 = vmatpush1.msra.mxu0 0.0
    %405 = vmatprep.subr.mxu0 0.0
    %406 = vmatpush1.msra.mxu0 0.0
    %407 = vmatprep.subr.mxu0 0.0
    %408 = vmatpush1.msra.mxu0 0.0
    %409 = vmatprep.subr.mxu0 0.0
    %410 = vmatpush1.msra.mxu0 0.0
    %411 = vmatprep.subr.mxu0 0.0
    %412 = vmatpush1.msra.mxu0 0.0
    %413 = vmatprep.subr.mxu0 0.0
    %414 = vmatpush1.msra.mxu0 0.0
    %415 = vmatprep.subr.mxu0 0.0
    %416 = vmatpush1.msra.mxu0 0.0
    %417 = vmatprep.subr.mxu0 0.0
    %418 = vmatpush1.msra.mxu0 0.0
    %419 = vmatprep.subr.mxu0 0.0
    %420 = vmatpush1.msra.mxu0 0.0
    %421 = vmatprep.subr.mxu0 0.0
    %422 = vmatpush1.msra.mxu0 0.0
    %423 = vmatprep.subr.mxu0 0.0
    %424 = vmatpush1.msra.mxu0 0.0
    %425 = vmatprep.subr.mxu0 0.0
    %426 = vmatpush1.msra.mxu0 0.0
    %427 = vmatprep.subr.mxu0 0.0
    %428 = vmatpush1.msra.mxu0 0.0
    %429 = vmatprep.subr.mxu0 0.0
    %430 = vmatpush1.msra.mxu0 0.0
    %431 = vmatprep.subr.mxu0 0.0
    %432 = vmatpush1.msra.mxu0 0.0
    %433 = vmatprep.subr.mxu0 0.0
    %434 = vmatpush1.msra.mxu0 0.0
    %435 = vmatprep.subr.mxu0 0.0
    %436 = vmatpush1.msra.mxu0 0.0
    %437 = vmatprep.subr.mxu0 0.0
    %438 = vmatpush1.msra.mxu0 0.0
    %439 = vmatprep.subr.mxu0 0.0
    %440 = vmatpush1.msra.mxu0 0.0
    %441 = vmatprep.mubr.f32.mxu0 0.0
    %442 = vmatmul.mubr.f32.gmra.mrb[0].mxu0 %v375
    %v443 = vpop.f32.mrb[0].mxu0
    %v444 = vadd.f32 %v40, %v443
    %v445 = vpop.f32.mrb[0].mxu0
    %446 = vdwg.mxu0
    %v447 = vmax.f32 %v444, 0.0
    %v449 = vsel %vm111, %v447, 0
    %451 = vmatprep.subr.mxu0 0.0
    %452 = vmatpush1.msra.mxu0 %v41
    %453 = vmatprep.subr.mxu0 0.0
    %454 = vmatpush1.msra.mxu0 %v42
    %455 = vmatprep.subr.mxu0 0.0
    %456 = vmatpush1.msra.mxu0 0.0
    %457 = vmatprep.subr.mxu0 0.0
    %458 = vmatpush1.msra.mxu0 0.0
    %459 = vmatprep.subr.mxu0 0.0
    %460 = vmatpush1.msra.mxu0 0.0
    %461 = vmatprep.subr.mxu0 0.0
    %462 = vmatpush1.msra.mxu0 0.0
    %463 = vmatprep.subr.mxu0 0.0
    %464 = vmatpush1.msra.mxu0 0.0
    %465 = vmatprep.subr.mxu0 0.0
    %466 = vmatpush1.msra.mxu0 0.0
    %467 = vmatprep.subr.mxu0 0.0
    %468 = vmatpush1.msra.mxu0 0.0
    %469 = vmatprep.subr.mxu0 0.0
    %470 = vmatpush1.msra.mxu0 0.0
    %471 = vmatprep.subr.mxu0 0.0
    %472 = vmatpush1.msra.mxu0 0.0
    %473 = vmatprep.subr.mxu0 0.0
    %474 = vmatpush1.msra.mxu0 0.0
    %475 = vmatprep.subr.mxu0 0.0
    %476 = vmatpush1.msra.mxu0 0.0
    %477 = vmatprep.subr.mxu0 0.0
    %478 = vmatpush1.msra.mxu0 0.0
    %479 = vmatprep.subr.mxu0 0.0
    %480 = vmatpush1.msra.mxu0 0.0
    %481 = vmatprep.subr.mxu0 0.0
    %482 = vmatpush1.msra.mxu0 0.0
    %483 = vmatprep.subr.mxu0 0.0
    %484 = vmatpush1.msra.mxu0 0.0
    %485 = vmatprep.subr.mxu0 0.0
    %486 = vmatpush1.msra.mxu0 0.0
    %487 = vmatprep.subr.mxu0 0.0
    %488 = vmatpush1.msra.mxu0 0.0
    %489 = vmatprep.subr.mxu0 0.0
    %490 = vmatpush1.msra.mxu0 0.0
    %491 = vmatprep.subr.mxu0 0.0
    %492 = vmatpush1.msra.mxu0 0.0
    %493 = vmatprep.subr.mxu0 0.0
    %494 = vmatpush1.msra.mxu0 0.0
    %495 = vmatprep.subr.mxu0 0.0
    %496 = vmatpush1.msra.mxu0 0.0
    %497 = vmatprep.subr.mxu0 0.0
    %498 = vmatpush1.msra.mxu0 0.0
    %499 = vmatprep.subr.mxu0 0.0
    %500 = vmatpush1.msra.mxu0 0.0
    %501 = vmatprep.subr.mxu0 0.0
    %502 = vmatpush1.msra.mxu0 0.0
    %503 = vmatprep.subr.mxu0 0.0
    %504 = vmatpush1.msra.mxu0 0.0
    %505 = vmatprep.subr.mxu0 0.0
    %506 = vmatpush1.msra.mxu0 0.0
    %507 = vmatprep.subr.mxu0 0.0
    %508 = vmatpush1.msra.mxu0 0.0
    %509 = vmatprep.subr.mxu0 0.0
    %510 = vmatpush1.msra.mxu0 0.0
    %511 = vmatprep.subr.mxu0 0.0
    %512 = vmatpush1.msra.mxu0 0.0
    %513 = vmatprep.subr.mxu0 0.0
    %514 = vmatpush1.msra.mxu0 0.0
    %515 = vmatprep.mubr.f32.mxu0 0.0
    %516 = vmatmul.mubr.f32.gmra.mrb[0].mxu0 %v449
    %v517 = vpop.f32.mrb[0].mxu0
    %v518 = vadd.f32 %v43, %v517
    %v519 = vpop.f32.mrb[0].mxu0
    %520 = vdwg.mxu0
    %v521 = vtanh.pop %v518
    %v522 = vsel %vm213, %v373, 0.0
    %vm523 = vcmask 457728
    %v525 = vsel %vm523, %v522, 0
    %527 = vmatprep.subr.mxu0 0.0
    %528 = vmatpush1.msra.mxu0 %v44
    %529 = vmatprep.subr.mxu0 0.0
    %530 = vmatpush1.msra.mxu0 %v45
    %531 = vmatprep.subr.mxu0 0.0
    %532 = vmatpush1.msra.mxu0 %v46
    %533 = vmatprep.subr.mxu0 0.0
    %534 = vmatpush1.msra.mxu0 %v47
    %535 = vmatprep.subr.mxu0 0.0
    %536 = vmatpush1.msra.mxu0 %v48
    %537 = vmatprep.subr.mxu0 0.0
    %538 = vmatpush1.msra.mxu0 %v49
    %539 = vmatprep.subr.mxu0 0.0
    %540 = vmatpush1.msra.mxu0 %v50
    %541 = vmatprep.subr.mxu0 0.0
    %542 = vmatpush1.msra.mxu0 0.0
    %543 = vmatprep.subr.mxu0 0.0
    %544 = vmatpush1.msra.mxu0 0.0
    %545 = vmatprep.subr.mxu0 0.0
    %546 = vmatpush1.msra.mxu0 0.0
    %547 = vmatprep.subr.mxu0 0.0
    %548 = vmatpush1.msra.mxu0 0.0
    %549 = vmatprep.subr.mxu0 0.0
    %550 = vmatpush1.msra.mxu0 0.0
    %551 = vmatprep.subr.mxu0 0.0
    %552 = vmatpush1.msra.mxu0 0.0
    %553 = vmatprep.subr.mxu0 0.0
    %554 = vmatpush1.msra.mxu0 0.0
    %555 = vmatprep.subr.mxu0 0.0
    %556 = vmatpush1.msra.mxu0 0.0
    %557 = vmatprep.subr.mxu0 0.0
    %558 = vmatpush1.msra.mxu0 0.0
    %559 = vmatprep.subr.mxu0 0.0
    %560 = vmatpush1.msra.mxu0 0.0
    %561 = vmatprep.subr.mxu0 0.0
    %562 = vmatpush1.msra.mxu0 0.0
    %563 = vmatprep.subr.mxu0 0.0
    %564 = vmatpush1.msra.mxu0 0.0
    %565 = vmatprep.subr.mxu0 0.0
    %566 = vmatpush1.msra.mxu0 0.0
    %567 = vmatprep.subr.mxu0 0.0
    %568 = vmatpush1.msra.mxu0 0.0
    %569 = vmatprep.subr.mxu0 0.0
    %570 = vmatpush1.msra.mxu0 0.0
    %571 = vmatprep.subr.mxu0 0.0
    %572 = vmatpush1.msra.mxu0 0.0
    %573 = vmatprep.subr.mxu0 0.0
    %574 = vmatpush1.msra.mxu0 0.0
    %575 = vmatprep.subr.mxu0 0.0
    %576 = vmatpush1.msra.mxu0 0.0
    %577 = vmatprep.subr.mxu0 0.0
    %578 = vmatpush1.msra.mxu0 0.0
    %579 = vmatprep.subr.mxu0 0.0
    %580 = vmatpush1.msra.mxu0 0.0
    %581 = vmatprep.subr.mxu0 0.0
    %582 = vmatpush1.msra.mxu0 0.0
    %583 = vmatprep.subr.mxu0 0.0
    %584 = vmatpush1.msra.mxu0 0.0
    %585 = vmatprep.subr.mxu0 0.0
    %586 = vmatpush1.msra.mxu0 0.0
    %587 = vmatprep.subr.mxu0 0.0
    %588 = vmatpush1.msra.mxu0 0.0
    %589 = vmatprep.subr.mxu0 0.0
    %590 = vmatpush1.msra.mxu0 0.0
    %591 = vmatprep.mubr.f32.mxu0 0.0
    %592 = vmatmul.mubr.f32.gmra.mrb[0].mxu0 %v525
    %v593 = vpop.f32.mrb[0].mxu0
    %v594 = vadd.f32 %v51, %v593
    %v595 = vpop.f32.mrb[0].mxu0
    %596 = vdwg.mxu0
    %v597 = vmax.f32 %v594, 0.0
    %vm598 = vcmask 261120
    %v600 = vsel %vm598, %v597, 0
    %602 = vmatprep.subr.mxu0 0.0
    %603 = vmatpush1.msra.mxu0 %v52
    %604 = vmatprep.subr.mxu0 0.0
    %605 = vmatpush1.msra.mxu0 %v53
    %606 = vmatprep.subr.mxu0 0.0
    %607 = vmatpush1.msra.mxu0 %v54
    %608 = vmatprep.subr.mxu0 0.0
    %609 = vmatpush1.msra.mxu0 %v55
    %610 = vmatprep.subr.mxu0 0.0
    %611 = vmatpush1.msra.mxu0 0.0
    %612 = vmatprep.subr.mxu0 0.0
    %613 = vmatpush1.msra.mxu0 0.0
    %614 = vmatprep.subr.mxu0 0.0
    %615 = vmatpush1.msra.mxu0 0.0
    %616 = vmatprep.subr.mxu0 0.0
    %617 = vmatpush1.msra.mxu0 0.0
    %618 = vmatprep.subr.mxu0 0.0
    %619 = vmatpush1.msra.mxu0 0.0
    %620 = vmatprep.subr.mxu0 0.0
    %621 = vmatpush1.msra.mxu0 0.0
    %622 = vmatprep.subr.mxu0 0.0
    %623 = vmatpush1.msra.mxu0 0.0
    %624 = vmatprep.subr.mxu0 0.0
    %625 = vmatpush1.msra.mxu0 0.0
    %626 = vmatprep.subr.mxu0 0.0
    %627 = vmatpush1.msra.mxu0 0.0
    %628 = vmatprep.subr.mxu0 0.0
    %629 = vmatpush1.msra.mxu0 0.0
    %630 = vmatprep.subr.mxu0 0.0
    %631 = vmatpush1.msra.mxu0 0.0
    %632 = vmatprep.subr.mxu0 0.0
    %633 = vmatpush1.msra.mxu0 0.0
    %634 = vmatprep.subr.mxu0 0.0
    %635 = vmatpush1.msra.mxu0 0.0
    %636 = vmatprep.subr.mxu0 0.0
    %637 = vmatpush1.msra.mxu0 0.0
    %638 = vmatprep.subr.mxu0 0.0
    %639 = vmatpush1.msra.mxu0 0.0
    %640 = vmatprep.subr.mxu0 0.0
    %641 = vmatpush1.msra.mxu0 0.0
    %642 = vmatprep.subr.mxu0 0.0
    %643 = vmatpush1.msra.mxu0 0.0
    %644 = vmatprep.subr.mxu0 0.0
    %645 = vmatpush1.msra.mxu0 0.0
    %646 = vmatprep.subr.mxu0 0.0
    %647 = vmatpush1.msra.mxu0 0.0
    %648 = vmatprep.subr.mxu0 0.0
    %649 = vmatpush1.msra.mxu0 0.0
    %650 = vmatprep.subr.mxu0 0.0
    %651 = vmatpush1.msra.mxu0 0.0
    %652 = vmatprep.subr.mxu0 0.0
    %653 = vmatpush1.msra.mxu0 0.0
    %654 = vmatprep.subr.mxu0 0.0
    %655 = vmatpush1.msra.mxu0 0.0
    %656 = vmatprep.subr.mxu0 0.0
    %657 = vmatpush1.msra.mxu0 0.0
    %658 = vmatprep.subr.mxu0 0.0
    %659 = vmatpush1.msra.mxu0 0.0
    %660 = vmatprep.subr.mxu0 0.0
    %661 = vmatpush1.msra.mxu0 0.0
    %662 = vmatprep.subr.mxu0 0.0
    %663 = vmatpush1.msra.mxu0 0.0
    %664 = vmatprep.subr.mxu0 0.0
    %665 = vmatpush1.msra.mxu0 0.0
    %666 = vmatprep.mubr.f32.mxu0 0.0
    %667 = vmatmul.mubr.f32.gmra.mrb[0].mxu0 %v600
    %v668 = vpop.f32.mrb[0].mxu0
    %v669 = vadd.f32 %v56, %v668
    %v670 = vpop.f32.mrb[0].mxu0
    %671 = vdwg.mxu0
    %v672 = vxor.u32 %v669, 2147483648
    %v673 = vmul.f32 %v672, 1.442695
    %v674 = vpow.pop %v673
    %v675 = vadd.f32 %v674, 1.0
    %v676 = vrcp.pop %v675
    %v677 = vmul.f32 1.0, %v676
    %v678 = vmul.f32 %v677, 0.0
    %680 = vrot.lane.b32.xlu0 %v521, 8
    %v681 = vpop.permute.xlu0 %680
    %v683 = vmul.f32 %v677, %v681
    %685 = vrot.lane.b32.xlu0 %v683, 120
    %v686 = vpop.permute.xlu0 %685
    %v688 = vadd.f32 %v678, %v686
    %s689 = scalar_lea.vmem %s0, 4
    %v690 = vld [vmem:[%s689] sm:$0xf]
    %692 = vrot.lane.b32.xlu0 %v210, 96
    %v693 = vpop.permute.xlu0 %692
    %v695 = vsel %vm111, %v690, %v693
    %v697 = vsel %vm113, %v695, 0
    %699 = vmatprep.subr.mxu0 0.0
    %700 = vmatpush1.msra.mxu0 %v18
    %701 = vmatprep.subr.mxu0 0.0
    %702 = vmatpush1.msra.mxu0 %v19
    %703 = vmatprep.subr.mxu0 0.0
    %704 = vmatpush1.msra.mxu0 %v20
    %705 = vmatprep.subr.mxu0 0.0
    %706 = vmatpush1.msra.mxu0 %v21
    %707 = vmatprep.subr.mxu0 0.0
    %708 = vmatpush1.msra.mxu0 %v22
    %709 = vmatprep.subr.mxu0 0.0
    %710 = vmatpush1.msra.mxu0 0.0
    %711 = vmatprep.subr.mxu0 0.0
    %712 = vmatpush1.msra.mxu0 0.0
    %713 = vmatprep.subr.mxu0 0.0
    %714 = vmatpush1.msra.mxu0 0.0
    %715 = vmatprep.subr.mxu0 0.0
    %716 = vmatpush1.msra.mxu0 0.0
    %717 = vmatprep.subr.mxu0 0.0
    %718 = vmatpush1.msra.mxu0 0.0
    %719 = vmatprep.subr.mxu0 0.0
    %720 = vmatpush1.msra.mxu0 0.0
    %721 = vmatprep.subr.mxu0 0.0
    %722 = vmatpush1.msra.mxu0 0.0
    %723 = vmatprep.subr.mxu0 0.0
    %724 = vmatpush1.msra.mxu0 0.0
    %725 = vmatprep.subr.mxu0 0.0
    %726 = vmatpush1.msra.mxu0 0.0
    %727 = vmatprep.subr.mxu0 0.0
    %728 = vmatpush1.msra.mxu0 0.0
    %729 = vmatprep.subr.mxu0 0.0
    %730 = vmatpush1.msra.mxu0 0.0
    %731 = vmatprep.subr.mxu0 0.0
    %732 = vmatpush1.msra.mxu0 0.0
    %733 = vmatprep.subr.mxu0 0.0
    %734 = vmatpush1.msra.mxu0 0.0
    %735 = vmatprep.subr.mxu0 0.0
    %736 = vmatpush1.msra.mxu0 0.0
    %737 = vmatprep.subr.mxu0 0.0
    %738 = vmatpush1.msra.mxu0 0.0
    %739 = vmatprep.subr.mxu0 0.0
    %740 = vmatpush1.msra.mxu0 0.0
    %741 = vmatprep.subr.mxu0 0.0
    %742 = vmatpush1.msra.mxu0 0.0
    %743 = vmatprep.subr.mxu0 0.0
    %744 = vmatpush1.msra.mxu0 0.0
    %745 = vmatprep.subr.mxu0 0.0
    %746 = vmatpush1.msra.mxu0 0.0
    %747 = vmatprep.subr.mxu0 0.0
    %748 = vmatpush1.msra.mxu0 0.0
    %749 = vmatprep.subr.mxu0 0.0
    %750 = vmatpush1.msra.mxu0 0.0
    %751 = vmatprep.subr.mxu0 0.0
    %752 = vmatpush1.msra.mxu0 0.0
    %753 = vmatprep.subr.mxu0 0.0
    %754 = vmatpush1.msra.mxu0 0.0
    %755 = vmatprep.subr.mxu0 0.0
    %756 = vmatpush1.msra.mxu0 0.0
    %757 = vmatprep.subr.mxu0 0.0
    %758 = vmatpush1.msra.mxu0 0.0
    %759 = vmatprep.subr.mxu0 0.0
    %760 = vmatpush1.msra.mxu0 0.0
    %761 = vmatprep.subr.mxu0 0.0
    %762 = vmatpush1.msra.mxu0 0.0
    %763 = vmatprep.mubr.f32.mxu0 0.0
    %764 = vmatmul.mubr.f32.gmra.mrb[0].mxu0 %v697
    %v765 = vpop.f32.mrb[0].mxu0
    %v766 = vadd.f32 %v23, %v765
    %v767 = vpop.f32.mrb[0].mxu0
    %768 = vdwg.mxu0
    %v769 = vxor.u32 %v766, 2147483648
    %v770 = vmul.f32 %v769, 1.442695
    %v771 = vpow.pop %v770
    %v772 = vadd.f32 %v771, 1.0
    %v773 = vrcp.pop %v772
    %v774 = vmul.f32 1.0, %v773
    %v775 = vtanh.pop %v766
    %v776 = vmul.f32 %v774, %v204
    %778 = vrot.lane.b32.xlu0 %v775, 56
    %v779 = vpop.permute.xlu0 %778
    %v781 = vmul.f32 %v774, %v779
    %783 = vrot.lane.b32.xlu0 %v781, 24
    %v784 = vpop.permute.xlu0 %783
    %v786 = vadd.f32 %v776, %v784
    %v787 = vtanh.pop %v786
    %789 = vrot.lane.b32.xlu0 %v787, 24
    %v790 = vpop.permute.xlu0 %789
    %v792 = vmul.f32 %v774, %v790
    %794 = vrot.lane.b32.xlu0 %v204, 104
    %v795 = vpop.permute.xlu0 %794
    %v797 = vsel %vm211, %v795, %v786
    %v799 = vsel %vm213, %v797, 0
    %801 = vmatprep.subr.mxu0 0.0
    %802 = vmatpush1.msra.mxu0 %v24
    %803 = vmatprep.subr.mxu0 0.0
    %804 = vmatpush1.msra.mxu0 %v25
    %805 = vmatprep.subr.mxu0 0.0
    %806 = vmatpush1.msra.mxu0 %v26
    %807 = vmatprep.subr.mxu0 0.0
    %808 = vmatpush1.msra.mxu0 %v27
    %809 = vmatprep.subr.mxu0 0.0
    %810 = vmatpush1.msra.mxu0 %v28
    %811 = vmatprep.subr.mxu0 0.0
    %812 = vmatpush1.msra.mxu0 %v29
    %813 = vmatprep.subr.mxu0 0.0
    %814 = vmatpush1.msra.mxu0 0.0
    %815 = vmatprep.subr.mxu0 0.0
    %816 = vmatpush1.msra.mxu0 0.0
    %817 = vmatprep.subr.mxu0 0.0
    %818 = vmatpush1.msra.mxu0 0.0
    %819 = vmatprep.subr.mxu0 0.0
    %820 = vmatpush1.msra.mxu0 0.0
    %821 = vmatprep.subr.mxu0 0.0
    %822 = vmatpush1.msra.mxu0 0.0
    %823 = vmatprep.subr.mxu0 0.0
    %824 = vmatpush1.msra.mxu0 0.0
    %825 = vmatprep.subr.mxu0 0.0
    %826 = vmatpush1.msra.mxu0 0.0
    %827 = vmatprep.subr.mxu0 0.0
    %828 = vmatpush1.msra.mxu0 0.0
    %829 = vmatprep.subr.mxu0 0.0
    %830 = vmatpush1.msra.mxu0 0.0
    %831 = vmatprep.subr.mxu0 0.0
    %832 = vmatpush1.msra.mxu0 0.0
    %833 = vmatprep.subr.mxu0 0.0
    %834 = vmatpush1.msra.mxu0 0.0
    %835 = vmatprep.subr.mxu0 0.0
    %836 = vmatpush1.msra.mxu0 0.0
    %837 = vmatprep.subr.mxu0 0.0
    %838 = vmatpush1.msra.mxu0 0.0
    %839 = vmatprep.subr.mxu0 0.0
    %840 = vmatpush1.msra.mxu0 0.0
    %841 = vmatprep.subr.mxu0 0.0
    %842 = vmatpush1.msra.mxu0 0.0
    %843 = vmatprep.subr.mxu0 0.0
    %844 = vmatpush1.msra.mxu0 0.0
    %845 = vmatprep.subr.mxu0 0.0
    %846 = vmatpush1.msra.mxu0 0.0
    %847 = vmatprep.subr.mxu0 0.0
    %848 = vmatpush1.msra.mxu0 0.0
    %849 = vmatprep.subr.mxu0 0.0
    %850 = vmatpush1.msra.mxu0 0.0
    %851 = vmatprep.subr.mxu0 0.0
    %852 = vmatpush1.msra.mxu0 0.0
    %853 = vmatprep.subr.mxu0 0.0
    %854 = vmatpush1.msra.mxu0 0.0
    %855 = vmatprep.subr.mxu0 0.0
    %856 = vmatpush1.msra.mxu0 0.0
    %857 = vmatprep.subr.mxu0 0.0
    %858 = vmatpush1.msra.mxu0 0.0
    %859 = vmatprep.subr.mxu0 0.0
    %860 = vmatpush1.msra.mxu0 0.0
    %861 = vmatprep.subr.mxu0 0.0
    %862 = vmatpush1.msra.mxu0 0.0
    %863 = vmatprep.subr.mxu0 0.0
    %864 = vmatpush1.msra.mxu0 0.0
    %865 = vmatprep.mubr.f32.mxu0 0.0
    %866 = vmatmul.mubr.f32.gmra.mrb[0].mxu0 %v799
    %v867 = vpop.f32.mrb[0].mxu0
    %v868 = vadd.f32 %v30, %v867
    %v869 = vpop.f32.mrb[0].mxu0
    %870 = vdwg.mxu0
    %v871 = vmax.f32 %v868, 0.0
    %v873 = vsel %vm111, %v871, 0
    %875 = vmatprep.subr.mxu0 0.0
    %876 = vmatpush1.msra.mxu0 %v31
    %877 = vmatprep.subr.mxu0 0.0
    %878 = vmatpush1.msra.mxu0 %v32
    %879 = vmatprep.subr.mxu0 0.0
    %880 = vmatpush1.msra.mxu0 0.0
    %881 = vmatprep.subr.mxu0 0.0
    %882 = vmatpush1.msra.mxu0 0.0
    %883 = vmatprep.subr.mxu0 0.0
    %884 = vmatpush1.msra.mxu0 0.0
    %885 = vmatprep.subr.mxu0 0.0
    %886 = vmatpush1.msra.mxu0 0.0
    %887 = vmatprep.subr.mxu0 0.0
    %888 = vmatpush1.msra.mxu0 0.0
    %889 = vmatprep.subr.mxu0 0.0
    %890 = vmatpush1.msra.mxu0 0.0
    %891 = vmatprep.subr.mxu0 0.0
    %892 = vmatpush1.msra.mxu0 0.0
    %893 = vmatprep.subr.mxu0 0.0
    %894 = vmatpush1.msra.mxu0 0.0
    %895 = vmatprep.subr.mxu0 0.0
    %896 = vmatpush1.msra.mxu0 0.0
    %897 = vmatprep.subr.mxu0 0.0
    %898 = vmatpush1.msra.mxu0 0.0
    %899 = vmatprep.subr.mxu0 0.0
    %900 = vmatpush1.msra.mxu0 0.0
    %901 = vmatprep.subr.mxu0 0.0
    %902 = vmatpush1.msra.mxu0 0.0
    %903 = vmatprep.subr.mxu0 0.0
    %904 = vmatpush1.msra.mxu0 0.0
    %905 = vmatprep.subr.mxu0 0.0
    %906 = vmatpush1.msra.mxu0 0.0
    %907 = vmatprep.subr.mxu0 0.0
    %908 = vmatpush1.msra.mxu0 0.0
    %909 = vmatprep.subr.mxu0 0.0
    %910 = vmatpush1.msra.mxu0 0.0
    %911 = vmatprep.subr.mxu0 0.0
    %912 = vmatpush1.msra.mxu0 0.0
    %913 = vmatprep.subr.mxu0 0.0
    %914 = vmatpush1.msra.mxu0 0.0
    %915 = vmatprep.subr.mxu0 0.0
    %916 = vmatpush1.msra.mxu0 0.0
    %917 = vmatprep.subr.mxu0 0.0
    %918 = vmatpush1.msra.mxu0 0.0
    %919 = vmatprep.subr.mxu0 0.0
    %920 = vmatpush1.msra.mxu0 0.0
    %921 = vmatprep.subr.mxu0 0.0
    %922 = vmatpush1.msra.mxu0 0.0
    %923 = vmatprep.subr.mxu0 0.0
    %924 = vmatpush1.msra.mxu0 0.0
    %925 = vmatprep.subr.mxu0 0.0
    %926 = vmatpush1.msra.mxu0 0.0
    %927 = vmatprep.subr.mxu0 0.0
    %928 = vmatpush1.msra.mxu0 0.0
    %929 = vmatprep.subr.mxu0 0.0
    %930 = vmatpush1.msra.mxu0 0.0
    %931 = vmatprep.subr.mxu0 0.0
    %932 = vmatpush1.msra.mxu0 0.0
    %933 = vmatprep.subr.mxu0 0.0
    %934 = vmatpush1.msra.mxu0 0.0
    %935 = vmatprep.subr.mxu0 0.0
    %936 = vmatpush1.msra.mxu0 0.0
    %937 = vmatprep.subr.mxu0 0.0
    %938 = vmatpush1.msra.mxu0 0.0
    %939 = vmatprep.mubr.f32.mxu0 0.0
    %940 = vmatmul.mubr.f32.gmra.mrb[0].mxu0 %v873
    %v941 = vpop.f32.mrb[0].mxu0
    %v942 = vadd.f32 %v33, %v941
    %v943 = vpop.f32.mrb[0].mxu0
    %944 = vdwg.mxu0
    %v945 = vsel %vm361, %v942, -inf
    %946 = vmax.xlane.f32.xlu0 %v945
    %v947 = vpop.xlane.xlu0 %946
    %v948 = vsub.f32 %v942, %v947
    %v949 = vmul.f32 %v948, 1.442695
    %v950 = vpow.pop %v949
    %v951 = vsel %vm361, %v950, 0.0
    %952 = vadd.xlane.f32.xlu0 %v951
    %v953 = vpop.xlane.xlu0 %952
    %v954 = vrcp.pop %v953
    %v955 = vmul.f32 %v950, %v954
    %v956 = vmul.f32 %v955, %v797
    %v958 = vsel %vm213, %v956, 0
    %960 = vmatprep.subr.mxu0 0.0
    %961 = vmatpush1.msra.mxu0 %v34
    %962 = vmatprep.subr.mxu0 0.0
    %963 = vmatpush1.msra.mxu0 %v35
    %964 = vmatprep.subr.mxu0 0.0
    %965 = vmatpush1.msra.mxu0 %v36
    %966 = vmatprep.subr.mxu0 0.0
    %967 = vmatpush1.msra.mxu0 %v37
    %968 = vmatprep.subr.mxu0 0.0
    %969 = vmatpush1.msra.mxu0 %v38
    %970 = vmatprep.subr.mxu0 0.0
    %971 = vmatpush1.msra.mxu0 %v39
    %972 = vmatprep.subr.mxu0 0.0
    %973 = vmatpush1.msra.mxu0 0.0
    %974 = vmatprep.subr.mxu0 0.0
    %975 = vmatpush1.msra.mxu0 0.0
    %976 = vmatprep.subr.mxu0 0.0
    %977 = vmatpush1.msra.mxu0 0.0
    %978 = vmatprep.subr.mxu0 0.0
    %979 = vmatpush1.msra.mxu0 0.0
    %980 = vmatprep.subr.mxu0 0.0
    %981 = vmatpush1.msra.mxu0 0.0
    %982 = vmatprep.subr.mxu0 0.0
    %983 = vmatpush1.msra.mxu0 0.0
    %984 = vmatprep.subr.mxu0 0.0
    %985 = vmatpush1.msra.mxu0 0.0
    %986 = vmatprep.subr.mxu0 0.0
    %987 = vmatpush1.msra.mxu0 0.0
    %988 = vmatprep.subr.mxu0 0.0
    %989 = vmatpush1.msra.mxu0 0.0
    %990 = vmatprep.subr.mxu0 0.0
    %991 = vmatpush1.msra.mxu0 0.0
    %992 = vmatprep.subr.mxu0 0.0
    %993 = vmatpush1.msra.mxu0 0.0
    %994 = vmatprep.subr.mxu0 0.0
    %995 = vmatpush1.msra.mxu0 0.0
    %996 = vmatprep.subr.mxu0 0.0
    %997 = vmatpush1.msra.mxu0 0.0
    %998 = vmatprep.subr.mxu0 0.0
    %999 = vmatpush1.msra.mxu0 0.0
    %1000 = vmatprep.subr.mxu0 0.0
    %1001 = vmatpush1.msra.mxu0 0.0
    %1002 = vmatprep.subr.mxu0 0.0
    %1003 = vmatpush1.msra.mxu0 0.0
    %1004 = vmatprep.subr.mxu0 0.0
    %1005 = vmatpush1.msra.mxu0 0.0
    %1006 = vmatprep.subr.mxu0 0.0
    %1007 = vmatpush1.msra.mxu0 0.0
    %1008 = vmatprep.subr.mxu0 0.0
    %1009 = vmatpush1.msra.mxu0 0.0
    %1010 = vmatprep.subr.mxu0 0.0
    %1011 = vmatpush1.msra.mxu0 0.0
    %1012 = vmatprep.subr.mxu0 0.0
    %1013 = vmatpush1.msra.mxu0 0.0
    %1014 = vmatprep.subr.mxu0 0.0
    %1015 = vmatpush1.msra.mxu0 0.0
    %1016 = vmatprep.subr.mxu0 0.0
    %1017 = vmatpush1.msra.mxu0 0.0
    %1018 = vmatprep.subr.mxu0 0.0
    %1019 = vmatpush1.msra.mxu0 0.0
    %1020 = vmatprep.subr.mxu0 0.0
    %1021 = vmatpush1.msra.mxu0 0.0
    %1022 = vmatprep.subr.mxu0 0.0
    %1023 = vmatpush1.msra.mxu0 0.0
    %1024 = vmatprep.mubr.f32.mxu0 0.0
    %1025 = vmatmul.mubr.f32.gmra.mrb[0].mxu0 %v958
    %v1026 = vpop.f32.mrb[0].mxu0
    %v1027 = vadd.f32 %v40, %v1026
    %v1028 = vpop.f32.mrb[0].mxu0
    %1029 = vdwg.mxu0
    %v1030 = vmax.f32 %v1027, 0.0
    %v1032 = vsel %vm111, %v1030, 0
    %1034 = vmatprep.subr.mxu0 0.0
    %1035 = vmatpush1.msra.mxu0 %v41
    %1036 = vmatprep.subr.mxu0 0.0
    %1037 = vmatpush1.msra.mxu0 %v42
    %1038 = vmatprep.subr.mxu0 0.0
    %1039 = vmatpush1.msra.mxu0 0.0
    %1040 = vmatprep.subr.mxu0 0.0
    %1041 = vmatpush1.msra.mxu0 0.0
    %1042 = vmatprep.subr.mxu0 0.0
    %1043 = vmatpush1.msra.mxu0 0.0
    %1044 = vmatprep.subr.mxu0 0.0
    %1045 = vmatpush1.msra.mxu0 0.0
    %1046 = vmatprep.subr.mxu0 0.0
    %1047 = vmatpush1.msra.mxu0 0.0
    %1048 = vmatprep.subr.mxu0 0.0
    %1049 = vmatpush1.msra.mxu0 0.0
    %1050 = vmatprep.subr.mxu0 0.0
    %1051 = vmatpush1.msra.mxu0 0.0
    %1052 = vmatprep.subr.mxu0 0.0
    %1053 = vmatpush1.msra.mxu0 0.0
    %1054 = vmatprep.subr.mxu0 0.0
    %1055 = vmatpush1.msra.mxu0 0.0
    %1056 = vmatprep.subr.mxu0 0.0
    %1057 = vmatpush1.msra.mxu0 0.0
    %1058 = vmatprep.subr.mxu0 0.0
    %1059 = vmatpush1.msra.mxu0 0.0
    %1060 = vmatprep.subr.mxu0 0.0
    %1061 = vmatpush1.msra.mxu0 0.0
    %1062 = vmatprep.subr.mxu0 0.0
    %1063 = vmatpush1.msra.mxu0 0.0
    %1064 = vmatprep.subr.mxu0 0.0
    %1065 = vmatpush1.msra.mxu0 0.0
    %1066 = vmatprep.subr.mxu0 0.0
    %1067 = vmatpush1.msra.mxu0 0.0
    %1068 = vmatprep.subr.mxu0 0.0
    %1069 = vmatpush1.msra.mxu0 0.0
    %1070 = vmatprep.subr.mxu0 0.0
    %1071 = vmatpush1.msra.mxu0 0.0
    %1072 = vmatprep.subr.mxu0 0.0
    %1073 = vmatpush1.msra.mxu0 0.0
    %1074 = vmatprep.subr.mxu0 0.0
    %1075 = vmatpush1.msra.mxu0 0.0
    %1076 = vmatprep.subr.mxu0 0.0
    %1077 = vmatpush1.msra.mxu0 0.0
    %1078 = vmatprep.subr.mxu0 0.0
    %1079 = vmatpush1.msra.mxu0 0.0
    %1080 = vmatprep.subr.mxu0 0.0
    %1081 = vmatpush1.msra.mxu0 0.0
    %1082 = vmatprep.subr.mxu0 0.0
    %1083 = vmatpush1.msra.mxu0 0.0
    %1084 = vmatprep.subr.mxu0 0.0
    %1085 = vmatpush1.msra.mxu0 0.0
    %1086 = vmatprep.subr.mxu0 0.0
    %1087 = vmatpush1.msra.mxu0 0.0
    %1088 = vmatprep.subr.mxu0 0.0
    %1089 = vmatpush1.msra.mxu0 0.0
    %1090 = vmatprep.subr.mxu0 0.0
    %1091 = vmatpush1.msra.mxu0 0.0
    %1092 = vmatprep.subr.mxu0 0.0
    %1093 = vmatpush1.msra.mxu0 0.0
    %1094 = vmatprep.subr.mxu0 0.0
    %1095 = vmatpush1.msra.mxu0 0.0
    %1096 = vmatprep.subr.mxu0 0.0
    %1097 = vmatpush1.msra.mxu0 0.0
    %1098 = vmatprep.mubr.f32.mxu0 0.0
    %1099 = vmatmul.mubr.f32.gmra.mrb[0].mxu0 %v1032
    %v1100 = vpop.f32.mrb[0].mxu0
    %v1101 = vadd.f32 %v43, %v1100
    %v1102 = vpop.f32.mrb[0].mxu0
    %1103 = vdwg.mxu0
    %v1104 = vtanh.pop %v1101
    %1106 = vrot.lane.b32.xlu0 %v688, 48
    %v1107 = vpop.permute.xlu0 %1106
    %v1109 = vsel %vm213, %v956, %v1107
    %v1111 = vsel %vm523, %v1109, 0
    %1113 = vmatprep.subr.mxu0 0.0
    %1114 = vmatpush1.msra.mxu0 %v44
    %1115 = vmatprep.subr.mxu0 0.0
    %1116 = vmatpush1.msra.mxu0 %v45
    %1117 = vmatprep.subr.mxu0 0.0
    %1118 = vmatpush1.msra.mxu0 %v46
    %1119 = vmatprep.subr.mxu0 0.0
    %1120 = vmatpush1.msra.mxu0 %v47
    %1121 = vmatprep.subr.mxu0 0.0
    %1122 = vmatpush1.msra.mxu0 %v48
    %1123 = vmatprep.subr.mxu0 0.0
    %1124 = vmatpush1.msra.mxu0 %v49
    %1125 = vmatprep.subr.mxu0 0.0
    %1126 = vmatpush1.msra.mxu0 %v50
    %1127 = vmatprep.subr.mxu0 0.0
    %1128 = vmatpush1.msra.mxu0 0.0
    %1129 = vmatprep.subr.mxu0 0.0
    %1130 = vmatpush1.msra.mxu0 0.0
    %1131 = vmatprep.subr.mxu0 0.0
    %1132 = vmatpush1.msra.mxu0 0.0
    %1133 = vmatprep.subr.mxu0 0.0
    %1134 = vmatpush1.msra.mxu0 0.0
    %1135 = vmatprep.subr.mxu0 0.0
    %1136 = vmatpush1.msra.mxu0 0.0
    %1137 = vmatprep.subr.mxu0 0.0
    %1138 = vmatpush1.msra.mxu0 0.0
    %1139 = vmatprep.subr.mxu0 0.0
    %1140 = vmatpush1.msra.mxu0 0.0
    %1141 = vmatprep.subr.mxu0 0.0
    %1142 = vmatpush1.msra.mxu0 0.0
    %1143 = vmatprep.subr.mxu0 0.0
    %1144 = vmatpush1.msra.mxu0 0.0
    %1145 = vmatprep.subr.mxu0 0.0
    %1146 = vmatpush1.msra.mxu0 0.0
    %1147 = vmatprep.subr.mxu0 0.0
    %1148 = vmatpush1.msra.mxu0 0.0
    %1149 = vmatprep.subr.mxu0 0.0
    %1150 = vmatpush1.msra.mxu0 0.0
    %1151 = vmatprep.subr.mxu0 0.0
    %1152 = vmatpush1.msra.mxu0 0.0
    %1153 = vmatprep.subr.mxu0 0.0
    %1154 = vmatpush1.msra.mxu0 0.0
    %1155 = vmatprep.subr.mxu0 0.0
    %1156 = vmatpush1.msra.mxu0 0.0
    %1157 = vmatprep.subr.mxu0 0.0
    %1158 = vmatpush1.msra.mxu0 0.0
    %1159 = vmatprep.subr.mxu0 0.0
    %1160 = vmatpush1.msra.mxu0 0.0
    %1161 = vmatprep.subr.mxu0 0.0
    %1162 = vmatpush1.msra.mxu0 0.0
    %1163 = vmatprep.subr.mxu0 0.0
    %1164 = vmatpush1.msra.mxu0 0.0
    %1165 = vmatprep.subr.mxu0 0.0
    %1166 = vmatpush1.msra.mxu0 0.0
    %1167 = vmatprep.subr.mxu0 0.0
    %1168 = vmatpush1.msra.mxu0 0.0
    %1169 = vmatprep.subr.mxu0 0.0
    %1170 = vmatpush1.msra.mxu0 0.0
    %1171 = vmatprep.subr.mxu0 0.0
    %1172 = vmatpush1.msra.mxu0 0.0
    %1173 = vmatprep.subr.mxu0 0.0
    %1174 = vmatpush1.msra.mxu0 0.0
    %1175 = vmatprep.subr.mxu0 0.0
    %1176 = vmatpush1.msra.mxu0 0.0
    %1177 = vmatprep.mubr.f32.mxu0 0.0
    %1178 = vmatmul.mubr.f32.gmra.mrb[0].mxu0 %v1111
    %v1179 = vpop.f32.mrb[0].mxu0
    %v1180 = vadd.f32 %v51, %v1179
    %v1181 = vpop.f32.mrb[0].mxu0
    %1182 = vdwg.mxu0
    %v1183 = vmax.f32 %v1180, 0.0
    %v1185 = vsel %vm598, %v1183, 0
    %1187 = vmatprep.subr.mxu0 0.0
    %1188 = vmatpush1.msra.mxu0 %v52
    %1189 = vmatprep.subr.mxu0 0.0
    %1190 = vmatpush1.msra.mxu0 %v53
    %1191 = vmatprep.subr.mxu0 0.0
    %1192 = vmatpush1.msra.mxu0 %v54
    %1193 = vmatprep.subr.mxu0 0.0
    %1194 = vmatpush1.msra.mxu0 %v55
    %1195 = vmatprep.subr.mxu0 0.0
    %1196 = vmatpush1.msra.mxu0 0.0
    %1197 = vmatprep.subr.mxu0 0.0
    %1198 = vmatpush1.msra.mxu0 0.0
    %1199 = vmatprep.subr.mxu0 0.0
    %1200 = vmatpush1.msra.mxu0 0.0
    %1201 = vmatprep.subr.mxu0 0.0
    %1202 = vmatpush1.msra.mxu0 0.0
    %1203 = vmatprep.subr.mxu0 0.0
    %1204 = vmatpush1.msra.mxu0 0.0
    %1205 = vmatprep.subr.mxu0 0.0
    %1206 = vmatpush1.msra.mxu0 0.0
    %1207 = vmatprep.subr.mxu0 0.0
    %1208 = vmatpush1.msra.mxu0 0.0
    %1209 = vmatprep.subr.mxu0 0.0
    %1210 = vmatpush1.msra.mxu0 0.0
    %1211 = vmatprep.subr.mxu0 0.0
    %1212 = vmatpush1.msra.mxu0 0.0
    %1213 = vmatprep.subr.mxu0 0.0
    %1214 = vmatpush1.msra.mxu0 0.0
    %1215 = vmatprep.subr.mxu0 0.0
    %1216 = vmatpush1.msra.mxu0 0.0
    %1217 = vmatprep.subr.mxu0 0.0
    %1218 = vmatpush1.msra.mxu0 0.0
    %1219 = vmatprep.subr.mxu0 0.0
    %1220 = vmatpush1.msra.mxu0 0.0
    %1221 = vmatprep.subr.mxu0 0.0
    %1222 = vmatpush1.msra.mxu0 0.0
    %1223 = vmatprep.subr.mxu0 0.0
    %1224 = vmatpush1.msra.mxu0 0.0
    %1225 = vmatprep.subr.mxu0 0.0
    %1226 = vmatpush1.msra.mxu0 0.0
    %1227 = vmatprep.subr.mxu0 0.0
    %1228 = vmatpush1.msra.mxu0 0.0
    %1229 = vmatprep.subr.mxu0 0.0
    %1230 = vmatpush1.msra.mxu0 0.0
    %1231 = vmatprep.subr.mxu0 0.0
    %1232 = vmatpush1.msra.mxu0 0.0
    %1233 = vmatprep.subr.mxu0 0.0
    %1234 = vmatpush1.msra.mxu0 0.0
    %1235 = vmatprep.subr.mxu0 0.0
    %1236 = vmatpush1.msra.mxu0 0.0
    %1237 = vmatprep.subr.mxu0 0.0
    %1238 = vmatpush1.msra.mxu0 0.0
    %1239 = vmatprep.subr.mxu0 0.0
    %1240 = vmatpush1.msra.mxu0 0.0
    %1241 = vmatprep.subr.mxu0 0.0
    %1242 = vmatpush1.msra.mxu0 0.0
    %1243 = vmatprep.subr.mxu0 0.0
    %1244 = vmatpush1.msra.mxu0 0.0
    %1245 = vmatprep.subr.mxu0 0.0
    %1246 = vmatpush1.msra.mxu0 0.0
    %1247 = vmatprep.subr.mxu0 0.0
    %1248 = vmatpush1.msra.mxu0 0.0
    %1249 = vmatprep.subr.mxu0 0.0
    %1250 = vmatpush1.msra.mxu0 0.0
    %1251 = vmatprep.mubr.f32.mxu0 0.0
    %1252 = vmatmul.mubr.f32.gmra.mrb[0].mxu0 %v1185
    %v1253 = vpop.f32.mrb[0].mxu0
    %v1254 = vadd.f32 %v56, %v1253
    %v1255 = vpop.f32.mrb[0].mxu0
    %1256 = vdwg.mxu0
    %v1257 = vxor.u32 %v1254, 2147483648
    %v1258 = vmul.f32 %v1257, 1.442695
    %v1259 = vpow.pop %v1258
    %v1260 = vadd.f32 %v1259, 1.0
    %v1261 = vrcp.pop %v1260
    %v1262 = vmul.f32 1.0, %v1261
    %v1263 = vmul.f32 %v1262, %v688
    %1265 = vrot.lane.b32.xlu0 %v1104, 8
    %v1266 = vpop.permute.xlu0 %1265
    %v1268 = vmul.f32 %v1262, %v1266
    %1270 = vrot.lane.b32.xlu0 %v1268, 120
    %v1271 = vpop.permute.xlu0 %1270
    %v1273 = vadd.f32 %v1263, %v1271
    %s1274 = scalar_lea.vmem %s0, 8
    %v1275 = vld [vmem:[%s1274] sm:$0xf]
    %1277 = vrot.lane.b32.xlu0 %v792, 96
    %v1278 = vpop.permute.xlu0 %1277
    %v1280 = vsel %vm111, %v1275, %v1278
    %v1282 = vsel %vm113, %v1280, 0
    %1284 = vmatprep.subr.mxu0 0.0
    %1285 = vmatpush1.msra.mxu0 %v18
    %1286 = vmatprep.subr.mxu0 0.0
    %1287 = vmatpush1.msra.mxu0 %v19
    %1288 = vmatprep.subr.mxu0 0.0
    %1289 = vmatpush1.msra.mxu0 %v20
    %1290 = vmatprep.subr.mxu0 0.0
    %1291 = vmatpush1.msra.mxu0 %v21
    %1292 = vmatprep.subr.mxu0 0.0
    %1293 = vmatpush1.msra.mxu0 %v22
    %1294 = vmatprep.subr.mxu0 0.0
    %1295 = vmatpush1.msra.mxu0 0.0
    %1296 = vmatprep.subr.mxu0 0.0
    %1297 = vmatpush1.msra.mxu0 0.0
    %1298 = vmatprep.subr.mxu0 0.0
    %1299 = vmatpush1.msra.mxu0 0.0
    %1300 = vmatprep.subr.mxu0 0.0
    %1301 = vmatpush1.msra.mxu0 0.0
    %1302 = vmatprep.subr.mxu0 0.0
    %1303 = vmatpush1.msra.mxu0 0.0
    %1304 = vmatprep.subr.mxu0 0.0
    %1305 = vmatpush1.msra.mxu0 0.0
    %1306 = vmatprep.subr.mxu0 0.0
    %1307 = vmatpush1.msra.mxu0 0.0
    %1308 = vmatprep.subr.mxu0 0.0
    %1309 = vmatpush1.msra.mxu0 0.0
    %1310 = vmatprep.subr.mxu0 0.0
    %1311 = vmatpush1.msra.mxu0 0.0
    %1312 = vmatprep.subr.mxu0 0.0
    %1313 = vmatpush1.msra.mxu0 0.0
    %1314 = vmatprep.subr.mxu0 0.0
    %1315 = vmatpush1.msra.mxu0 0.0
    %1316 = vmatprep.subr.mxu0 0.0
    %1317 = vmatpush1.msra.mxu0 0.0
    %1318 = vmatprep.subr.mxu0 0.0
    %1319 = vmatpush1.msra.mxu0 0.0
    %1320 = vmatprep.subr.mxu0 0.0
    %1321 = vmatpush1.msra.mxu0 0.0
    %1322 = vmatprep.subr.mxu0 0.0
    %1323 = vmatpush1.msra.mxu0 0.0
    %1324 = vmatprep.subr.mxu0 0.0
    %1325 = vmatpush1.msra.mxu0 0.0
    %1326 = vmatprep.subr.mxu0 0.0
    %1327 = vmatpush1.msra.mxu0 0.0
    %1328 = vmatprep.subr.mxu0 0.0
    %1329 = vmatpush1.msra.mxu0 0.0
    %1330 = vmatprep.subr.mxu0 0.0
    %1331 = vmatpush1.msra.mxu0 0.0
    %1332 = vmatprep.subr.mxu0 0.0
    %1333 = vmatpush1.msra.mxu0 0.0
    %1334 = vmatprep.subr.mxu0 0.0
    %1335 = vmatpush1.msra.mxu0 0.0
    %1336 = vmatprep.subr.mxu0 0.0
    %1337 = vmatpush1.msra.mxu0 0.0
    %1338 = vmatprep.subr.mxu0 0.0
    %1339 = vmatpush1.msra.mxu0 0.0
    %1340 = vmatprep.subr.mxu0 0.0
    %1341 = vmatpush1.msra.mxu0 0.0
    %1342 = vmatprep.subr.mxu0 0.0
    %1343 = vmatpush1.msra.mxu0 0.0
    %1344 = vmatprep.subr.mxu0 0.0
    %1345 = vmatpush1.msra.mxu0 0.0
    %1346 = vmatprep.subr.mxu0 0.0
    %1347 = vmatpush1.msra.mxu0 0.0
    %1348 = vmatprep.mubr.f32.mxu0 0.0
    %1349 = vmatmul.mubr.f32.gmra.mrb[0].mxu0 %v1282
    %v1350 = vpop.f32.mrb[0].mxu0
    %v1351 = vadd.f32 %v23, %v1350
    %v1352 = vpop.f32.mrb[0].mxu0
    %1353 = vdwg.mxu0
    %v1354 = vxor.u32 %v1351, 2147483648
    %v1355 = vmul.f32 %v1354, 1.442695
    %v1356 = vpow.pop %v1355
    %v1357 = vadd.f32 %v1356, 1.0
    %v1358 = vrcp.pop %v1357
    %v1359 = vmul.f32 1.0, %v1358
    %v1360 = vtanh.pop %v1351
    %v1361 = vmul.f32 %v1359, %v786
    %1363 = vrot.lane.b32.xlu0 %v1360, 56
    %v1364 = vpop.permute.xlu0 %1363
    %v1366 = vmul.f32 %v1359, %v1364
    %1368 = vrot.lane.b32.xlu0 %v1366, 24
    %v1369 = vpop.permute.xlu0 %1368
    %v1371 = vadd.f32 %v1361, %v1369
    %v1372 = vtanh.pop %v1371
    %1374 = vrot.lane.b32.xlu0 %v1372, 24
    %v1375 = vpop.permute.xlu0 %1374
    %v1377 = vmul.f32 %v1359, %v1375
    %1379 = vrot.lane.b32.xlu0 %v786, 104
    %v1380 = vpop.permute.xlu0 %1379
    %v1382 = vsel %vm211, %v1380, %v1371
    %v1384 = vsel %vm213, %v1382, 0
    %1386 = vmatprep.subr.mxu0 0.0
    %1387 = vmatpush1.msra.mxu0 %v24
    %1388 = vmatprep.subr.mxu0 0.0
    %1389 = vmatpush1.msra.mxu0 %v25
    %1390 = vmatprep.subr.mxu0 0.0
    %1391 = vmatpush1.msra.mxu0 %v26
    %1392 = vmatprep.subr.mxu0 0.0
    %1393 = vmatpush1.msra.mxu0 %v27
    %1394 = vmatprep.subr.mxu0 0.0
    %1395 = vmatpush1.msra.mxu0 %v28
    %1396 = vmatprep.subr.mxu0 0.0
    %1397 = vmatpush1.msra.mxu0 %v29
    %1398 = vmatprep.subr.mxu0 0.0
    %1399 = vmatpush1.msra.mxu0 0.0
    %1400 = vmatprep.subr.mxu0 0.0
    %1401 = vmatpush1.msra.mxu0 0.0
    %1402 = vmatprep.subr.mxu0 0.0
    %1403 = vmatpush1.msra.mxu0 0.0
    %1404 = vmatprep.subr.mxu0 0.0
    %1405 = vmatpush1.msra.mxu0 0.0
    %1406 = vmatprep.subr.mxu0 0.0
    %1407 = vmatpush1.msra.mxu0 0.0
    %1408 = vmatprep.subr.mxu0 0.0
    %1409 = vmatpush1.msra.mxu0 0.0
    %1410 = vmatprep.subr.mxu0 0.0
    %1411 = vmatpush1.msra.mxu0 0.0
    %1412 = vmatprep.subr.mxu0 0.0
    %1413 = vmatpush1.msra.mxu0 0.0
    %1414 = vmatprep.subr.mxu0 0.0
    %1415 = vmatpush1.msra.mxu0 0.0
    %1416 = vmatprep.subr.mxu0 0.0
    %1417 = vmatpush1.msra.mxu0 0.0
    %1418 = vmatprep.subr.mxu0 0.0
    %1419 = vmatpush1.msra.mxu0 0.0
    %1420 = vmatprep.subr.mxu0 0.0
    %1421 = vmatpush1.msra.mxu0 0.0
    %1422 = vmatprep.subr.mxu0 0.0
    %1423 = vmatpush1.msra.mxu0 0.0
    %1424 = vmatprep.subr.mxu0 0.0
    %1425 = vmatpush1.msra.mxu0 0.0
    %1426 = vmatprep.subr.mxu0 0.0
    %1427 = vmatpush1.msra.mxu0 0.0
    %1428 = vmatprep.subr.mxu0 0.0
    %1429 = vmatpush1.msra.mxu0 0.0
    %1430 = vmatprep.subr.mxu0 0.0
    %1431 = vmatpush1.msra.mxu0 0.0
    %1432 = vmatprep.subr.mxu0 0.0
    %1433 = vmatpush1.msra.mxu0 0.0
    %1434 = vmatprep.subr.mxu0 0.0
    %1435 = vmatpush1.msra.mxu0 0.0
    %1436 = vmatprep.subr.mxu0 0.0
    %1437 = vmatpush1.msra.mxu0 0.0
    %1438 = vmatprep.subr.mxu0 0.0
    %1439 = vmatpush1.msra.mxu0 0.0
    %1440 = vmatprep.subr.mxu0 0.0
    %1441 = vmatpush1.msra.mxu0 0.0
    %1442 = vmatprep.subr.mxu0 0.0
    %1443 = vmatpush1.msra.mxu0 0.0
    %1444 = vmatprep.subr.mxu0 0.0
    %1445 = vmatpush1.msra.mxu0 0.0
    %1446 = vmatprep.subr.mxu0 0.0
    %1447 = vmatpush1.msra.mxu0 0.0
    %1448 = vmatprep.subr.mxu0 0.0
    %1449 = vmatpush1.msra.mxu0 0.0
    %1450 = vmatprep.mubr.f32.mxu0 0.0
    %1451 = vmatmul.mubr.f32.gmra.mrb[0].mxu0 %v1384
    %v1452 = vpop.f32.mrb[0].mxu0
    %v1453 = vadd.f32 %v30, %v1452
    %v1454 = vpop.f32.mrb[0].mxu0
    %1455 = vdwg.mxu0
    %v1456 = vmax.f32 %v1453, 0.0
    %v1458 = vsel %vm111, %v1456, 0
    %1460 = vmatprep.subr.mxu0 0.0
    %1461 = vmatpush1.msra.mxu0 %v31
    %1462 = vmatprep.subr.mxu0 0.0
    %1463 = vmatpush1.msra.mxu0 %v32
    %1464 = vmatprep.subr.mxu0 0.0
    %1465 = vmatpush1.msra.mxu0 0.0
    %1466 = vmatprep.subr.mxu0 0.0
    %1467 = vmatpush1.msra.mxu0 0.0
    %1468 = vmatprep.subr.mxu0 0.0
    %1469 = vmatpush1.msra.mxu0 0.0
    %1470 = vmatprep.subr.mxu0 0.0
    %1471 = vmatpush1.msra.mxu0 0.0
    %1472 = vmatprep.subr.mxu0 0.0
    %1473 = vmatpush1.msra.mxu0 0.0
    %1474 = vmatprep.subr.mxu0 0.0
    %1475 = vmatpush1.msra.mxu0 0.0
    %1476 = vmatprep.subr.mxu0 0.0
    %1477 = vmatpush1.msra.mxu0 0.0
    %1478 = vmatprep.subr.mxu0 0.0
    %1479 = vmatpush1.msra.mxu0 0.0
    %1480 = vmatprep.subr.mxu0 0.0
    %1481 = vmatpush1.msra.mxu0 0.0
    %1482 = vmatprep.subr.mxu0 0.0
    %1483 = vmatpush1.msra.mxu0 0.0
    %1484 = vmatprep.subr.mxu0 0.0
    %1485 = vmatpush1.msra.mxu0 0.0
    %1486 = vmatprep.subr.mxu0 0.0
    %1487 = vmatpush1.msra.mxu0 0.0
    %1488 = vmatprep.subr.mxu0 0.0
    %1489 = vmatpush1.msra.mxu0 0.0
    %1490 = vmatprep.subr.mxu0 0.0
    %1491 = vmatpush1.msra.mxu0 0.0
    %1492 = vmatprep.subr.mxu0 0.0
    %1493 = vmatpush1.msra.mxu0 0.0
    %1494 = vmatprep.subr.mxu0 0.0
    %1495 = vmatpush1.msra.mxu0 0.0
    %1496 = vmatprep.subr.mxu0 0.0
    %1497 = vmatpush1.msra.mxu0 0.0
    %1498 = vmatprep.subr.mxu0 0.0
    %1499 = vmatpush1.msra.mxu0 0.0
    %1500 = vmatprep.subr.mxu0 0.0
    %1501 = vmatpush1.msra.mxu0 0.0
    %1502 = vmatprep.subr.mxu0 0.0
    %1503 = vmatpush1.msra.mxu0 0.0
    %1504 = vmatprep.subr.mxu0 0.0
    %1505 = vmatpush1.msra.mxu0 0.0
    %1506 = vmatprep.subr.mxu0 0.0
    %1507 = vmatpush1.msra.mxu0 0.0
    %1508 = vmatprep.subr.mxu0 0.0
    %1509 = vmatpush1.msra.mxu0 0.0
    %1510 = vmatprep.subr.mxu0 0.0
    %1511 = vmatpush1.msra.mxu0 0.0
    %1512 = vmatprep.subr.mxu0 0.0
    %1513 = vmatpush1.msra.mxu0 0.0
    %1514 = vmatprep.subr.mxu0 0.0
    %1515 = vmatpush1.msra.mxu0 0.0
    %1516 = vmatprep.subr.mxu0 0.0
    %1517 = vmatpush1.msra.mxu0 0.0
    %1518 = vmatprep.subr.mxu0 0.0
    %1519 = vmatpush1.msra.mxu0 0.0
    %1520 = vmatprep.subr.mxu0 0.0
    %1521 = vmatpush1.msra.mxu0 0.0
    %1522 = vmatprep.subr.mxu0 0.0
    %1523 = vmatpush1.msra.mxu0 0.0
    %1524 = vmatprep.mubr.f32.mxu0 0.0
    %1525 = vmatmul.mubr.f32.gmra.mrb[0].mxu0 %v1458
    %v1526 = vpop.f32.mrb[0].mxu0
    %v1527 = vadd.f32 %v33, %v1526
    %v1528 = vpop.f32.mrb[0].mxu0
    %1529 = vdwg.mxu0
    %v1530 = vsel %vm361, %v1527, -inf
    %1531 = vmax.xlane.f32.xlu0 %v1530
    %v1532 = vpop.xlane.xlu0 %1531
    %v1533 = vsub.f32 %v1527, %v1532
    %v1534 = vmul.f32 %v1533, 1.442695
    %v1535 = vpow.pop %v1534
    %v1536 = vsel %vm361, %v1535, 0.0
    %1537 = vadd.xlane.f32.xlu0 %v1536
    %v1538 = vpop.xlane.xlu0 %1537
    %v1539 = vrcp.pop %v1538
    %v1540 = vmul.f32 %v1535, %v1539
    %v1541 = vmul.f32 %v1540, %v1382
    %v1543 = vsel %vm213, %v1541, 0
    %1545 = vmatprep.subr.mxu0 0.0
    %1546 = vmatpush1.msra.mxu0 %v34
    %1547 = vmatprep.subr.mxu0 0.0
    %1548 = vmatpush1.msra.mxu0 %v35
    %1549 = vmatprep.subr.mxu0 0.0
    %1550 = vmatpush1.msra.mxu0 %v36
    %1551 = vmatprep.subr.mxu0 0.0
    %1552 = vmatpush1.msra.mxu0 %v37
    %1553 = vmatprep.subr.mxu0 0.0
    %1554 = vmatpush1.msra.mxu0 %v38
    %1555 = vmatprep.subr.mxu0 0.0
    %1556 = vmatpush1.msra.mxu0 %v39
    %1557 = vmatprep.subr.mxu0 0.0
    %1558 = vmatpush1.msra.mxu0 0.0
    %1559 = vmatprep.subr.mxu0 0.0
    %1560 = vmatpush1.msra.mxu0 0.0
    %1561 = vmatprep.subr.mxu0 0.0
    %1562 = vmatpush1.msra.mxu0 0.0
    %1563 = vmatprep.subr.mxu0 0.0
    %1564 = vmatpush1.msra.mxu0 0.0
    %1565 = vmatprep.subr.mxu0 0.0
    %1566 = vmatpush1.msra.mxu0 0.0
    %1567 = vmatprep.subr.mxu0 0.0
    %1568 = vmatpush1.msra.mxu0 0.0
    %1569 = vmatprep.subr.mxu0 0.0
    %1570 = vmatpush1.msra.mxu0 0.0
    %1571 = vmatprep.subr.mxu0 0.0
    %1572 = vmatpush1.msra.mxu0 0.0
    %1573 = vmatprep.subr.mxu0 0.0
    %1574 = vmatpush1.msra.mxu0 0.0
    %1575 = vmatprep.subr.mxu0 0.0
    %1576 = vmatpush1.msra.mxu0 0.0
    %1577 = vmatprep.subr.mxu0 0.0
    %1578 = vmatpush1.msra.mxu0 0.0
    %1579 = vmatprep.subr.mxu0 0.0
    %1580 = vmatpush1.msra.mxu0 0.0
    %1581 = vmatprep.subr.mxu0 0.0
    %1582 = vmatpush1.msra.mxu0 0.0
    %1583 = vmatprep.subr.mxu0 0.0
    %1584 = vmatpush1.msra.mxu0 0.0
    %1585 = vmatprep.subr.mxu0 0.0
    %1586 = vmatpush1.msra.mxu0 0.0
    %1587 = vmatprep.subr.mxu0 0.0
    %1588 = vmatpush1.msra.mxu0 0.0
    %1589 = vmatprep.subr.mxu0 0.0
    %1590 = vmatpush1.msra.mxu0 0.0
    %1591 = vmatprep.subr.mxu0 0.0
    %1592 = vmatpush1.msra.mxu0 0.0
    %1593 = vmatprep.subr.mxu0 0.0
    %1594 = vmatpush1.msra.mxu0 0.0
    %1595 = vmatprep.subr.mxu0 0.0
    %1596 = vmatpush1.msra.mxu0 0.0
    %1597 = vmatprep.subr.mxu0 0.0
    %1598 = vmatpush1.msra.mxu0 0.0
    %1599 = vmatprep.subr.mxu0 0.0
    %1600 = vmatpush1.msra.mxu0 0.0
    %1601 = vmatprep.subr.mxu0 0.0
    %1602 = vmatpush1.msra.mxu0 0.0
    %1603 = vmatprep.subr.mxu0 0.0
    %1604 = vmatpush1.msra.mxu0 0.0
    %1605 = vmatprep.subr.mxu0 0.0
    %1606 = vmatpush1.msra.mxu0 0.0
    %1607 = vmatprep.subr.mxu0 0.0
    %1608 = vmatpush1.msra.mxu0 0.0
    %1609 = vmatprep.mubr.f32.mxu0 0.0
    %1610 = vmatmul.mubr.f32.gmra.mrb[0].mxu0 %v1543
    %v1611 = vpop.f32.mrb[0].mxu0
    %v1612 = vadd.f32 %v40, %v1611
    %v1613 = vpop.f32.mrb[0].mxu0
    %1614 = vdwg.mxu0
    %v1615 = vmax.f32 %v1612, 0.0
    %v1617 = vsel %vm111, %v1615, 0
    %1619 = vmatprep.subr.mxu0 0.0
    %1620 = vmatpush1.msra.mxu0 %v41
    %1621 = vmatprep.subr.mxu0 0.0
    %1622 = vmatpush1.msra.mxu0 %v42
    %1623 = vmatprep.subr.mxu0 0.0
    %1624 = vmatpush1.msra.mxu0 0.0
    %1625 = vmatprep.subr.mxu0 0.0
    %1626 = vmatpush1.msra.mxu0 0.0
    %1627 = vmatprep.subr.mxu0 0.0
    %1628 = vmatpush1.msra.mxu0 0.0
    %1629 = vmatprep.subr.mxu0 0.0
    %1630 = vmatpush1.msra.mxu0 0.0
    %1631 = vmatprep.subr.mxu0 0.0
    %1632 = vmatpush1.msra.mxu0 0.0
    %1633 = vmatprep.subr.mxu0 0.0
    %1634 = vmatpush1.msra.mxu0 0.0
    %1635 = vmatprep.subr.mxu0 0.0
    %1636 = vmatpush1.msra.mxu0 0.0
    %1637 = vmatprep.subr.mxu0 0.0
    %1638 = vmatpush1.msra.mxu0 0.0
    %1639 = vmatprep.subr.mxu0 0.0
    %1640 = vmatpush1.msra.mxu0 0.0
    %1641 = vmatprep.subr.mxu0 0.0
    %1642 = vmatpush1.msra.mxu0 0.0
    %1643 = vmatprep.subr.mxu0 0.0
    %1644 = vmatpush1.msra.mxu0 0.0
    %1645 = vmatprep.subr.mxu0 0.0
    %1646 = vmatpush1.msra.mxu0 0.0
    %1647 = vmatprep.subr.mxu0 0.0
    %1648 = vmatpush1.msra.mxu0 0.0
    %1649 = vmatprep.subr.mxu0 0.0
    %1650 = vmatpush1.msra.mxu0 0.0
    %1651 = vmatprep.subr.mxu0 0.0
    %1652 = vmatpush1.msra.mxu0 0.0
    %1653 = vmatprep.subr.mxu0 0.0
    %1654 = vmatpush1.msra.mxu0 0.0
    %1655 = vmatprep.subr.mxu0 0.0
    %1656 = vmatpush1.msra.mxu0 0.0
    %1657 = vmatprep.subr.mxu0 0.0
    %1658 = vmatpush1.msra.mxu0 0.0
    %1659 = vmatprep.subr.mxu0 0.0
    %1660 = vmatpush1.msra.mxu0 0.0
    %1661 = vmatprep.subr.mxu0 0.0
    %1662 = vmatpush1.msra.mxu0 0.0
    %1663 = vmatprep.subr.mxu0 0.0
    %1664 = vmatpush1.msra.mxu0 0.0
    %1665 = vmatprep.subr.mxu0 0.0
    %1666 = vmatpush1.msra.mxu0 0.0
    %1667 = vmatprep.subr.mxu0 0.0
    %1668 = vmatpush1.msra.mxu0 0.0
    %1669 = vmatprep.subr.mxu0 0.0
    %1670 = vmatpush1.msra.mxu0 0.0
    %1671 = vmatprep.subr.mxu0 0.0
    %1672 = vmatpush1.msra.mxu0 0.0
    %1673 = vmatprep.subr.mxu0 0.0
    %1674 = vmatpush1.msra.mxu0 0.0
    %1675 = vmatprep.subr.mxu0 0.0
    %1676 = vmatpush1.msra.mxu0 0.0
    %1677 = vmatprep.subr.mxu0 0.0
    %1678 = vmatpush1.msra.mxu0 0.0
    %1679 = vmatprep.subr.mxu0 0.0
    %1680 = vmatpush1.msra.mxu0 0.0
    %1681 = vmatprep.subr.mxu0 0.0
    %1682 = vmatpush1.msra.mxu0 0.0
    %1683 = vmatprep.mubr.f32.mxu0 0.0
    %1684 = vmatmul.mubr.f32.gmra.mrb[0].mxu0 %v1617
    %v1685 = vpop.f32.mrb[0].mxu0
    %v1686 = vadd.f32 %v43, %v1685
    %v1687 = vpop.f32.mrb[0].mxu0
    %1688 = vdwg.mxu0
    %v1689 = vtanh.pop %v1686
    %1691 = vrot.lane.b32.xlu0 %v1273, 48
    %v1692 = vpop.permute.xlu0 %1691
    %v1694 = vsel %vm213, %v1541, %v1692
    %v1696 = vsel %vm523, %v1694, 0
    %1698 = vmatprep.subr.mxu0 0.0
    %1699 = vmatpush1.msra.mxu0 %v44
    %1700 = vmatprep.subr.mxu0 0.0
    %1701 = vmatpush1.msra.mxu0 %v45
    %1702 = vmatprep.subr.mxu0 0.0
    %1703 = vmatpush1.msra.mxu0 %v46
    %1704 = vmatprep.subr.mxu0 0.0
    %1705 = vmatpush1.msra.mxu0 %v47
    %1706 = vmatprep.subr.mxu0 0.0
    %1707 = vmatpush1.msra.mxu0 %v48
    %1708 = vmatprep.subr.mxu0 0.0
    %1709 = vmatpush1.msra.mxu0 %v49
    %1710 = vmatprep.subr.mxu0 0.0
    %1711 = vmatpush1.msra.mxu0 %v50
    %1712 = vmatprep.subr.mxu0 0.0
    %1713 = vmatpush1.msra.mxu0 0.0
    %1714 = vmatprep.subr.mxu0 0.0
    %1715 = vmatpush1.msra.mxu0 0.0
    %1716 = vmatprep.subr.mxu0 0.0
    %1717 = vmatpush1.msra.mxu0 0.0
    %1718 = vmatprep.subr.mxu0 0.0
    %1719 = vmatpush1.msra.mxu0 0.0
    %1720 = vmatprep.subr.mxu0 0.0
    %1721 = vmatpush1.msra.mxu0 0.0
    %1722 = vmatprep.subr.mxu0 0.0
    %1723 = vmatpush1.msra.mxu0 0.0
    %1724 = vmatprep.subr.mxu0 0.0
    %1725 = vmatpush1.msra.mxu0 0.0
    %1726 = vmatprep.subr.mxu0 0.0
    %1727 = vmatpush1.msra.mxu0 0.0
    %1728 = vmatprep.subr.mxu0 0.0
    %1729 = vmatpush1.msra.mxu0 0.0
    %1730 = vmatprep.subr.mxu0 0.0
    %1731 = vmatpush1.msra.mxu0 0.0
    %1732 = vmatprep.subr.mxu0 0.0
    %1733 = vmatpush1.msra.mxu0 0.0
    %1734 = vmatprep.subr.mxu0 0.0
    %1735 = vmatpush1.msra.mxu0 0.0
    %1736 = vmatprep.subr.mxu0 0.0
    %1737 = vmatpush1.msra.mxu0 0.0
    %1738 = vmatprep.subr.mxu0 0.0
    %1739 = vmatpush1.msra.mxu0 0.0
    %1740 = vmatprep.subr.mxu0 0.0
    %1741 = vmatpush1.msra.mxu0 0.0
    %1742 = vmatprep.subr.mxu0 0.0
    %1743 = vmatpush1.msra.mxu0 0.0
    %1744 = vmatprep.subr.mxu0 0.0
    %1745 = vmatpush1.msra.mxu0 0.0
    %1746 = vmatprep.subr.mxu0 0.0
    %1747 = vmatpush1.msra.mxu0 0.0
    %1748 = vmatprep.subr.mxu0 0.0
    %1749 = vmatpush1.msra.mxu0 0.0
    %1750 = vmatprep.subr.mxu0 0.0
    %1751 = vmatpush1.msra.mxu0 0.0
    %1752 = vmatprep.subr.mxu0 0.0
    %1753 = vmatpush1.msra.mxu0 0.0
    %1754 = vmatprep.subr.mxu0 0.0
    %1755 = vmatpush1.msra.mxu0 0.0
    %1756 = vmatprep.subr.mxu0 0.0
    %1757 = vmatpush1.msra.mxu0 0.0
    %1758 = vmatprep.subr.mxu0 0.0
    %1759 = vmatpush1.msra.mxu0 0.0
    %1760 = vmatprep.subr.mxu0 0.0
    %1761 = vmatpush1.msra.mxu0 0.0
    %1762 = vmatprep.mubr.f32.mxu0 0.0
    %1763 = vmatmul.mubr.f32.gmra.mrb[0].mxu0 %v1696
    %v1764 = vpop.f32.mrb[0].mxu0
    %v1765 = vadd.f32 %v51, %v1764
    %v1766 = vpop.f32.mrb[0].mxu0
    %1767 = vdwg.mxu0
    %v1768 = vmax.f32 %v1765, 0.0
    %v1770 = vsel %vm598, %v1768, 0
    %1772 = vmatprep.subr.mxu0 0.0
    %1773 = vmatpush1.msra.mxu0 %v52
    %1774 = vmatprep.subr.mxu0 0.0
    %1775 = vmatpush1.msra.mxu0 %v53
    %1776 = vmatprep.subr.mxu0 0.0
    %1777 = vmatpush1.msra.mxu0 %v54
    %1778 = vmatprep.subr.mxu0 0.0
    %1779 = vmatpush1.msra.mxu0 %v55
    %1780 = vmatprep.subr.mxu0 0.0
    %1781 = vmatpush1.msra.mxu0 0.0
    %1782 = vmatprep.subr.mxu0 0.0
    %1783 = vmatpush1.msra.mxu0 0.0
    %1784 = vmatprep.subr.mxu0 0.0
    %1785 = vmatpush1.msra.mxu0 0.0
    %1786 = vmatprep.subr.mxu0 0.0
    %1787 = vmatpush1.msra.mxu0 0.0
    %1788 = vmatprep.subr.mxu0 0.0
    %1789 = vmatpush1.msra.mxu0 0.0
    %1790 = vmatprep.subr.mxu0 0.0
    %1791 = vmatpush1.msra.mxu0 0.0
    %1792 = vmatprep.subr.mxu0 0.0
    %1793 = vmatpush1.msra.mxu0 0.0
    %1794 = vmatprep.subr.mxu0 0.0
    %1795 = vmatpush1.msra.mxu0 0.0
    %1796 = vmatprep.subr.mxu0 0.0
    %1797 = vmatpush1.msra.mxu0 0.0
    %1798 = vmatprep.subr.mxu0 0.0
    %1799 = vmatpush1.msra.mxu0 0.0
    %1800 = vmatprep.subr.mxu0 0.0
    %1801 = vmatpush1.msra.mxu0 0.0
    %1802 = vmatprep.subr.mxu0 0.0
    %1803 = vmatpush1.msra.mxu0 0.0
    %1804 = vmatprep.subr.mxu0 0.0
    %1805 = vmatpush1.msra.mxu0 0.0
    %1806 = vmatprep.subr.mxu0 0.0
    %1807 = vmatpush1.msra.mxu0 0.0
    %1808 = vmatprep.subr.mxu0 0.0
    %1809 = vmatpush1.msra.mxu0 0.0
    %1810 = vmatprep.subr.mxu0 0.0
    %1811 = vmatpush1.msra.mxu0 0.0
    %1812 = vmatprep.subr.mxu0 0.0
    %1813 = vmatpush1.msra.mxu0 0.0
    %1814 = vmatprep.subr.mxu0 0.0
    %1815 = vmatpush1.msra.mxu0 0.0
    %1816 = vmatprep.subr.mxu0 0.0
    %1817 = vmatpush1.msra.mxu0 0.0
    %1818 = vmatprep.subr.mxu0 0.0
    %1819 = vmatpush1.msra.mxu0 0.0
    %1820 = vmatprep.subr.mxu0 0.0
    %1821 = vmatpush1.msra.mxu0 0.0
    %1822 = vmatprep.subr.mxu0 0.0
    %1823 = vmatpush1.msra.mxu0 0.0
    %1824 = vmatprep.subr.mxu0 0.0
    %1825 = vmatpush1.msra.mxu0 0.0
    %1826 = vmatprep.subr.mxu0 0.0
    %1827 = vmatpush1.msra.mxu0 0.0
    %1828 = vmatprep.subr.mxu0 0.0
    %1829 = vmatpush1.msra.mxu0 0.0
    %1830 = vmatprep.subr.mxu0 0.0
    %1831 = vmatpush1.msra.mxu0 0.0
    %1832 = vmatprep.subr.mxu0 0.0
    %1833 = vmatpush1.msra.mxu0 0.0
    %1834 = vmatprep.subr.mxu0 0.0
    %1835 = vmatpush1.msra.mxu0 0.0
    %1836 = vmatprep.mubr.f32.mxu0 0.0
    %1837 = vmatmul.mubr.f32.gmra.mrb[0].mxu0 %v1770
    %v1838 = vpop.f32.mrb[0].mxu0
    %v1839 = vadd.f32 %v56, %v1838
    %v1840 = vpop.f32.mrb[0].mxu0
    %1841 = vdwg.mxu0
    %v1842 = vxor.u32 %v1839, 2147483648
    %v1843 = vmul.f32 %v1842, 1.442695
    %v1844 = vpow.pop %v1843
    %v1845 = vadd.f32 %v1844, 1.0
    %v1846 = vrcp.pop %v1845
    %v1847 = vmul.f32 1.0, %v1846
    %v1848 = vmul.f32 %v1847, %v1273
    %1850 = vrot.lane.b32.xlu0 %v1689, 8
    %v1851 = vpop.permute.xlu0 %1850
    %v1853 = vmul.f32 %v1847, %v1851
    %1855 = vrot.lane.b32.xlu0 %v1853, 120
    %v1856 = vpop.permute.xlu0 %1855
    %v1858 = vadd.f32 %v1848, %v1856
    %s1859 = scalar_lea.vmem %s0, 12
    %v1860 = vld [vmem:[%s1859] sm:$0xf]
    %1862 = vrot.lane.b32.xlu0 %v1377, 96
    %v1863 = vpop.permute.xlu0 %1862
    %v1865 = vsel %vm111, %v1860, %v1863
    %v1867 = vsel %vm113, %v1865, 0
    %1869 = vmatprep.subr.mxu0 0.0
    %1870 = vmatpush1.msra.mxu0 %v18
    %1871 = vmatprep.subr.mxu0 0.0
    %1872 = vmatpush1.msra.mxu0 %v19
    %1873 = vmatprep.subr.mxu0 0.0
    %1874 = vmatpush1.msra.mxu0 %v20
    %1875 = vmatprep.subr.mxu0 0.0
    %1876 = vmatpush1.msra.mxu0 %v21
    %1877 = vmatprep.subr.mxu0 0.0
    %1878 = vmatpush1.msra.mxu0 %v22
    %1879 = vmatprep.subr.mxu0 0.0
    %1880 = vmatpush1.msra.mxu0 0.0
    %1881 = vmatprep.subr.mxu0 0.0
    %1882 = vmatpush1.msra.mxu0 0.0
    %1883 = vmatprep.subr.mxu0 0.0
    %1884 = vmatpush1.msra.mxu0 0.0
    %1885 = vmatprep.subr.mxu0 0.0
    %1886 = vmatpush1.msra.mxu0 0.0
    %1887 = vmatprep.subr.mxu0 0.0
    %1888 = vmatpush1.msra.mxu0 0.0
    %1889 = vmatprep.subr.mxu0 0.0
    %1890 = vmatpush1.msra.mxu0 0.0
    %1891 = vmatprep.subr.mxu0 0.0
    %1892 = vmatpush1.msra.mxu0 0.0
    %1893 = vmatprep.subr.mxu0 0.0
    %1894 = vmatpush1.msra.mxu0 0.0
    %1895 = vmatprep.subr.mxu0 0.0
    %1896 = vmatpush1.msra.mxu0 0.0
    %1897 = vmatprep.subr.mxu0 0.0
    %1898 = vmatpush1.msra.mxu0 0.0
    %1899 = vmatprep.subr.mxu0 0.0
    %1900 = vmatpush1.msra.mxu0 0.0
    %1901 = vmatprep.subr.mxu0 0.0
    %1902 = vmatpush1.msra.mxu0 0.0
    %1903 = vmatprep.subr.mxu0 0.0
    %1904 = vmatpush1.msra.mxu0 0.0
    %1905 = vmatprep.subr.mxu0 0.0
    %1906 = vmatpush1.msra.mxu0 0.0
    %1907 = vmatprep.subr.mxu0 0.0
    %1908 = vmatpush1.msra.mxu0 0.0
    %1909 = vmatprep.subr.mxu0 0.0
    %1910 = vmatpush1.msra.mxu0 0.0
    %1911 = vmatprep.subr.mxu0 0.0
    %1912 = vmatpush1.msra.mxu0 0.0
    %1913 = vmatprep.subr.mxu0 0.0
    %1914 = vmatpush1.msra.mxu0 0.0
    %1915 = vmatprep.subr.mxu0 0.0
    %1916 = vmatpush1.msra.mxu0 0.0
    %1917 = vmatprep.subr.mxu0 0.0
    %1918 = vmatpush1.msra.mxu0 0.0
    %1919 = vmatprep.subr.mxu0 0.0
    %1920 = vmatpush1.msra.mxu0 0.0
    %1921 = vmatprep.subr.mxu0 0.0
    %1922 = vmatpush1.msra.mxu0 0.0
    %1923 = vmatprep.subr.mxu0 0.0
    %1924 = vmatpush1.msra.mxu0 0.0
    %1925 = vmatprep.subr.mxu0 0.0
    %1926 = vmatpush1.msra.mxu0 0.0
    %1927 = vmatprep.subr.mxu0 0.0
    %1928 = vmatpush1.msra.mxu0 0.0
    %1929 = vmatprep.subr.mxu0 0.0
    %1930 = vmatpush1.msra.mxu0 0.0
    %1931 = vmatprep.subr.mxu0 0.0
    %1932 = vmatpush1.msra.mxu0 0.0
    %1933 = vmatprep.mubr.f32.mxu0 0.0
    %1934 = vmatmul.mubr.f32.gmra.mrb[0].mxu0 %v1867
    %v1935 = vpop.f32.mrb[0].mxu0
    %v1936 = vadd.f32 %v23, %v1935
    %v1937 = vpop.f32.mrb[0].mxu0
    %1938 = vdwg.mxu0
    %v1939 = vxor.u32 %v1936, 2147483648
    %v1940 = vmul.f32 %v1939, 1.442695
    %v1941 = vpow.pop %v1940
    %v1942 = vadd.f32 %v1941, 1.0
    %v1943 = vrcp.pop %v1942
    %v1944 = vmul.f32 1.0, %v1943
    %v1945 = vtanh.pop %v1936
    %v1946 = vmul.f32 %v1944, %v1371
    %1948 = vrot.lane.b32.xlu0 %v1945, 56
    %v1949 = vpop.permute.xlu0 %1948
    %v1951 = vmul.f32 %v1944, %v1949
    %1953 = vrot.lane.b32.xlu0 %v1951, 24
    %v1954 = vpop.permute.xlu0 %1953
    %v1956 = vadd.f32 %v1946, %v1954
    %v1957 = vtanh.pop %v1956
    %1959 = vrot.lane.b32.xlu0 %v1957, 24
    %v1960 = vpop.permute.xlu0 %1959
    %v1962 = vmul.f32 %v1944, %v1960
    %1964 = vrot.lane.b32.xlu0 %v1371, 104
    %v1965 = vpop.permute.xlu0 %1964
    %v1967 = vsel %vm211, %v1965, %v1956
    %v1969 = vsel %vm213, %v1967, 0
    %1971 = vmatprep.subr.mxu0 0.0
    %1972 = vmatpush1.msra.mxu0 %v24
    %1973 = vmatprep.subr.mxu0 0.0
    %1974 = vmatpush1.msra.mxu0 %v25
    %1975 = vmatprep.subr.mxu0 0.0
    %1976 = vmatpush1.msra.mxu0 %v26
    %1977 = vmatprep.subr.mxu0 0.0
    %1978 = vmatpush1.msra.mxu0 %v27
    %1979 = vmatprep.subr.mxu0 0.0
    %1980 = vmatpush1.msra.mxu0 %v28
    %1981 = vmatprep.subr.mxu0 0.0
    %1982 = vmatpush1.msra.mxu0 %v29
    %1983 = vmatprep.subr.mxu0 0.0
    %1984 = vmatpush1.msra.mxu0 0.0
    %1985 = vmatprep.subr.mxu0 0.0
    %1986 = vmatpush1.msra.mxu0 0.0
    %1987 = vmatprep.subr.mxu0 0.0
    %1988 = vmatpush1.msra.mxu0 0.0
    %1989 = vmatprep.subr.mxu0 0.0
    %1990 = vmatpush1.msra.mxu0 0.0
    %1991 = vmatprep.subr.mxu0 0.0
    %1992 = vmatpush1.msra.mxu0 0.0
    %1993 = vmatprep.subr.mxu0 0.0
    %1994 = vmatpush1.msra.mxu0 0.0
    %1995 = vmatprep.subr.mxu0 0.0
    %1996 = vmatpush1.msra.mxu0 0.0
    %1997 = vmatprep.subr.mxu0 0.0
    %1998 = vmatpush1.msra.mxu0 0.0
    %1999 = vmatprep.subr.mxu0 0.0
    %2000 = vmatpush1.msra.mxu0 0.0
    %2001 = vmatprep.subr.mxu0 0.0
    %2002 = vmatpush1.msra.mxu0 0.0
    %2003 = vmatprep.subr.mxu0 0.0
    %2004 = vmatpush1.msra.mxu0 0.0
    %2005 = vmatprep.subr.mxu0 0.0
    %2006 = vmatpush1.msra.mxu0 0.0
    %2007 = vmatprep.subr.mxu0 0.0
    %2008 = vmatpush1.msra.mxu0 0.0
    %2009 = vmatprep.subr.mxu0 0.0
    %2010 = vmatpush1.msra.mxu0 0.0
    %2011 = vmatprep.subr.mxu0 0.0
    %2012 = vmatpush1.msra.mxu0 0.0
    %2013 = vmatprep.subr.mxu0 0.0
    %2014 = vmatpush1.msra.mxu0 0.0
    %2015 = vmatprep.subr.mxu0 0.0
    %2016 = vmatpush1.msra.mxu0 0.0
    %2017 = vmatprep.subr.mxu0 0.0
    %2018 = vmatpush1.msra.mxu0 0.0
    %2019 = vmatprep.subr.mxu0 0.0
    %2020 = vmatpush1.msra.mxu0 0.0
    %2021 = vmatprep.subr.mxu0 0.0
    %2022 = vmatpush1.msra.mxu0 0.0
    %2023 = vmatprep.subr.mxu0 0.0
    %2024 = vmatpush1.msra.mxu0 0.0
    %2025 = vmatprep.subr.mxu0 0.0
    %2026 = vmatpush1.msra.mxu0 0.0
    %2027 = vmatprep.subr.mxu0 0.0
    %2028 = vmatpush1.msra.mxu0 0.0
    %2029 = vmatprep.subr.mxu0 0.0
    %2030 = vmatpush1.msra.mxu0 0.0
    %2031 = vmatprep.subr.mxu0 0.0
    %2032 = vmatpush1.msra.mxu0 0.0
    %2033 = vmatprep.subr.mxu0 0.0
    %2034 = vmatpush1.msra.mxu0 0.0
    %2035 = vmatprep.mubr.f32.mxu0 0.0
    %2036 = vmatmul.mubr.f32.gmra.mrb[0].mxu0 %v1969
    %v2037 = vpop.f32.mrb[0].mxu0
    %v2038 = vadd.f32 %v30, %v2037
    %v2039 = vpop.f32.mrb[0].mxu0
    %2040 = vdwg.mxu0
    %v2041 = vmax.f32 %v2038, 0.0
    %v2043 = vsel %vm111, %v2041, 0
    %2045 = vmatprep.subr.mxu0 0.0
    %2046 = vmatpush1.msra.mxu0 %v31
    %2047 = vmatprep.subr.mxu0 0.0
    %2048 = vmatpush1.msra.mxu0 %v32
    %2049 = vmatprep.subr.mxu0 0.0
    %2050 = vmatpush1.msra.mxu0 0.0
    %2051 = vmatprep.subr.mxu0 0.0
    %2052 = vmatpush1.msra.mxu0 0.0
    %2053 = vmatprep.subr.mxu0 0.0
    %2054 = vmatpush1.msra.mxu0 0.0
    %2055 = vmatprep.subr.mxu0 0.0
    %2056 = vmatpush1.msra.mxu0 0.0
    %2057 = vmatprep.subr.mxu0 0.0
    %2058 = vmatpush1.msra.mxu0 0.0
    %2059 = vmatprep.subr.mxu0 0.0
    %2060 = vmatpush1.msra.mxu0 0.0
    %2061 = vmatprep.subr.mxu0 0.0
    %2062 = vmatpush1.msra.mxu0 0.0
    %2063 = vmatprep.subr.mxu0 0.0
    %2064 = vmatpush1.msra.mxu0 0.0
    %2065 = vmatprep.subr.mxu0 0.0
    %2066 = vmatpush1.msra.mxu0 0.0
    %2067 = vmatprep.subr.mxu0 0.0
    %2068 = vmatpush1.msra.mxu0 0.0
    %2069 = vmatprep.subr.mxu0 0.0
    %2070 = vmatpush1.msra.mxu0 0.0
    %2071 = vmatprep.subr.mxu0 0.0
    %2072 = vmatpush1.msra.mxu0 0.0
    %2073 = vmatprep.subr.mxu0 0.0
    %2074 = vmatpush1.msra.mxu0 0.0
    %2075 = vmatprep.subr.mxu0 0.0
    %2076 = vmatpush1.msra.mxu0 0.0
    %2077 = vmatprep.subr.mxu0 0.0
    %2078 = vmatpush1.msra.mxu0 0.0
    %2079 = vmatprep.subr.mxu0 0.0
    %2080 = vmatpush1.msra.mxu0 0.0
    %2081 = vmatprep.subr.mxu0 0.0
    %2082 = vmatpush1.msra.mxu0 0.0
    %2083 = vmatprep.subr.mxu0 0.0
    %2084 = vmatpush1.msra.mxu0 0.0
    %2085 = vmatprep.subr.mxu0 0.0
    %2086 = vmatpush1.msra.mxu0 0.0
    %2087 = vmatprep.subr.mxu0 0.0
    %2088 = vmatpush1.msra.mxu0 0.0
    %2089 = vmatprep.subr.mxu0 0.0
    %2090 = vmatpush1.msra.mxu0 0.0
    %2091 = vmatprep.subr.mxu0 0.0
    %2092 = vmatpush1.msra.mxu0 0.0
    %2093 = vmatprep.subr.mxu0 0.0
    %2094 = vmatpush1.msra.mxu0 0.0
    %2095 = vmatprep.subr.mxu0 0.0
    %2096 = vmatpush1.msra.mxu0 0.0
    %2097 = vmatprep.subr.mxu0 0.0
    %2098 = vmatpush1.msra.mxu0 0.0
    %2099 = vmatprep.subr.mxu0 0.0
    %2100 = vmatpush1.msra.mxu0 0.0
    %2101 = vmatprep.subr.mxu0 0.0
    %2102 = vmatpush1.msra.mxu0 0.0
    %2103 = vmatprep.subr.mxu0 0.0
    %2104 = vmatpush1.msra.mxu0 0.0
    %2105 = vmatprep.subr.mxu0 0.0
    %2106 = vmatpush1.msra.mxu0 0.0
    %2107 = vmatprep.subr.mxu0 0.0
    %2108 = vmatpush1.msra.mxu0 0.0
    %2109 = vmatprep.mubr.f32.mxu0 0.0
    %2110 = vmatmul.mubr.f32.gmra.mrb[0].mxu0 %v2043
    %v2111 = vpop.f32.mrb[0].mxu0
    %v2112 = vadd.f32 %v33, %v2111
    %v2113 = vpop.f32.mrb[0].mxu0
    %2114 = vdwg.mxu0
    %v2115 = vsel %vm361, %v2112, -inf
    %2116 = vmax.xlane.f32.xlu0 %v2115
    %v2117 = vpop.xlane.xlu0 %2116
    %v2118 = vsub.f32 %v2112, %v2117
    %v2119 = vmul.f32 %v2118, 1.442695
    %v2120 = vpow.pop %v2119
    %v2121 = vsel %vm361, %v2120, 0.0
    %2122 = vadd.xlane.f32.xlu0 %v2121
    %v2123 = vpop.xlane.xlu0 %2122
    %v2124 = vrcp.pop %v2123
    %v2125 = vmul.f32 %v2120, %v2124
    %v2126 = vmul.f32 %v2125, %v1967
    %v2128 = vsel %vm213, %v2126, 0
    %2130 = vmatprep.subr.mxu0 0.0
    %2131 = vmatpush1.msra.mxu0 %v34
    %2132 = vmatprep.subr.mxu0 0.0
    %2133 = vmatpush1.msra.mxu0 %v35
    %2134 = vmatprep.subr.mxu0 0.0
    %2135 = vmatpush1.msra.mxu0 %v36
    %2136 = vmatprep.subr.mxu0 0.0
    %2137 = vmatpush1.msra.mxu0 %v37
    %2138 = vmatprep.subr.mxu0 0.0
    %2139 = vmatpush1.msra.mxu0 %v38
    %2140 = vmatprep.subr.mxu0 0.0
    %2141 = vmatpush1.msra.mxu0 %v39
    %2142 = vmatprep.subr.mxu0 0.0
    %2143 = vmatpush1.msra.mxu0 0.0
    %2144 = vmatprep.subr.mxu0 0.0
    %2145 = vmatpush1.msra.mxu0 0.0
    %2146 = vmatprep.subr.mxu0 0.0
    %2147 = vmatpush1.msra.mxu0 0.0
    %2148 = vmatprep.subr.mxu0 0.0
    %2149 = vmatpush1.msra.mxu0 0.0
    %2150 = vmatprep.subr.mxu0 0.0
    %2151 = vmatpush1.msra.mxu0 0.0
    %2152 = vmatprep.subr.mxu0 0.0
    %2153 = vmatpush1.msra.mxu0 0.0
    %2154 = vmatprep.subr.mxu0 0.0
    %2155 = vmatpush1.msra.mxu0 0.0
    %2156 = vmatprep.subr.mxu0 0.0
    %2157 = vmatpush1.msra.mxu0 0.0
    %2158 = vmatprep.subr.mxu0 0.0
    %2159 = vmatpush1.msra.mxu0 0.0
    %2160 = vmatprep.subr.mxu0 0.0
    %2161 = vmatpush1.msra.mxu0 0.0
    %2162 = vmatprep.subr.mxu0 0.0
    %2163 = vmatpush1.msra.mxu0 0.0
    %2164 = vmatprep.subr.mxu0 0.0
    %2165 = vmatpush1.msra.mxu0 0.0
    %2166 = vmatprep.subr.mxu0 0.0
    %2167 = vmatpush1.msra.mxu0 0.0
    %2168 = vmatprep.subr.mxu0 0.0
    %2169 = vmatpush1.msra.mxu0 0.0
    %2170 = vmatprep.subr.mxu0 0.0
    %2171 = vmatpush1.msra.mxu0 0.0
    %2172 = vmatprep.subr.mxu0 0.0
    %2173 = vmatpush1.msra.mxu0 0.0
    %2174 = vmatprep.subr.mxu0 0.0
    %2175 = vmatpush1.msra.mxu0 0.0
    %2176 = vmatprep.subr.mxu0 0.0
    %2177 = vmatpush1.msra.mxu0 0.0
    %2178 = vmatprep.subr.mxu0 0.0
    %2179 = vmatpush1.msra.mxu0 0.0
    %2180 = vmatprep.subr.mxu0 0.0
    %2181 = vmatpush1.msra.mxu0 0.0
    %2182 = vmatprep.subr.mxu0 0.0
    %2183 = vmatpush1.msra.mxu0 0.0
    %2184 = vmatprep.subr.mxu0 0.0
    %2185 = vmatpush1.msra.mxu0 0.0
    %2186 = vmatprep.subr.mxu0 0.0
    %2187 = vmatpush1.msra.mxu0 0.0
    %2188 = vmatprep.subr.mxu0 0.0
    %2189 = vmatpush1.msra.mxu0 0.0
    %2190 = vmatprep.subr.mxu0 0.0
    %2191 = vmatpush1.msra.mxu0 0.0
    %2192 = vmatprep.subr.mxu0 0.0
    %2193 = vmatpush1.msra.mxu0 0.0
    %2194 = vmatprep.mubr.f32.mxu0 0.0
    %2195 = vmatmul.mubr.f32.gmra.mrb[0].mxu0 %v2128
    %v2196 = vpop.f32.mrb[0].mxu0
    %v2197 = vadd.f32 %v40, %v2196
    %v2198 = vpop.f32.mrb[0].mxu0
    %2199 = vdwg.mxu0
    %v2200 = vmax.f32 %v2197, 0.0
    %v2202 = vsel %vm111, %v2200, 0
    %2204 = vmatprep.subr.mxu0 0.0
    %2205 = vmatpush1.msra.mxu0 %v41
    %2206 = vmatprep.subr.mxu0 0.0
    %2207 = vmatpush1.msra.mxu0 %v42
    %2208 = vmatprep.subr.mxu0 0.0
    %2209 = vmatpush1.msra.mxu0 0.0
    %2210 = vmatprep.subr.mxu0 0.0
    %2211 = vmatpush1.msra.mxu0 0.0
    %2212 = vmatprep.subr.mxu0 0.0
    %2213 = vmatpush1.msra.mxu0 0.0
    %2214 = vmatprep.subr.mxu0 0.0
    %2215 = vmatpush1.msra.mxu0 0.0
    %2216 = vmatprep.subr.mxu0 0.0
    %2217 = vmatpush1.msra.mxu0 0.0
    %2218 = vmatprep.subr.mxu0 0.0
    %2219 = vmatpush1.msra.mxu0 0.0
    %2220 = vmatprep.subr.mxu0 0.0
    %2221 = vmatpush1.msra.mxu0 0.0
    %2222 = vmatprep.subr.mxu0 0.0
    %2223 = vmatpush1.msra.mxu0 0.0
    %2224 = vmatprep.subr.mxu0 0.0
    %2225 = vmatpush1.msra.mxu0 0.0
    %2226 = vmatprep.subr.mxu0 0.0
    %2227 = vmatpush1.msra.mxu0 0.0
    %2228 = vmatprep.subr.mxu0 0.0
    %2229 = vmatpush1.msra.mxu0 0.0
    %2230 = vmatprep.subr.mxu0 0.0
    %2231 = vmatpush1.msra.mxu0 0.0
    %2232 = vmatprep.subr.mxu0 0.0
    %2233 = vmatpush1.msra.mxu0 0.0
    %2234 = vmatprep.subr.mxu0 0.0
    %2235 = vmatpush1.msra.mxu0 0.0
    %2236 = vmatprep.subr.mxu0 0.0
    %2237 = vmatpush1.msra.mxu0 0.0
    %2238 = vmatprep.subr.mxu0 0.0
    %2239 = vmatpush1.msra.mxu0 0.0
    %2240 = vmatprep.subr.mxu0 0.0
    %2241 = vmatpush1.msra.mxu0 0.0
    %2242 = vmatprep.subr.mxu0 0.0
    %2243 = vmatpush1.msra.mxu0 0.0
    %2244 = vmatprep.subr.mxu0 0.0
    %2245 = vmatpush1.msra.mxu0 0.0
    %2246 = vmatprep.subr.mxu0 0.0
    %2247 = vmatpush1.msra.mxu0 0.0
    %2248 = vmatprep.subr.mxu0 0.0
    %2249 = vmatpush1.msra.mxu0 0.0
    %2250 = vmatprep.subr.mxu0 0.0
    %2251 = vmatpush1.msra.mxu0 0.0
    %2252 = vmatprep.subr.mxu0 0.0
    %2253 = vmatpush1.msra.mxu0 0.0
    %2254 = vmatprep.subr.mxu0 0.0
    %2255 = vmatpush1.msra.mxu0 0.0
    %2256 = vmatprep.subr.mxu0 0.0
    %2257 = vmatpush1.msra.mxu0 0.0
    %2258 = vmatprep.subr.mxu0 0.0
    %2259 = vmatpush1.msra.mxu0 0.0
    %2260 = vmatprep.subr.mxu0 0.0
    %2261 = vmatpush1.msra.mxu0 0.0
    %2262 = vmatprep.subr.mxu0 0.0
    %2263 = vmatpush1.msra.mxu0 0.0
    %2264 = vmatprep.subr.mxu0 0.0
    %2265 = vmatpush1.msra.mxu0 0.0
    %2266 = vmatprep.subr.mxu0 0.0
    %2267 = vmatpush1.msra.mxu0 0.0
    %2268 = vmatprep.mubr.f32.mxu0 0.0
    %2269 = vmatmul.mubr.f32.gmra.mrb[0].mxu0 %v2202
    %v2270 = vpop.f32.mrb[0].mxu0
    %v2271 = vadd.f32 %v43, %v2270
    %v2272 = vpop.f32.mrb[0].mxu0
    %2273 = vdwg.mxu0
    %v2274 = vtanh.pop %v2271
    %2276 = vrot.lane.b32.xlu0 %v1858, 48
    %v2277 = vpop.permute.xlu0 %2276
    %v2279 = vsel %vm213, %v2126, %v2277
    %v2281 = vsel %vm523, %v2279, 0
    %2283 = vmatprep.subr.mxu0 0.0
    %2284 = vmatpush1.msra.mxu0 %v44
    %2285 = vmatprep.subr.mxu0 0.0
    %2286 = vmatpush1.msra.mxu0 %v45
    %2287 = vmatprep.subr.mxu0 0.0
    %2288 = vmatpush1.msra.mxu0 %v46
    %2289 = vmatprep.subr.mxu0 0.0
    %2290 = vmatpush1.msra.mxu0 %v47
    %2291 = vmatprep.subr.mxu0 0.0
    %2292 = vmatpush1.msra.mxu0 %v48
    %2293 = vmatprep.subr.mxu0 0.0
    %2294 = vmatpush1.msra.mxu0 %v49
    %2295 = vmatprep.subr.mxu0 0.0
    %2296 = vmatpush1.msra.mxu0 %v50
    %2297 = vmatprep.subr.mxu0 0.0
    %2298 = vmatpush1.msra.mxu0 0.0
    %2299 = vmatprep.subr.mxu0 0.0
    %2300 = vmatpush1.msra.mxu0 0.0
    %2301 = vmatprep.subr.mxu0 0.0
    %2302 = vmatpush1.msra.mxu0 0.0
    %2303 = vmatprep.subr.mxu0 0.0
    %2304 = vmatpush1.msra.mxu0 0.0
    %2305 = vmatprep.subr.mxu0 0.0
    %2306 = vmatpush1.msra.mxu0 0.0
    %2307 = vmatprep.subr.mxu0 0.0
    %2308 = vmatpush1.msra.mxu0 0.0
    %2309 = vmatprep.subr.mxu0 0.0
    %2310 = vmatpush1.msra.mxu0 0.0
    %2311 = vmatprep.subr.mxu0 0.0
    %2312 = vmatpush1.msra.mxu0 0.0
    %2313 = vmatprep.subr.mxu0 0.0
    %2314 = vmatpush1.msra.mxu0 0.0
    %2315 = vmatprep.subr.mxu0 0.0
    %2316 = vmatpush1.msra.mxu0 0.0
    %2317 = vmatprep.subr.mxu0 0.0
    %2318 = vmatpush1.msra.mxu0 0.0
    %2319 = vmatprep.subr.mxu0 0.0
    %2320 = vmatpush1.msra.mxu0 0.0
    %2321 = vmatprep.subr.mxu0 0.0
    %2322 = vmatpush1.msra.mxu0 0.0
    %2323 = vmatprep.subr.mxu0 0.0
    %2324 = vmatpush1.msra.mxu0 0.0
    %2325 = vmatprep.subr.mxu0 0.0
    %2326 = vmatpush1.msra.mxu0 0.0
    %2327 = vmatprep.subr.mxu0 0.0
    %2328 = vmatpush1.msra.mxu0 0.0
    %2329 = vmatprep.subr.mxu0 0.0
    %2330 = vmatpush1.msra.mxu0 0.0
    %2331 = vmatprep.subr.mxu0 0.0
    %2332 = vmatpush1.msra.mxu0 0.0
    %2333 = vmatprep.subr.mxu0 0.0
    %2334 = vmatpush1.msra.mxu0 0.0
    %2335 = vmatprep.subr.mxu0 0.0
    %2336 = vmatpush1.msra.mxu0 0.0
    %2337 = vmatprep.subr.mxu0 0.0
    %2338 = vmatpush1.msra.mxu0 0.0
    %2339 = vmatprep.subr.mxu0 0.0
    %2340 = vmatpush1.msra.mxu0 0.0
    %2341 = vmatprep.subr.mxu0 0.0
    %2342 = vmatpush1.msra.mxu0 0.0
    %2343 = vmatprep.subr.mxu0 0.0
    %2344 = vmatpush1.msra.mxu0 0.0
    %2345 = vmatprep.subr.mxu0 0.0
    %2346 = vmatpush1.msra.mxu0 0.0
    %2347 = vmatprep.mubr.f32.mxu0 0.0
    %2348 = vmatmul.mubr.f32.gmra.mrb[0].mxu0 %v2281
    %v2349 = vpop.f32.mrb[0].mxu0
    %v2350 = vadd.f32 %v51, %v2349
    %v2351 = vpop.f32.mrb[0].mxu0
    %2352 = vdwg.mxu0
    %v2353 = vmax.f32 %v2350, 0.0
    %v2355 = vsel %vm598, %v2353, 0
    %2357 = vmatprep.subr.mxu0 0.0
    %2358 = vmatpush1.msra.mxu0 %v52
    %2359 = vmatprep.subr.mxu0 0.0
    %2360 = vmatpush1.msra.mxu0 %v53
    %2361 = vmatprep.subr.mxu0 0.0
    %2362 = vmatpush1.msra.mxu0 %v54
    %2363 = vmatprep.subr.mxu0 0.0
    %2364 = vmatpush1.msra.mxu0 %v55
    %2365 = vmatprep.subr.mxu0 0.0
    %2366 = vmatpush1.msra.mxu0 0.0
    %2367 = vmatprep.subr.mxu0 0.0
    %2368 = vmatpush1.msra.mxu0 0.0
    %2369 = vmatprep.subr.mxu0 0.0
    %2370 = vmatpush1.msra.mxu0 0.0
    %2371 = vmatprep.subr.mxu0 0.0
    %2372 = vmatpush1.msra.mxu0 0.0
    %2373 = vmatprep.subr.mxu0 0.0
    %2374 = vmatpush1.msra.mxu0 0.0
    %2375 = vmatprep.subr.mxu0 0.0
    %2376 = vmatpush1.msra.mxu0 0.0
    %2377 = vmatprep.subr.mxu0 0.0
    %2378 = vmatpush1.msra.mxu0 0.0
    %2379 = vmatprep.subr.mxu0 0.0
    %2380 = vmatpush1.msra.mxu0 0.0
    %2381 = vmatprep.subr.mxu0 0.0
    %2382 = vmatpush1.msra.mxu0 0.0
    %2383 = vmatprep.subr.mxu0 0.0
    %2384 = vmatpush1.msra.mxu0 0.0
    %2385 = vmatprep.subr.mxu0 0.0
    %2386 = vmatpush1.msra.mxu0 0.0
    %2387 = vmatprep.subr.mxu0 0.0
    %2388 = vmatpush1.msra.mxu0 0.0
    %2389 = vmatprep.subr.mxu0 0.0
    %2390 = vmatpush1.msra.mxu0 0.0
    %2391 = vmatprep.subr.mxu0 0.0
    %2392 = vmatpush1.msra.mxu0 0.0
    %2393 = vmatprep.subr.mxu0 0.0
    %2394 = vmatpush1.msra.mxu0 0.0
    %2395 = vmatprep.subr.mxu0 0.0
    %2396 = vmatpush1.msra.mxu0 0.0
    %2397 = vmatprep.subr.mxu0 0.0
    %2398 = vmatpush1.msra.mxu0 0.0
    %2399 = vmatprep.subr.mxu0 0.0
    %2400 = vmatpush1.msra.mxu0 0.0
    %2401 = vmatprep.subr.mxu0 0.0
    %2402 = vmatpush1.msra.mxu0 0.0
    %2403 = vmatprep.subr.mxu0 0.0
    %2404 = vmatpush1.msra.mxu0 0.0
    %2405 = vmatprep.subr.mxu0 0.0
    %2406 = vmatpush1.msra.mxu0 0.0
    %2407 = vmatprep.subr.mxu0 0.0
    %2408 = vmatpush1.msra.mxu0 0.0
    %2409 = vmatprep.subr.mxu0 0.0
    %2410 = vmatpush1.msra.mxu0 0.0
    %2411 = vmatprep.subr.mxu0 0.0
    %2412 = vmatpush1.msra.mxu0 0.0
    %2413 = vmatprep.subr.mxu0 0.0
    %2414 = vmatpush1.msra.mxu0 0.0
    %2415 = vmatprep.subr.mxu0 0.0
    %2416 = vmatpush1.msra.mxu0 0.0
    %2417 = vmatprep.subr.mxu0 0.0
    %2418 = vmatpush1.msra.mxu0 0.0
    %2419 = vmatprep.subr.mxu0 0.0
    %2420 = vmatpush1.msra.mxu0 0.0
    %2421 = vmatprep.mubr.f32.mxu0 0.0
    %2422 = vmatmul.mubr.f32.gmra.mrb[0].mxu0 %v2355
    %v2423 = vpop.f32.mrb[0].mxu0
    %v2424 = vadd.f32 %v56, %v2423
    %v2425 = vpop.f32.mrb[0].mxu0
    %2426 = vdwg.mxu0
    %v2427 = vxor.u32 %v2424, 2147483648
    %v2428 = vmul.f32 %v2427, 1.442695
    %v2429 = vpow.pop %v2428
    %v2430 = vadd.f32 %v2429, 1.0
    %v2431 = vrcp.pop %v2430
    %v2432 = vmul.f32 1.0, %v2431
    %v2433 = vmul.f32 %v2432, %v1858
    %2435 = vrot.lane.b32.xlu0 %v2274, 8
    %v2436 = vpop.permute.xlu0 %2435
    %v2438 = vmul.f32 %v2432, %v2436
    %2440 = vrot.lane.b32.xlu0 %v2438, 120
    %v2441 = vpop.permute.xlu0 %2440
    %v2443 = vadd.f32 %v2433, %v2441
    %s2444 = scalar_lea.vmem %s0, 16
    %v2445 = vld [vmem:[%s2444] sm:$0xf]
    %2447 = vrot.lane.b32.xlu0 %v1962, 96
    %v2448 = vpop.permute.xlu0 %2447
    %v2450 = vsel %vm111, %v2445, %v2448
    %v2452 = vsel %vm113, %v2450, 0
    %2454 = vmatprep.subr.mxu0 0.0
    %2455 = vmatpush1.msra.mxu0 %v18
    %2456 = vmatprep.subr.mxu0 0.0
    %2457 = vmatpush1.msra.mxu0 %v19
    %2458 = vmatprep.subr.mxu0 0.0
    %2459 = vmatpush1.msra.mxu0 %v20
    %2460 = vmatprep.subr.mxu0 0.0
    %2461 = vmatpush1.msra.mxu0 %v21
    %2462 = vmatprep.subr.mxu0 0.0
    %2463 = vmatpush1.msra.mxu0 %v22
    %2464 = vmatprep.subr.mxu0 0.0
    %2465 = vmatpush1.msra.mxu0 0.0
    %2466 = vmatprep.subr.mxu0 0.0
    %2467 = vmatpush1.msra.mxu0 0.0
    %2468 = vmatprep.subr.mxu0 0.0
    %2469 = vmatpush1.msra.mxu0 0.0
    %2470 = vmatprep.subr.mxu0 0.0
    %2471 = vmatpush1.msra.mxu0 0.0
    %2472 = vmatprep.subr.mxu0 0.0
    %2473 = vmatpush1.msra.mxu0 0.0
    %2474 = vmatprep.subr.mxu0 0.0
    %2475 = vmatpush1.msra.mxu0 0.0
    %2476 = vmatprep.subr.mxu0 0.0
    %2477 = vmatpush1.msra.mxu0 0.0
    %2478 = vmatprep.subr.mxu0 0.0
    %2479 = vmatpush1.msra.mxu0 0.0
    %2480 = vmatprep.subr.mxu0 0.0
    %2481 = vmatpush1.msra.mxu0 0.0
    %2482 = vmatprep.subr.mxu0 0.0
    %2483 = vmatpush1.msra.mxu0 0.0
    %2484 = vmatprep.subr.mxu0 0.0
    %2485 = vmatpush1.msra.mxu0 0.0
    %2486 = vmatprep.subr.mxu0 0.0
    %2487 = vmatpush1.msra.mxu0 0.0
    %2488 = vmatprep.subr.mxu0 0.0
    %2489 = vmatpush1.msra.mxu0 0.0
    %2490 = vmatprep.subr.mxu0 0.0
    %2491 = vmatpush1.msra.mxu0 0.0
    %2492 = vmatprep.subr.mxu0 0.0
    %2493 = vmatpush1.msra.mxu0 0.0
    %2494 = vmatprep.subr.mxu0 0.0
    %2495 = vmatpush1.msra.mxu0 0.0
    %2496 = vmatprep.subr.mxu0 0.0
    %2497 = vmatpush1.msra.mxu0 0.0
    %2498 = vmatprep.subr.mxu0 0.0
    %2499 = vmatpush1.msra.mxu0 0.0
    %2500 = vmatprep.subr.mxu0 0.0
    %2501 = vmatpush1.msra.mxu0 0.0
    %2502 = vmatprep.subr.mxu0 0.0
    %2503 = vmatpush1.msra.mxu0 0.0
    %2504 = vmatprep.subr.mxu0 0.0
    %2505 = vmatpush1.msra.mxu0 0.0
    %2506 = vmatprep.subr.mxu0 0.0
    %2507 = vmatpush1.msra.mxu0 0.0
    %2508 = vmatprep.subr.mxu0 0.0
    %2509 = vmatpush1.msra.mxu0 0.0
    %2510 = vmatprep.subr.mxu0 0.0
    %2511 = vmatpush1.msra.mxu0 0.0
    %2512 = vmatprep.subr.mxu0 0.0
    %2513 = vmatpush1.msra.mxu0 0.0
    %2514 = vmatprep.subr.mxu0 0.0
    %2515 = vmatpush1.msra.mxu0 0.0
    %2516 = vmatprep.subr.mxu0 0.0
    %2517 = vmatpush1.msra.mxu0 0.0
    %2518 = vmatprep.mubr.f32.mxu0 0.0
    %2519 = vmatmul.mubr.f32.gmra.mrb[0].mxu0 %v2452
    %v2520 = vpop.f32.mrb[0].mxu0
    %v2521 = vadd.f32 %v23, %v2520
    %v2522 = vpop.f32.mrb[0].mxu0
    %2523 = vdwg.mxu0
    %v2524 = vxor.u32 %v2521, 2147483648
    %v2525 = vmul.f32 %v2524, 1.442695
    %v2526 = vpow.pop %v2525
    %v2527 = vadd.f32 %v2526, 1.0
    %v2528 = vrcp.pop %v2527
    %v2529 = vmul.f32 1.0, %v2528
    %v2530 = vtanh.pop %v2521
    %v2531 = vmul.f32 %v2529, %v1956
    %2533 = vrot.lane.b32.xlu0 %v2530, 56
    %v2534 = vpop.permute.xlu0 %2533
    %v2536 = vmul.f32 %v2529, %v2534
    %2538 = vrot.lane.b32.xlu0 %v2536, 24
    %v2539 = vpop.permute.xlu0 %2538
    %v2541 = vadd.f32 %v2531, %v2539
    %v2542 = vtanh.pop %v2541
    %2544 = vrot.lane.b32.xlu0 %v2542, 24
    %v2545 = vpop.permute.xlu0 %2544
    %v2547 = vmul.f32 %v2529, %v2545
    %2549 = vrot.lane.b32.xlu0 %v1956, 104
    %v2550 = vpop.permute.xlu0 %2549
    %v2552 = vsel %vm211, %v2550, %v2541
    %v2554 = vsel %vm213, %v2552, 0
    %2556 = vmatprep.subr.mxu0 0.0
    %2557 = vmatpush1.msra.mxu0 %v24
    %2558 = vmatprep.subr.mxu0 0.0
    %2559 = vmatpush1.msra.mxu0 %v25
    %2560 = vmatprep.subr.mxu0 0.0
    %2561 = vmatpush1.msra.mxu0 %v26
    %2562 = vmatprep.subr.mxu0 0.0
    %2563 = vmatpush1.msra.mxu0 %v27
    %2564 = vmatprep.subr.mxu0 0.0
    %2565 = vmatpush1.msra.mxu0 %v28
    %2566 = vmatprep.subr.mxu0 0.0
    %2567 = vmatpush1.msra.mxu0 %v29
    %2568 = vmatprep.subr.mxu0 0.0
    %2569 = vmatpush1.msra.mxu0 0.0
    %2570 = vmatprep.subr.mxu0 0.0
    %2571 = vmatpush1.msra.mxu0 0.0
    %2572 = vmatprep.subr.mxu0 0.0
    %2573 = vmatpush1.msra.mxu0 0.0
    %2574 = vmatprep.subr.mxu0 0.0
    %2575 = vmatpush1.msra.mxu0 0.0
    %2576 = vmatprep.subr.mxu0 0.0
    %2577 = vmatpush1.msra.mxu0 0.0
    %2578 = vmatprep.subr.mxu0 0.0
    %2579 = vmatpush1.msra.mxu0 0.0
    %2580 = vmatprep.subr.mxu0 0.0
    %2581 = vmatpush1.msra.mxu0 0.0
    %2582 = vmatprep.subr.mxu0 0.0
    %2583 = vmatpush1.msra.mxu0 0.0
    %2584 = vmatprep.subr.mxu0 0.0
    %2585 = vmatpush1.msra.mxu0 0.0
    %2586 = vmatprep.subr.mxu0 0.0
    %2587 = vmatpush1.msra.mxu0 0.0
    %2588 = vmatprep.subr.mxu0 0.0
    %2589 = vmatpush1.msra.mxu0 0.0
    %2590 = vmatprep.subr.mxu0 0.0
    %2591 = vmatpush1.msra.mxu0 0.0
    %2592 = vmatprep.subr.mxu0 0.0
    %2593 = vmatpush1.msra.mxu0 0.0
    %2594 = vmatprep.subr.mxu0 0.0
    %2595 = vmatpush1.msra.mxu0 0.0
    %2596 = vmatprep.subr.mxu0 0.0
    %2597 = vmatpush1.msra.mxu0 0.0
    %2598 = vmatprep.subr.mxu0 0.0
    %2599 = vmatpush1.msra.mxu0 0.0
    %2600 = vmatprep.subr.mxu0 0.0
    %2601 = vmatpush1.msra.mxu0 0.0
    %2602 = vmatprep.subr.mxu0 0.0
    %2603 = vmatpush1.msra.mxu0 0.0
    %2604 = vmatprep.subr.mxu0 0.0
    %2605 = vmatpush1.msra.mxu0 0.0
    %2606 = vmatprep.subr.mxu0 0.0
    %2607 = vmatpush1.msra.mxu0 0.0
    %2608 = vmatprep.subr.mxu0 0.0
    %2609 = vmatpush1.msra.mxu0 0.0
    %2610 = vmatprep.subr.mxu0 0.0
    %2611 = vmatpush1.msra.mxu0 0.0
    %2612 = vmatprep.subr.mxu0 0.0
    %2613 = vmatpush1.msra.mxu0 0.0
    %2614 = vmatprep.subr.mxu0 0.0
    %2615 = vmatpush1.msra.mxu0 0.0
    %2616 = vmatprep.subr.mxu0 0.0
    %2617 = vmatpush1.msra.mxu0 0.0
    %2618 = vmatprep.subr.mxu0 0.0
    %2619 = vmatpush1.msra.mxu0 0.0
    %2620 = vmatprep.mubr.f32.mxu0 0.0
    %2621 = vmatmul.mubr.f32.gmra.mrb[0].mxu0 %v2554
    %v2622 = vpop.f32.mrb[0].mxu0
    %v2623 = vadd.f32 %v30, %v2622
    %v2624 = vpop.f32.mrb[0].mxu0
    %2625 = vdwg.mxu0
    %v2626 = vmax.f32 %v2623, 0.0
    %v2628 = vsel %vm111, %v2626, 0
    %2630 = vmatprep.subr.mxu0 0.0
    %2631 = vmatpush1.msra.mxu0 %v31
    %2632 = vmatprep.subr.mxu0 0.0
    %2633 = vmatpush1.msra.mxu0 %v32
    %2634 = vmatprep.subr.mxu0 0.0
    %2635 = vmatpush1.msra.mxu0 0.0
    %2636 = vmatprep.subr.mxu0 0.0
    %2637 = vmatpush1.msra.mxu0 0.0
    %2638 = vmatprep.subr.mxu0 0.0
    %2639 = vmatpush1.msra.mxu0 0.0
    %2640 = vmatprep.subr.mxu0 0.0
    %2641 = vmatpush1.msra.mxu0 0.0
    %2642 = vmatprep.subr.mxu0 0.0
    %2643 = vmatpush1.msra.mxu0 0.0
    %2644 = vmatprep.subr.mxu0 0.0
    %2645 = vmatpush1.msra.mxu0 0.0
    %2646 = vmatprep.subr.mxu0 0.0
    %2647 = vmatpush1.msra.mxu0 0.0
    %2648 = vmatprep.subr.mxu0 0.0
    %2649 = vmatpush1.msra.mxu0 0.0
    %2650 = vmatprep.subr.mxu0 0.0
    %2651 = vmatpush1.msra.mxu0 0.0
    %2652 = vmatprep.subr.mxu0 0.0
    %2653 = vmatpush1.msra.mxu0 0.0
    %2654 = vmatprep.subr.mxu0 0.0
    %2655 = vmatpush1.msra.mxu0 0.0
    %2656 = vmatprep.subr.mxu0 0.0
    %2657 = vmatpush1.msra.mxu0 0.0
    %2658 = vmatprep.subr.mxu0 0.0
    %2659 = vmatpush1.msra.mxu0 0.0
    %2660 = vmatprep.subr.mxu0 0.0
    %2661 = vmatpush1.msra.mxu0 0.0
    %2662 = vmatprep.subr.mxu0 0.0
    %2663 = vmatpush1.msra.mxu0 0.0
    %2664 = vmatprep.subr.mxu0 0.0
    %2665 = vmatpush1.msra.mxu0 0.0
    %2666 = vmatprep.subr.mxu0 0.0
    %2667 = vmatpush1.msra.mxu0 0.0
    %2668 = vmatprep.subr.mxu0 0.0
    %2669 = vmatpush1.msra.mxu0 0.0
    %2670 = vmatprep.subr.mxu0 0.0
    %2671 = vmatpush1.msra.mxu0 0.0
    %2672 = vmatprep.subr.mxu0 0.0
    %2673 = vmatpush1.msra.mxu0 0.0
    %2674 = vmatprep.subr.mxu0 0.0
    %2675 = vmatpush1.msra.mxu0 0.0
    %2676 = vmatprep.subr.mxu0 0.0
    %2677 = vmatpush1.msra.mxu0 0.0
    %2678 = vmatprep.subr.mxu0 0.0
    %2679 = vmatpush1.msra.mxu0 0.0
    %2680 = vmatprep.subr.mxu0 0.0
    %2681 = vmatpush1.msra.mxu0 0.0
    %2682 = vmatprep.subr.mxu0 0.0
    %2683 = vmatpush1.msra.mxu0 0.0
    %2684 = vmatprep.subr.mxu0 0.0
    %2685 = vmatpush1.msra.mxu0 0.0
    %2686 = vmatprep.subr.mxu0 0.0
    %2687 = vmatpush1.msra.mxu0 0.0
    %2688 = vmatprep.subr.mxu0 0.0
    %2689 = vmatpush1.msra.mxu0 0.0
    %2690 = vmatprep.subr.mxu0 0.0
    %2691 = vmatpush1.msra.mxu0 0.0
    %2692 = vmatprep.subr.mxu0 0.0
    %2693 = vmatpush1.msra.mxu0 0.0
    %2694 = vmatprep.mubr.f32.mxu0 0.0
    %2695 = vmatmul.mubr.f32.gmra.mrb[0].mxu0 %v2628
    %v2696 = vpop.f32.mrb[0].mxu0
    %v2697 = vadd.f32 %v33, %v2696
    %v2698 = vpop.f32.mrb[0].mxu0
    %2699 = vdwg.mxu0
    %v2700 = vsel %vm361, %v2697, -inf
    %2701 = vmax.xlane.f32.xlu0 %v2700
    %v2702 = vpop.xlane.xlu0 %2701
    %v2703 = vsub.f32 %v2697, %v2702
    %v2704 = vmul.f32 %v2703, 1.442695
    %v2705 = vpow.pop %v2704
    %v2706 = vsel %vm361, %v2705, 0.0
    %2707 = vadd.xlane.f32.xlu0 %v2706
    %v2708 = vpop.xlane.xlu0 %2707
    %v2709 = vrcp.pop %v2708
    %v2710 = vmul.f32 %v2705, %v2709
    %v2711 = vmul.f32 %v2710, %v2552
    %v2713 = vsel %vm213, %v2711, 0
    %2715 = vmatprep.subr.mxu0 0.0
    %2716 = vmatpush1.msra.mxu0 %v34
    %2717 = vmatprep.subr.mxu0 0.0
    %2718 = vmatpush1.msra.mxu0 %v35
    %2719 = vmatprep.subr.mxu0 0.0
    %2720 = vmatpush1.msra.mxu0 %v36
    %2721 = vmatprep.subr.mxu0 0.0
    %2722 = vmatpush1.msra.mxu0 %v37
    %2723 = vmatprep.subr.mxu0 0.0
    %2724 = vmatpush1.msra.mxu0 %v38
    %2725 = vmatprep.subr.mxu0 0.0
    %2726 = vmatpush1.msra.mxu0 %v39
    %2727 = vmatprep.subr.mxu0 0.0
    %2728 = vmatpush1.msra.mxu0 0.0
    %2729 = vmatprep.subr.mxu0 0.0
    %2730 = vmatpush1.msra.mxu0 0.0
    %2731 = vmatprep.subr.mxu0 0.0
    %2732 = vmatpush1.msra.mxu0 0.0
    %2733 = vmatprep.subr.mxu0 0.0
    %2734 = vmatpush1.msra.mxu0 0.0
    %2735 = vmatprep.subr.mxu0 0.0
    %2736 = vmatpush1.msra.mxu0 0.0
    %2737 = vmatprep.subr.mxu0 0.0
    %2738 = vmatpush1.msra.mxu0 0.0
    %2739 = vmatprep.subr.mxu0 0.0
    %2740 = vmatpush1.msra.mxu0 0.0
    %2741 = vmatprep.subr.mxu0 0.0
    %2742 = vmatpush1.msra.mxu0 0.0
    %2743 = vmatprep.subr.mxu0 0.0
    %2744 = vmatpush1.msra.mxu0 0.0
    %2745 = vmatprep.subr.mxu0 0.0
    %2746 = vmatpush1.msra.mxu0 0.0
    %2747 = vmatprep.subr.mxu0 0.0
    %2748 = vmatpush1.msra.mxu0 0.0
    %2749 = vmatprep.subr.mxu0 0.0
    %2750 = vmatpush1.msra.mxu0 0.0
    %2751 = vmatprep.subr.mxu0 0.0
    %2752 = vmatpush1.msra.mxu0 0.0
    %2753 = vmatprep.subr.mxu0 0.0
    %2754 = vmatpush1.msra.mxu0 0.0
    %2755 = vmatprep.subr.mxu0 0.0
    %2756 = vmatpush1.msra.mxu0 0.0
    %2757 = vmatprep.subr.mxu0 0.0
    %2758 = vmatpush1.msra.mxu0 0.0
    %2759 = vmatprep.subr.mxu0 0.0
    %2760 = vmatpush1.msra.mxu0 0.0
    %2761 = vmatprep.subr.mxu0 0.0
    %2762 = vmatpush1.msra.mxu0 0.0
    %2763 = vmatprep.subr.mxu0 0.0
    %2764 = vmatpush1.msra.mxu0 0.0
    %2765 = vmatprep.subr.mxu0 0.0
    %2766 = vmatpush1.msra.mxu0 0.0
    %2767 = vmatprep.subr.mxu0 0.0
    %2768 = vmatpush1.msra.mxu0 0.0
    %2769 = vmatprep.subr.mxu0 0.0
    %2770 = vmatpush1.msra.mxu0 0.0
    %2771 = vmatprep.subr.mxu0 0.0
    %2772 = vmatpush1.msra.mxu0 0.0
    %2773 = vmatprep.subr.mxu0 0.0
    %2774 = vmatpush1.msra.mxu0 0.0
    %2775 = vmatprep.subr.mxu0 0.0
    %2776 = vmatpush1.msra.mxu0 0.0
    %2777 = vmatprep.subr.mxu0 0.0
    %2778 = vmatpush1.msra.mxu0 0.0
    %2779 = vmatprep.mubr.f32.mxu0 0.0
    %2780 = vmatmul.mubr.f32.gmra.mrb[0].mxu0 %v2713
    %v2781 = vpop.f32.mrb[0].mxu0
    %v2782 = vadd.f32 %v40, %v2781
    %v2783 = vpop.f32.mrb[0].mxu0
    %2784 = vdwg.mxu0
    %v2785 = vmax.f32 %v2782, 0.0
    %v2787 = vsel %vm111, %v2785, 0
    %2789 = vmatprep.subr.mxu0 0.0
    %2790 = vmatpush1.msra.mxu0 %v41
    %2791 = vmatprep.subr.mxu0 0.0
    %2792 = vmatpush1.msra.mxu0 %v42
    %2793 = vmatprep.subr.mxu0 0.0
    %2794 = vmatpush1.msra.mxu0 0.0
    %2795 = vmatprep.subr.mxu0 0.0
    %2796 = vmatpush1.msra.mxu0 0.0
    %2797 = vmatprep.subr.mxu0 0.0
    %2798 = vmatpush1.msra.mxu0 0.0
    %2799 = vmatprep.subr.mxu0 0.0
    %2800 = vmatpush1.msra.mxu0 0.0
    %2801 = vmatprep.subr.mxu0 0.0
    %2802 = vmatpush1.msra.mxu0 0.0
    %2803 = vmatprep.subr.mxu0 0.0
    %2804 = vmatpush1.msra.mxu0 0.0
    %2805 = vmatprep.subr.mxu0 0.0
    %2806 = vmatpush1.msra.mxu0 0.0
    %2807 = vmatprep.subr.mxu0 0.0
    %2808 = vmatpush1.msra.mxu0 0.0
    %2809 = vmatprep.subr.mxu0 0.0
    %2810 = vmatpush1.msra.mxu0 0.0
    %2811 = vmatprep.subr.mxu0 0.0
    %2812 = vmatpush1.msra.mxu0 0.0
    %2813 = vmatprep.subr.mxu0 0.0
    %2814 = vmatpush1.msra.mxu0 0.0
    %2815 = vmatprep.subr.mxu0 0.0
    %2816 = vmatpush1.msra.mxu0 0.0
    %2817 = vmatprep.subr.mxu0 0.0
    %2818 = vmatpush1.msra.mxu0 0.0
    %2819 = vmatprep.subr.mxu0 0.0
    %2820 = vmatpush1.msra.mxu0 0.0
    %2821 = vmatprep.subr.mxu0 0.0
    %2822 = vmatpush1.msra.mxu0 0.0
    %2823 = vmatprep.subr.mxu0 0.0
    %2824 = vmatpush1.msra.mxu0 0.0
    %2825 = vmatprep.subr.mxu0 0.0
    %2826 = vmatpush1.msra.mxu0 0.0
    %2827 = vmatprep.subr.mxu0 0.0
    %2828 = vmatpush1.msra.mxu0 0.0
    %2829 = vmatprep.subr.mxu0 0.0
    %2830 = vmatpush1.msra.mxu0 0.0
    %2831 = vmatprep.subr.mxu0 0.0
    %2832 = vmatpush1.msra.mxu0 0.0
    %2833 = vmatprep.subr.mxu0 0.0
    %2834 = vmatpush1.msra.mxu0 0.0
    %2835 = vmatprep.subr.mxu0 0.0
    %2836 = vmatpush1.msra.mxu0 0.0
    %2837 = vmatprep.subr.mxu0 0.0
    %2838 = vmatpush1.msra.mxu0 0.0
    %2839 = vmatprep.subr.mxu0 0.0
    %2840 = vmatpush1.msra.mxu0 0.0
    %2841 = vmatprep.subr.mxu0 0.0
    %2842 = vmatpush1.msra.mxu0 0.0
    %2843 = vmatprep.subr.mxu0 0.0
    %2844 = vmatpush1.msra.mxu0 0.0
    %2845 = vmatprep.subr.mxu0 0.0
    %2846 = vmatpush1.msra.mxu0 0.0
    %2847 = vmatprep.subr.mxu0 0.0
    %2848 = vmatpush1.msra.mxu0 0.0
    %2849 = vmatprep.subr.mxu0 0.0
    %2850 = vmatpush1.msra.mxu0 0.0
    %2851 = vmatprep.subr.mxu0 0.0
    %2852 = vmatpush1.msra.mxu0 0.0
    %2853 = vmatprep.mubr.f32.mxu0 0.0
    %2854 = vmatmul.mubr.f32.gmra.mrb[0].mxu0 %v2787
    %v2855 = vpop.f32.mrb[0].mxu0
    %v2856 = vadd.f32 %v43, %v2855
    %v2857 = vpop.f32.mrb[0].mxu0
    %2858 = vdwg.mxu0
    %v2859 = vtanh.pop %v2856
    %2861 = vrot.lane.b32.xlu0 %v2443, 48
    %v2862 = vpop.permute.xlu0 %2861
    %v2864 = vsel %vm213, %v2711, %v2862
    %v2866 = vsel %vm523, %v2864, 0
    %2868 = vmatprep.subr.mxu0 0.0
    %2869 = vmatpush1.msra.mxu0 %v44
    %2870 = vmatprep.subr.mxu0 0.0
    %2871 = vmatpush1.msra.mxu0 %v45
    %2872 = vmatprep.subr.mxu0 0.0
    %2873 = vmatpush1.msra.mxu0 %v46
    %2874 = vmatprep.subr.mxu0 0.0
    %2875 = vmatpush1.msra.mxu0 %v47
    %2876 = vmatprep.subr.mxu0 0.0
    %2877 = vmatpush1.msra.mxu0 %v48
    %2878 = vmatprep.subr.mxu0 0.0
    %2879 = vmatpush1.msra.mxu0 %v49
    %2880 = vmatprep.subr.mxu0 0.0
    %2881 = vmatpush1.msra.mxu0 %v50
    %2882 = vmatprep.subr.mxu0 0.0
    %2883 = vmatpush1.msra.mxu0 0.0
    %2884 = vmatprep.subr.mxu0 0.0
    %2885 = vmatpush1.msra.mxu0 0.0
    %2886 = vmatprep.subr.mxu0 0.0
    %2887 = vmatpush1.msra.mxu0 0.0
    %2888 = vmatprep.subr.mxu0 0.0
    %2889 = vmatpush1.msra.mxu0 0.0
    %2890 = vmatprep.subr.mxu0 0.0
    %2891 = vmatpush1.msra.mxu0 0.0
    %2892 = vmatprep.subr.mxu0 0.0
    %2893 = vmatpush1.msra.mxu0 0.0
    %2894 = vmatprep.subr.mxu0 0.0
    %2895 = vmatpush1.msra.mxu0 0.0
    %2896 = vmatprep.subr.mxu0 0.0
    %2897 = vmatpush1.msra.mxu0 0.0
    %2898 = vmatprep.subr.mxu0 0.0
    %2899 = vmatpush1.msra.mxu0 0.0
    %2900 = vmatprep.subr.mxu0 0.0
    %2901 = vmatpush1.msra.mxu0 0.0
    %2902 = vmatprep.subr.mxu0 0.0
    %2903 = vmatpush1.msra.mxu0 0.0
    %2904 = vmatprep.subr.mxu0 0.0
    %2905 = vmatpush1.msra.mxu0 0.0
    %2906 = vmatprep.subr.mxu0 0.0
    %2907 = vmatpush1.msra.mxu0 0.0
    %2908 = vmatprep.subr.mxu0 0.0
    %2909 = vmatpush1.msra.mxu0 0.0
    %2910 = vmatprep.subr.mxu0 0.0
    %2911 = vmatpush1.msra.mxu0 0.0
    %2912 = vmatprep.subr.mxu0 0.0
    %2913 = vmatpush1.msra.mxu0 0.0
    %2914 = vmatprep.subr.mxu0 0.0
    %2915 = vmatpush1.msra.mxu0 0.0
    %2916 = vmatprep.subr.mxu0 0.0
    %2917 = vmatpush1.msra.mxu0 0.0
    %2918 = vmatprep.subr.mxu0 0.0
    %2919 = vmatpush1.msra.mxu0 0.0
    %2920 = vmatprep.subr.mxu0 0.0
    %2921 = vmatpush1.msra.mxu0 0.0
    %2922 = vmatprep.subr.mxu0 0.0
    %2923 = vmatpush1.msra.mxu0 0.0
    %2924 = vmatprep.subr.mxu0 0.0
    %2925 = vmatpush1.msra.mxu0 0.0
    %2926 = vmatprep.subr.mxu0 0.0
    %2927 = vmatpush1.msra.mxu0 0.0
    %2928 = vmatprep.subr.mxu0 0.0
    %2929 = vmatpush1.msra.mxu0 0.0
    %2930 = vmatprep.subr.mxu0 0.0
    %2931 = vmatpush1.msra.mxu0 0.0
    %2932 = vmatprep.mubr.f32.mxu0 0.0
    %2933 = vmatmul.mubr.f32.gmra.mrb[0].mxu0 %v2866
    %v2934 = vpop.f32.mrb[0].mxu0
    %v2935 = vadd.f32 %v51, %v2934
    %v2936 = vpop.f32.mrb[0].mxu0
    %2937 = vdwg.mxu0
    %v2938 = vmax.f32 %v2935, 0.0
    %v2940 = vsel %vm598, %v2938, 0
    %2942 = vmatprep.subr.mxu0 0.0
    %2943 = vmatpush1.msra.mxu0 %v52
    %2944 = vmatprep.subr.mxu0 0.0
    %2945 = vmatpush1.msra.mxu0 %v53
    %2946 = vmatprep.subr.mxu0 0.0
    %2947 = vmatpush1.msra.mxu0 %v54
    %2948 = vmatprep.subr.mxu0 0.0
    %2949 = vmatpush1.msra.mxu0 %v55
    %2950 = vmatprep.subr.mxu0 0.0
    %2951 = vmatpush1.msra.mxu0 0.0
    %2952 = vmatprep.subr.mxu0 0.0
    %2953 = vmatpush1.msra.mxu0 0.0
    %2954 = vmatprep.subr.mxu0 0.0
    %2955 = vmatpush1.msra.mxu0 0.0
    %2956 = vmatprep.subr.mxu0 0.0
    %2957 = vmatpush1.msra.mxu0 0.0
    %2958 = vmatprep.subr.mxu0 0.0
    %2959 = vmatpush1.msra.mxu0 0.0
    %2960 = vmatprep.subr.mxu0 0.0
    %2961 = vmatpush1.msra.mxu0 0.0
    %2962 = vmatprep.subr.mxu0 0.0
    %2963 = vmatpush1.msra.mxu0 0.0
    %2964 = vmatprep.subr.mxu0 0.0
    %2965 = vmatpush1.msra.mxu0 0.0
    %2966 = vmatprep.subr.mxu0 0.0
    %2967 = vmatpush1.msra.mxu0 0.0
    %2968 = vmatprep.subr.mxu0 0.0
    %2969 = vmatpush1.msra.mxu0 0.0
    %2970 = vmatprep.subr.mxu0 0.0
    %2971 = vmatpush1.msra.mxu0 0.0
    %2972 = vmatprep.subr.mxu0 0.0
    %2973 = vmatpush1.msra.mxu0 0.0
    %2974 = vmatprep.subr.mxu0 0.0
    %2975 = vmatpush1.msra.mxu0 0.0
    %2976 = vmatprep.subr.mxu0 0.0
    %2977 = vmatpush1.msra.mxu0 0.0
    %2978 = vmatprep.subr.mxu0 0.0
    %2979 = vmatpush1.msra.mxu0 0.0
    %2980 = vmatprep.subr.mxu0 0.0
    %2981 = vmatpush1.msra.mxu0 0.0
    %2982 = vmatprep.subr.mxu0 0.0
    %2983 = vmatpush1.msra.mxu0 0.0
    %2984 = vmatprep.subr.mxu0 0.0
    %2985 = vmatpush1.msra.mxu0 0.0
    %2986 = vmatprep.subr.mxu0 0.0
    %2987 = vmatpush1.msra.mxu0 0.0
    %2988 = vmatprep.subr.mxu0 0.0
    %2989 = vmatpush1.msra.mxu0 0.0
    %2990 = vmatprep.subr.mxu0 0.0
    %2991 = vmatpush1.msra.mxu0 0.0
    %2992 = vmatprep.subr.mxu0 0.0
    %2993 = vmatpush1.msra.mxu0 0.0
    %2994 = vmatprep.subr.mxu0 0.0
    %2995 = vmatpush1.msra.mxu0 0.0
    %2996 = vmatprep.subr.mxu0 0.0
    %2997 = vmatpush1.msra.mxu0 0.0
    %2998 = vmatprep.subr.mxu0 0.0
    %2999 = vmatpush1.msra.mxu0 0.0
    %3000 = vmatprep.subr.mxu0 0.0
    %3001 = vmatpush1.msra.mxu0 0.0
    %3002 = vmatprep.subr.mxu0 0.0
    %3003 = vmatpush1.msra.mxu0 0.0
    %3004 = vmatprep.subr.mxu0 0.0
    %3005 = vmatpush1.msra.mxu0 0.0
    %3006 = vmatprep.mubr.f32.mxu0 0.0
    %3007 = vmatmul.mubr.f32.gmra.mrb[0].mxu0 %v2940
    %v3008 = vpop.f32.mrb[0].mxu0
    %v3009 = vadd.f32 %v56, %v3008
    %v3010 = vpop.f32.mrb[0].mxu0
    %3011 = vdwg.mxu0
    %v3012 = vxor.u32 %v3009, 2147483648
    %v3013 = vmul.f32 %v3012, 1.442695
    %v3014 = vpow.pop %v3013
    %v3015 = vadd.f32 %v3014, 1.0
    %v3016 = vrcp.pop %v3015
    %v3017 = vmul.f32 1.0, %v3016
    %v3018 = vmul.f32 %v3017, %v2443
    %3020 = vrot.lane.b32.xlu0 %v2859, 8
    %v3021 = vpop.permute.xlu0 %3020
    %v3023 = vmul.f32 %v3017, %v3021
    %3025 = vrot.lane.b32.xlu0 %v3023, 120
    %v3026 = vpop.permute.xlu0 %3025
    %v3028 = vadd.f32 %v3018, %v3026
    %s3029 = scalar_lea.vmem %s0, 20
    %v3030 = vld [vmem:[%s3029] sm:$0xf]
    %3032 = vrot.lane.b32.xlu0 %v2547, 96
    %v3033 = vpop.permute.xlu0 %3032
    %v3035 = vsel %vm111, %v3030, %v3033
    %v3037 = vsel %vm113, %v3035, 0
    %3039 = vmatprep.subr.mxu0 0.0
    %3040 = vmatpush1.msra.mxu0 %v18
    %3041 = vmatprep.subr.mxu0 0.0
    %3042 = vmatpush1.msra.mxu0 %v19
    %3043 = vmatprep.subr.mxu0 0.0
    %3044 = vmatpush1.msra.mxu0 %v20
    %3045 = vmatprep.subr.mxu0 0.0
    %3046 = vmatpush1.msra.mxu0 %v21
    %3047 = vmatprep.subr.mxu0 0.0
    %3048 = vmatpush1.msra.mxu0 %v22
    %3049 = vmatprep.subr.mxu0 0.0
    %3050 = vmatpush1.msra.mxu0 0.0
    %3051 = vmatprep.subr.mxu0 0.0
    %3052 = vmatpush1.msra.mxu0 0.0
    %3053 = vmatprep.subr.mxu0 0.0
    %3054 = vmatpush1.msra.mxu0 0.0
    %3055 = vmatprep.subr.mxu0 0.0
    %3056 = vmatpush1.msra.mxu0 0.0
    %3057 = vmatprep.subr.mxu0 0.0
    %3058 = vmatpush1.msra.mxu0 0.0
    %3059 = vmatprep.subr.mxu0 0.0
    %3060 = vmatpush1.msra.mxu0 0.0
    %3061 = vmatprep.subr.mxu0 0.0
    %3062 = vmatpush1.msra.mxu0 0.0
    %3063 = vmatprep.subr.mxu0 0.0
    %3064 = vmatpush1.msra.mxu0 0.0
    %3065 = vmatprep.subr.mxu0 0.0
    %3066 = vmatpush1.msra.mxu0 0.0
    %3067 = vmatprep.subr.mxu0 0.0
    %3068 = vmatpush1.msra.mxu0 0.0
    %3069 = vmatprep.subr.mxu0 0.0
    %3070 = vmatpush1.msra.mxu0 0.0
    %3071 = vmatprep.subr.mxu0 0.0
    %3072 = vmatpush1.msra.mxu0 0.0
    %3073 = vmatprep.subr.mxu0 0.0
    %3074 = vmatpush1.msra.mxu0 0.0
    %3075 = vmatprep.subr.mxu0 0.0
    %3076 = vmatpush1.msra.mxu0 0.0
    %3077 = vmatprep.subr.mxu0 0.0
    %3078 = vmatpush1.msra.mxu0 0.0
    %3079 = vmatprep.subr.mxu0 0.0
    %3080 = vmatpush1.msra.mxu0 0.0
    %3081 = vmatprep.subr.mxu0 0.0
    %3082 = vmatpush1.msra.mxu0 0.0
    %3083 = vmatprep.subr.mxu0 0.0
    %3084 = vmatpush1.msra.mxu0 0.0
    %3085 = vmatprep.subr.mxu0 0.0
    %3086 = vmatpush1.msra.mxu0 0.0
    %3087 = vmatprep.subr.mxu0 0.0
    %3088 = vmatpush1.msra.mxu0 0.0
    %3089 = vmatprep.subr.mxu0 0.0
    %3090 = vmatpush1.msra.mxu0 0.0
    %3091 = vmatprep.subr.mxu0 0.0
    %3092 = vmatpush1.msra.mxu0 0.0
    %3093 = vmatprep.subr.mxu0 0.0
    %3094 = vmatpush1.msra.mxu0 0.0
    %3095 = vmatprep.subr.mxu0 0.0
    %3096 = vmatpush1.msra.mxu0 0.0
    %3097 = vmatprep.subr.mxu0 0.0
    %3098 = vmatpush1.msra.mxu0 0.0
    %3099 = vmatprep.subr.mxu0 0.0
    %3100 = vmatpush1.msra.mxu0 0.0
    %3101 = vmatprep.subr.mxu0 0.0
    %3102 = vmatpush1.msra.mxu0 0.0
    %3103 = vmatprep.mubr.f32.mxu0 0.0
    %3104 = vmatmul.mubr.f32.gmra.mrb[0].mxu0 %v3037
    %v3105 = vpop.f32.mrb[0].mxu0
    %v3106 = vadd.f32 %v23, %v3105
    %v3107 = vpop.f32.mrb[0].mxu0
    %3108 = vdwg.mxu0
    %v3109 = vxor.u32 %v3106, 2147483648
    %v3110 = vmul.f32 %v3109, 1.442695
    %v3111 = vpow.pop %v3110
    %v3112 = vadd.f32 %v3111, 1.0
    %v3113 = vrcp.pop %v3112
    %v3114 = vmul.f32 1.0, %v3113
    %v3115 = vtanh.pop %v3106
    %v3116 = vmul.f32 %v3114, %v2541
    %3118 = vrot.lane.b32.xlu0 %v3115, 56
    %v3119 = vpop.permute.xlu0 %3118
    %v3121 = vmul.f32 %v3114, %v3119
    %3123 = vrot.lane.b32.xlu0 %v3121, 24
    %v3124 = vpop.permute.xlu0 %3123
    %v3126 = vadd.f32 %v3116, %v3124
    %v3127 = vtanh.pop %v3126
    %3129 = vrot.lane.b32.xlu0 %v3127, 24
    %v3130 = vpop.permute.xlu0 %3129
    %v3132 = vmul.f32 %v3114, %v3130
    %3134 = vrot.lane.b32.xlu0 %v2541, 104
    %v3135 = vpop.permute.xlu0 %3134
    %v3137 = vsel %vm211, %v3135, %v3126
    %v3139 = vsel %vm213, %v3137, 0
    %3141 = vmatprep.subr.mxu0 0.0
    %3142 = vmatpush1.msra.mxu0 %v24
    %3143 = vmatprep.subr.mxu0 0.0
    %3144 = vmatpush1.msra.mxu0 %v25
    %3145 = vmatprep.subr.mxu0 0.0
    %3146 = vmatpush1.msra.mxu0 %v26
    %3147 = vmatprep.subr.mxu0 0.0
    %3148 = vmatpush1.msra.mxu0 %v27
    %3149 = vmatprep.subr.mxu0 0.0
    %3150 = vmatpush1.msra.mxu0 %v28
    %3151 = vmatprep.subr.mxu0 0.0
    %3152 = vmatpush1.msra.mxu0 %v29
    %3153 = vmatprep.subr.mxu0 0.0
    %3154 = vmatpush1.msra.mxu0 0.0
    %3155 = vmatprep.subr.mxu0 0.0
    %3156 = vmatpush1.msra.mxu0 0.0
    %3157 = vmatprep.subr.mxu0 0.0
    %3158 = vmatpush1.msra.mxu0 0.0
    %3159 = vmatprep.subr.mxu0 0.0
    %3160 = vmatpush1.msra.mxu0 0.0
    %3161 = vmatprep.subr.mxu0 0.0
    %3162 = vmatpush1.msra.mxu0 0.0
    %3163 = vmatprep.subr.mxu0 0.0
    %3164 = vmatpush1.msra.mxu0 0.0
    %3165 = vmatprep.subr.mxu0 0.0
    %3166 = vmatpush1.msra.mxu0 0.0
    %3167 = vmatprep.subr.mxu0 0.0
    %3168 = vmatpush1.msra.mxu0 0.0
    %3169 = vmatprep.subr.mxu0 0.0
    %3170 = vmatpush1.msra.mxu0 0.0
    %3171 = vmatprep.subr.mxu0 0.0
    %3172 = vmatpush1.msra.mxu0 0.0
    %3173 = vmatprep.subr.mxu0 0.0
    %3174 = vmatpush1.msra.mxu0 0.0
    %3175 = vmatprep.subr.mxu0 0.0
    %3176 = vmatpush1.msra.mxu0 0.0
    %3177 = vmatprep.subr.mxu0 0.0
    %3178 = vmatpush1.msra.mxu0 0.0
    %3179 = vmatprep.subr.mxu0 0.0
    %3180 = vmatpush1.msra.mxu0 0.0
    %3181 = vmatprep.subr.mxu0 0.0
    %3182 = vmatpush1.msra.mxu0 0.0
    %3183 = vmatprep.subr.mxu0 0.0
    %3184 = vmatpush1.msra.mxu0 0.0
    %3185 = vmatprep.subr.mxu0 0.0
    %3186 = vmatpush1.msra.mxu0 0.0
    %3187 = vmatprep.subr.mxu0 0.0
    %3188 = vmatpush1.msra.mxu0 0.0
    %3189 = vmatprep.subr.mxu0 0.0
    %3190 = vmatpush1.msra.mxu0 0.0
    %3191 = vmatprep.subr.mxu0 0.0
    %3192 = vmatpush1.msra.mxu0 0.0
    %3193 = vmatprep.subr.mxu0 0.0
    %3194 = vmatpush1.msra.mxu0 0.0
    %3195 = vmatprep.subr.mxu0 0.0
    %3196 = vmatpush1.msra.mxu0 0.0
    %3197 = vmatprep.subr.mxu0 0.0
    %3198 = vmatpush1.msra.mxu0 0.0
    %3199 = vmatprep.subr.mxu0 0.0
    %3200 = vmatpush1.msra.mxu0 0.0
    %3201 = vmatprep.subr.mxu0 0.0
    %3202 = vmatpush1.msra.mxu0 0.0
    %3203 = vmatprep.subr.mxu0 0.0
    %3204 = vmatpush1.msra.mxu0 0.0
    %3205 = vmatprep.mubr.f32.mxu0 0.0
    %3206 = vmatmul.mubr.f32.gmra.mrb[0].mxu0 %v3139
    %v3207 = vpop.f32.mrb[0].mxu0
    %v3208 = vadd.f32 %v30, %v3207
    %v3209 = vpop.f32.mrb[0].mxu0
    %3210 = vdwg.mxu0
    %v3211 = vmax.f32 %v3208, 0.0
    %v3213 = vsel %vm111, %v3211, 0
    %3215 = vmatprep.subr.mxu0 0.0
    %3216 = vmatpush1.msra.mxu0 %v31
    %3217 = vmatprep.subr.mxu0 0.0
    %3218 = vmatpush1.msra.mxu0 %v32
    %3219 = vmatprep.subr.mxu0 0.0
    %3220 = vmatpush1.msra.mxu0 0.0
    %3221 = vmatprep.subr.mxu0 0.0
    %3222 = vmatpush1.msra.mxu0 0.0
    %3223 = vmatprep.subr.mxu0 0.0
    %3224 = vmatpush1.msra.mxu0 0.0
    %3225 = vmatprep.subr.mxu0 0.0
    %3226 = vmatpush1.msra.mxu0 0.0
    %3227 = vmatprep.subr.mxu0 0.0
    %3228 = vmatpush1.msra.mxu0 0.0
    %3229 = vmatprep.subr.mxu0 0.0
    %3230 = vmatpush1.msra.mxu0 0.0
    %3231 = vmatprep.subr.mxu0 0.0
    %3232 = vmatpush1.msra.mxu0 0.0
    %3233 = vmatprep.subr.mxu0 0.0
    %3234 = vmatpush1.msra.mxu0 0.0
    %3235 = vmatprep.subr.mxu0 0.0
    %3236 = vmatpush1.msra.mxu0 0.0
    %3237 = vmatprep.subr.mxu0 0.0
    %3238 = vmatpush1.msra.mxu0 0.0
    %3239 = vmatprep.subr.mxu0 0.0
    %3240 = vmatpush1.msra.mxu0 0.0
    %3241 = vmatprep.subr.mxu0 0.0
    %3242 = vmatpush1.msra.mxu0 0.0
    %3243 = vmatprep.subr.mxu0 0.0
    %3244 = vmatpush1.msra.mxu0 0.0
    %3245 = vmatprep.subr.mxu0 0.0
    %3246 = vmatpush1.msra.mxu0 0.0
    %3247 = vmatprep.subr.mxu0 0.0
    %3248 = vmatpush1.msra.mxu0 0.0
    %3249 = vmatprep.subr.mxu0 0.0
    %3250 = vmatpush1.msra.mxu0 0.0
    %3251 = vmatprep.subr.mxu0 0.0
    %3252 = vmatpush1.msra.mxu0 0.0
    %3253 = vmatprep.subr.mxu0 0.0
    %3254 = vmatpush1.msra.mxu0 0.0
    %3255 = vmatprep.subr.mxu0 0.0
    %3256 = vmatpush1.msra.mxu0 0.0
    %3257 = vmatprep.subr.mxu0 0.0
    %3258 = vmatpush1.msra.mxu0 0.0
    %3259 = vmatprep.subr.mxu0 0.0
    %3260 = vmatpush1.msra.mxu0 0.0
    %3261 = vmatprep.subr.mxu0 0.0
    %3262 = vmatpush1.msra.mxu0 0.0
    %3263 = vmatprep.subr.mxu0 0.0
    %3264 = vmatpush1.msra.mxu0 0.0
    %3265 = vmatprep.subr.mxu0 0.0
    %3266 = vmatpush1.msra.mxu0 0.0
    %3267 = vmatprep.subr.mxu0 0.0
    %3268 = vmatpush1.msra.mxu0 0.0
    %3269 = vmatprep.subr.mxu0 0.0
    %3270 = vmatpush1.msra.mxu0 0.0
    %3271 = vmatprep.subr.mxu0 0.0
    %3272 = vmatpush1.msra.mxu0 0.0
    %3273 = vmatprep.subr.mxu0 0.0
    %3274 = vmatpush1.msra.mxu0 0.0
    %3275 = vmatprep.subr.mxu0 0.0
    %3276 = vmatpush1.msra.mxu0 0.0
    %3277 = vmatprep.subr.mxu0 0.0
    %3278 = vmatpush1.msra.mxu0 0.0
    %3279 = vmatprep.mubr.f32.mxu0 0.0
    %3280 = vmatmul.mubr.f32.gmra.mrb[0].mxu0 %v3213
    %v3281 = vpop.f32.mrb[0].mxu0
    %v3282 = vadd.f32 %v33, %v3281
    %v3283 = vpop.f32.mrb[0].mxu0
    %3284 = vdwg.mxu0
    %v3285 = vsel %vm361, %v3282, -inf
    %3286 = vmax.xlane.f32.xlu0 %v3285
    %v3287 = vpop.xlane.xlu0 %3286
    %v3288 = vsub.f32 %v3282, %v3287
    %v3289 = vmul.f32 %v3288, 1.442695
    %v3290 = vpow.pop %v3289
    %v3291 = vsel %vm361, %v3290, 0.0
    %3292 = vadd.xlane.f32.xlu0 %v3291
    %v3293 = vpop.xlane.xlu0 %3292
    %v3294 = vrcp.pop %v3293
    %v3295 = vmul.f32 %v3290, %v3294
    %v3296 = vmul.f32 %v3295, %v3137
    %v3298 = vsel %vm213, %v3296, 0
    %3300 = vmatprep.subr.mxu0 0.0
    %3301 = vmatpush1.msra.mxu0 %v34
    %3302 = vmatprep.subr.mxu0 0.0
    %3303 = vmatpush1.msra.mxu0 %v35
    %3304 = vmatprep.subr.mxu0 0.0
    %3305 = vmatpush1.msra.mxu0 %v36
    %3306 = vmatprep.subr.mxu0 0.0
    %3307 = vmatpush1.msra.mxu0 %v37
    %3308 = vmatprep.subr.mxu0 0.0
    %3309 = vmatpush1.msra.mxu0 %v38
    %3310 = vmatprep.subr.mxu0 0.0
    %3311 = vmatpush1.msra.mxu0 %v39
    %3312 = vmatprep.subr.mxu0 0.0
    %3313 = vmatpush1.msra.mxu0 0.0
    %3314 = vmatprep.subr.mxu0 0.0
    %3315 = vmatpush1.msra.mxu0 0.0
    %3316 = vmatprep.subr.mxu0 0.0
    %3317 = vmatpush1.msra.mxu0 0.0
    %3318 = vmatprep.subr.mxu0 0.0
    %3319 = vmatpush1.msra.mxu0 0.0
    %3320 = vmatprep.subr.mxu0 0.0
    %3321 = vmatpush1.msra.mxu0 0.0
    %3322 = vmatprep.subr.mxu0 0.0
    %3323 = vmatpush1.msra.mxu0 0.0
    %3324 = vmatprep.subr.mxu0 0.0
    %3325 = vmatpush1.msra.mxu0 0.0
    %3326 = vmatprep.subr.mxu0 0.0
    %3327 = vmatpush1.msra.mxu0 0.0
    %3328 = vmatprep.subr.mxu0 0.0
    %3329 = vmatpush1.msra.mxu0 0.0
    %3330 = vmatprep.subr.mxu0 0.0
    %3331 = vmatpush1.msra.mxu0 0.0
    %3332 = vmatprep.subr.mxu0 0.0
    %3333 = vmatpush1.msra.mxu0 0.0
    %3334 = vmatprep.subr.mxu0 0.0
    %3335 = vmatpush1.msra.mxu0 0.0
    %3336 = vmatprep.subr.mxu0 0.0
    %3337 = vmatpush1.msra.mxu0 0.0
    %3338 = vmatprep.subr.mxu0 0.0
    %3339 = vmatpush1.msra.mxu0 0.0
    %3340 = vmatprep.subr.mxu0 0.0
    %3341 = vmatpush1.msra.mxu0 0.0
    %3342 = vmatprep.subr.mxu0 0.0
    %3343 = vmatpush1.msra.mxu0 0.0
    %3344 = vmatprep.subr.mxu0 0.0
    %3345 = vmatpush1.msra.mxu0 0.0
    %3346 = vmatprep.subr.mxu0 0.0
    %3347 = vmatpush1.msra.mxu0 0.0
    %3348 = vmatprep.subr.mxu0 0.0
    %3349 = vmatpush1.msra.mxu0 0.0
    %3350 = vmatprep.subr.mxu0 0.0
    %3351 = vmatpush1.msra.mxu0 0.0
    %3352 = vmatprep.subr.mxu0 0.0
    %3353 = vmatpush1.msra.mxu0 0.0
    %3354 = vmatprep.subr.mxu0 0.0
    %3355 = vmatpush1.msra.mxu0 0.0
    %3356 = vmatprep.subr.mxu0 0.0
    %3357 = vmatpush1.msra.mxu0 0.0
    %3358 = vmatprep.subr.mxu0 0.0
    %3359 = vmatpush1.msra.mxu0 0.0
    %3360 = vmatprep.subr.mxu0 0.0
    %3361 = vmatpush1.msra.mxu0 0.0
    %3362 = vmatprep.subr.mxu0 0.0
    %3363 = vmatpush1.msra.mxu0 0.0
    %3364 = vmatprep.mubr.f32.mxu0 0.0
    %3365 = vmatmul.mubr.f32.gmra.mrb[0].mxu0 %v3298
    %v3366 = vpop.f32.mrb[0].mxu0
    %v3367 = vadd.f32 %v40, %v3366
    %v3368 = vpop.f32.mrb[0].mxu0
    %3369 = vdwg.mxu0
    %v3370 = vmax.f32 %v3367, 0.0
    %v3372 = vsel %vm111, %v3370, 0
    %3374 = vmatprep.subr.mxu0 0.0
    %3375 = vmatpush1.msra.mxu0 %v41
    %3376 = vmatprep.subr.mxu0 0.0
    %3377 = vmatpush1.msra.mxu0 %v42
    %3378 = vmatprep.subr.mxu0 0.0
    %3379 = vmatpush1.msra.mxu0 0.0
    %3380 = vmatprep.subr.mxu0 0.0
    %3381 = vmatpush1.msra.mxu0 0.0
    %3382 = vmatprep.subr.mxu0 0.0
    %3383 = vmatpush1.msra.mxu0 0.0
    %3384 = vmatprep.subr.mxu0 0.0
    %3385 = vmatpush1.msra.mxu0 0.0
    %3386 = vmatprep.subr.mxu0 0.0
    %3387 = vmatpush1.msra.mxu0 0.0
    %3388 = vmatprep.subr.mxu0 0.0
    %3389 = vmatpush1.msra.mxu0 0.0
    %3390 = vmatprep.subr.mxu0 0.0
    %3391 = vmatpush1.msra.mxu0 0.0
    %3392 = vmatprep.subr.mxu0 0.0
    %3393 = vmatpush1.msra.mxu0 0.0
    %3394 = vmatprep.subr.mxu0 0.0
    %3395 = vmatpush1.msra.mxu0 0.0
    %3396 = vmatprep.subr.mxu0 0.0
    %3397 = vmatpush1.msra.mxu0 0.0
    %3398 = vmatprep.subr.mxu0 0.0
    %3399 = vmatpush1.msra.mxu0 0.0
    %3400 = vmatprep.subr.mxu0 0.0
    %3401 = vmatpush1.msra.mxu0 0.0
    %3402 = vmatprep.subr.mxu0 0.0
    %3403 = vmatpush1.msra.mxu0 0.0
    %3404 = vmatprep.subr.mxu0 0.0
    %3405 = vmatpush1.msra.mxu0 0.0
    %3406 = vmatprep.subr.mxu0 0.0
    %3407 = vmatpush1.msra.mxu0 0.0
    %3408 = vmatprep.subr.mxu0 0.0
    %3409 = vmatpush1.msra.mxu0 0.0
    %3410 = vmatprep.subr.mxu0 0.0
    %3411 = vmatpush1.msra.mxu0 0.0
    %3412 = vmatprep.subr.mxu0 0.0
    %3413 = vmatpush1.msra.mxu0 0.0
    %3414 = vmatprep.subr.mxu0 0.0
    %3415 = vmatpush1.msra.mxu0 0.0
    %3416 = vmatprep.subr.mxu0 0.0
    %3417 = vmatpush1.msra.mxu0 0.0
    %3418 = vmatprep.subr.mxu0 0.0
    %3419 = vmatpush1.msra.mxu0 0.0
    %3420 = vmatprep.subr.mxu0 0.0
    %3421 = vmatpush1.msra.mxu0 0.0
    %3422 = vmatprep.subr.mxu0 0.0
    %3423 = vmatpush1.msra.mxu0 0.0
    %3424 = vmatprep.subr.mxu0 0.0
    %3425 = vmatpush1.msra.mxu0 0.0
    %3426 = vmatprep.subr.mxu0 0.0
    %3427 = vmatpush1.msra.mxu0 0.0
    %3428 = vmatprep.subr.mxu0 0.0
    %3429 = vmatpush1.msra.mxu0 0.0
    %3430 = vmatprep.subr.mxu0 0.0
    %3431 = vmatpush1.msra.mxu0 0.0
    %3432 = vmatprep.subr.mxu0 0.0
    %3433 = vmatpush1.msra.mxu0 0.0
    %3434 = vmatprep.subr.mxu0 0.0
    %3435 = vmatpush1.msra.mxu0 0.0
    %3436 = vmatprep.subr.mxu0 0.0
    %3437 = vmatpush1.msra.mxu0 0.0
    %3438 = vmatprep.mubr.f32.mxu0 0.0
    %3439 = vmatmul.mubr.f32.gmra.mrb[0].mxu0 %v3372
    %v3440 = vpop.f32.mrb[0].mxu0
    %v3441 = vadd.f32 %v43, %v3440
    %v3442 = vpop.f32.mrb[0].mxu0
    %3443 = vdwg.mxu0
    %v3444 = vtanh.pop %v3441
    %3446 = vrot.lane.b32.xlu0 %v3028, 48
    %v3447 = vpop.permute.xlu0 %3446
    %v3449 = vsel %vm213, %v3296, %v3447
    %v3451 = vsel %vm523, %v3449, 0
    %3453 = vmatprep.subr.mxu0 0.0
    %3454 = vmatpush1.msra.mxu0 %v44
    %3455 = vmatprep.subr.mxu0 0.0
    %3456 = vmatpush1.msra.mxu0 %v45
    %3457 = vmatprep.subr.mxu0 0.0
    %3458 = vmatpush1.msra.mxu0 %v46
    %3459 = vmatprep.subr.mxu0 0.0
    %3460 = vmatpush1.msra.mxu0 %v47
    %3461 = vmatprep.subr.mxu0 0.0
    %3462 = vmatpush1.msra.mxu0 %v48
    %3463 = vmatprep.subr.mxu0 0.0
    %3464 = vmatpush1.msra.mxu0 %v49
    %3465 = vmatprep.subr.mxu0 0.0
    %3466 = vmatpush1.msra.mxu0 %v50
    %3467 = vmatprep.subr.mxu0 0.0
    %3468 = vmatpush1.msra.mxu0 0.0
    %3469 = vmatprep.subr.mxu0 0.0
    %3470 = vmatpush1.msra.mxu0 0.0
    %3471 = vmatprep.subr.mxu0 0.0
    %3472 = vmatpush1.msra.mxu0 0.0
    %3473 = vmatprep.subr.mxu0 0.0
    %3474 = vmatpush1.msra.mxu0 0.0
    %3475 = vmatprep.subr.mxu0 0.0
    %3476 = vmatpush1.msra.mxu0 0.0
    %3477 = vmatprep.subr.mxu0 0.0
    %3478 = vmatpush1.msra.mxu0 0.0
    %3479 = vmatprep.subr.mxu0 0.0
    %3480 = vmatpush1.msra.mxu0 0.0
    %3481 = vmatprep.subr.mxu0 0.0
    %3482 = vmatpush1.msra.mxu0 0.0
    %3483 = vmatprep.subr.mxu0 0.0
    %3484 = vmatpush1.msra.mxu0 0.0
    %3485 = vmatprep.subr.mxu0 0.0
    %3486 = vmatpush1.msra.mxu0 0.0
    %3487 = vmatprep.subr.mxu0 0.0
    %3488 = vmatpush1.msra.mxu0 0.0
    %3489 = vmatprep.subr.mxu0 0.0
    %3490 = vmatpush1.msra.mxu0 0.0
    %3491 = vmatprep.subr.mxu0 0.0
    %3492 = vmatpush1.msra.mxu0 0.0
    %3493 = vmatprep.subr.mxu0 0.0
    %3494 = vmatpush1.msra.mxu0 0.0
    %3495 = vmatprep.subr.mxu0 0.0
    %3496 = vmatpush1.msra.mxu0 0.0
    %3497 = vmatprep.subr.mxu0 0.0
    %3498 = vmatpush1.msra.mxu0 0.0
    %3499 = vmatprep.subr.mxu0 0.0
    %3500 = vmatpush1.msra.mxu0 0.0
    %3501 = vmatprep.subr.mxu0 0.0
    %3502 = vmatpush1.msra.mxu0 0.0
    %3503 = vmatprep.subr.mxu0 0.0
    %3504 = vmatpush1.msra.mxu0 0.0
    %3505 = vmatprep.subr.mxu0 0.0
    %3506 = vmatpush1.msra.mxu0 0.0
    %3507 = vmatprep.subr.mxu0 0.0
    %3508 = vmatpush1.msra.mxu0 0.0
    %3509 = vmatprep.subr.mxu0 0.0
    %3510 = vmatpush1.msra.mxu0 0.0
    %3511 = vmatprep.subr.mxu0 0.0
    %3512 = vmatpush1.msra.mxu0 0.0
    %3513 = vmatprep.subr.mxu0 0.0
    %3514 = vmatpush1.msra.mxu0 0.0
    %3515 = vmatprep.subr.mxu0 0.0
    %3516 = vmatpush1.msra.mxu0 0.0
    %3517 = vmatprep.mubr.f32.mxu0 0.0
    %3518 = vmatmul.mubr.f32.gmra.mrb[0].mxu0 %v3451
    %v3519 = vpop.f32.mrb[0].mxu0
    %v3520 = vadd.f32 %v51, %v3519
    %v3521 = vpop.f32.mrb[0].mxu0
    %3522 = vdwg.mxu0
    %v3523 = vmax.f32 %v3520, 0.0
    %v3525 = vsel %vm598, %v3523, 0
    %3527 = vmatprep.subr.mxu0 0.0
    %3528 = vmatpush1.msra.mxu0 %v52
    %3529 = vmatprep.subr.mxu0 0.0
    %3530 = vmatpush1.msra.mxu0 %v53
    %3531 = vmatprep.subr.mxu0 0.0
    %3532 = vmatpush1.msra.mxu0 %v54
    %3533 = vmatprep.subr.mxu0 0.0
    %3534 = vmatpush1.msra.mxu0 %v55
    %3535 = vmatprep.subr.mxu0 0.0
    %3536 = vmatpush1.msra.mxu0 0.0
    %3537 = vmatprep.subr.mxu0 0.0
    %3538 = vmatpush1.msra.mxu0 0.0
    %3539 = vmatprep.subr.mxu0 0.0
    %3540 = vmatpush1.msra.mxu0 0.0
    %3541 = vmatprep.subr.mxu0 0.0
    %3542 = vmatpush1.msra.mxu0 0.0
    %3543 = vmatprep.subr.mxu0 0.0
    %3544 = vmatpush1.msra.mxu0 0.0
    %3545 = vmatprep.subr.mxu0 0.0
    %3546 = vmatpush1.msra.mxu0 0.0
    %3547 = vmatprep.subr.mxu0 0.0
    %3548 = vmatpush1.msra.mxu0 0.0
    %3549 = vmatprep.subr.mxu0 0.0
    %3550 = vmatpush1.msra.mxu0 0.0
    %3551 = vmatprep.subr.mxu0 0.0
    %3552 = vmatpush1.msra.mxu0 0.0
    %3553 = vmatprep.subr.mxu0 0.0
    %3554 = vmatpush1.msra.mxu0 0.0
    %3555 = vmatprep.subr.mxu0 0.0
    %3556 = vmatpush1.msra.mxu0 0.0
    %3557 = vmatprep.subr.mxu0 0.0
    %3558 = vmatpush1.msra.mxu0 0.0
    %3559 = vmatprep.subr.mxu0 0.0
    %3560 = vmatpush1.msra.mxu0 0.0
    %3561 = vmatprep.subr.mxu0 0.0
    %3562 = vmatpush1.msra.mxu0 0.0
    %3563 = vmatprep.subr.mxu0 0.0
    %3564 = vmatpush1.msra.mxu0 0.0
    %3565 = vmatprep.subr.mxu0 0.0
    %3566 = vmatpush1.msra.mxu0 0.0
    %3567 = vmatprep.subr.mxu0 0.0
    %3568 = vmatpush1.msra.mxu0 0.0
    %3569 = vmatprep.subr.mxu0 0.0
    %3570 = vmatpush1.msra.mxu0 0.0
    %3571 = vmatprep.subr.mxu0 0.0
    %3572 = vmatpush1.msra.mxu0 0.0
    %3573 = vmatprep.subr.mxu0 0.0
    %3574 = vmatpush1.msra.mxu0 0.0
    %3575 = vmatprep.subr.mxu0 0.0
    %3576 = vmatpush1.msra.mxu0 0.0
    %3577 = vmatprep.subr.mxu0 0.0
    %3578 = vmatpush1.msra.mxu0 0.0
    %3579 = vmatprep.subr.mxu0 0.0
    %3580 = vmatpush1.msra.mxu0 0.0
    %3581 = vmatprep.subr.mxu0 0.0
    %3582 = vmatpush1.msra.mxu0 0.0
    %3583 = vmatprep.subr.mxu0 0.0
    %3584 = vmatpush1.msra.mxu0 0.0
    %3585 = vmatprep.subr.mxu0 0.0
    %3586 = vmatpush1.msra.mxu0 0.0
    %3587 = vmatprep.subr.mxu0 0.0
    %3588 = vmatpush1.msra.mxu0 0.0
    %3589 = vmatprep.subr.mxu0 0.0
    %3590 = vmatpush1.msra.mxu0 0.0
    %3591 = vmatprep.mubr.f32.mxu0 0.0
    %3592 = vmatmul.mubr.f32.gmra.mrb[0].mxu0 %v3525
    %v3593 = vpop.f32.mrb[0].mxu0
    %v3594 = vadd.f32 %v56, %v3593
    %v3595 = vpop.f32.mrb[0].mxu0
    %3596 = vdwg.mxu0
    %v3597 = vxor.u32 %v3594, 2147483648
    %v3598 = vmul.f32 %v3597, 1.442695
    %v3599 = vpow.pop %v3598
    %v3600 = vadd.f32 %v3599, 1.0
    %v3601 = vrcp.pop %v3600
    %v3602 = vmul.f32 1.0, %v3601
    %v3603 = vmul.f32 %v3602, %v3028
    %3605 = vrot.lane.b32.xlu0 %v3444, 8
    %v3606 = vpop.permute.xlu0 %3605
    %v3608 = vmul.f32 %v3602, %v3606
    %3610 = vrot.lane.b32.xlu0 %v3608, 120
    %v3611 = vpop.permute.xlu0 %3610
    %v3613 = vadd.f32 %v3603, %v3611
    %3615 = vrot.lane.b32.xlu0 %v3132, 80
    %v3616 = vpop.permute.xlu0 %3615
    %3619 = vrot.lane.b32.xlu0 %v3613, 24
    %v3620 = vpop.permute.xlu0 %3619
    %v3622 = vsel %vm211, %v3616, %v3620
    %v3624 = vsel %vm598, %v3622, 0
    %3626 = vmatprep.subr.mxu0 0.0
    %3627 = vmatpush1.msra.mxu0 %v57
    %3628 = vmatprep.subr.mxu0 0.0
    %3629 = vmatpush1.msra.mxu0 %v58
    %3630 = vmatprep.subr.mxu0 0.0
    %3631 = vmatpush1.msra.mxu0 %v59
    %3632 = vmatprep.subr.mxu0 0.0
    %3633 = vmatpush1.msra.mxu0 %v60
    %3634 = vmatprep.subr.mxu0 0.0
    %3635 = vmatpush1.msra.mxu0 0.0
    %3636 = vmatprep.subr.mxu0 0.0
    %3637 = vmatpush1.msra.mxu0 0.0
    %3638 = vmatprep.subr.mxu0 0.0
    %3639 = vmatpush1.msra.mxu0 0.0
    %3640 = vmatprep.subr.mxu0 0.0
    %3641 = vmatpush1.msra.mxu0 0.0
    %3642 = vmatprep.subr.mxu0 0.0
    %3643 = vmatpush1.msra.mxu0 0.0
    %3644 = vmatprep.subr.mxu0 0.0
    %3645 = vmatpush1.msra.mxu0 0.0
    %3646 = vmatprep.subr.mxu0 0.0
    %3647 = vmatpush1.msra.mxu0 0.0
    %3648 = vmatprep.subr.mxu0 0.0
    %3649 = vmatpush1.msra.mxu0 0.0
    %3650 = vmatprep.subr.mxu0 0.0
    %3651 = vmatpush1.msra.mxu0 0.0
    %3652 = vmatprep.subr.mxu0 0.0
    %3653 = vmatpush1.msra.mxu0 0.0
    %3654 = vmatprep.subr.mxu0 0.0
    %3655 = vmatpush1.msra.mxu0 0.0
    %3656 = vmatprep.subr.mxu0 0.0
    %3657 = vmatpush1.msra.mxu0 0.0
    %3658 = vmatprep.subr.mxu0 0.0
    %3659 = vmatpush1.msra.mxu0 0.0
    %3660 = vmatprep.subr.mxu0 0.0
    %3661 = vmatpush1.msra.mxu0 0.0
    %3662 = vmatprep.subr.mxu0 0.0
    %3663 = vmatpush1.msra.mxu0 0.0
    %3664 = vmatprep.subr.mxu0 0.0
    %3665 = vmatpush1.msra.mxu0 0.0
    %3666 = vmatprep.subr.mxu0 0.0
    %3667 = vmatpush1.msra.mxu0 0.0
    %3668 = vmatprep.subr.mxu0 0.0
    %3669 = vmatpush1.msra.mxu0 0.0
    %3670 = vmatprep.subr.mxu0 0.0
    %3671 = vmatpush1.msra.mxu0 0.0
    %3672 = vmatprep.subr.mxu0 0.0
    %3673 = vmatpush1.msra.mxu0 0.0
    %3674 = vmatprep.subr.mxu0 0.0
    %3675 = vmatpush1.msra.mxu0 0.0
    %3676 = vmatprep.subr.mxu0 0.0
    %3677 = vmatpush1.msra.mxu0 0.0
    %3678 = vmatprep.subr.mxu0 0.0
    %3679 = vmatpush1.msra.mxu0 0.0
    %3680 = vmatprep.subr.mxu0 0.0
    %3681 = vmatpush1.msra.mxu0 0.0
    %3682 = vmatprep.subr.mxu0 0.0
    %3683 = vmatpush1.msra.mxu0 0.0
    %3684 = vmatprep.subr.mxu0 0.0
    %3685 = vmatpush1.msra.mxu0 0.0
    %3686 = vmatprep.subr.mxu0 0.0
    %3687 = vmatpush1.msra.mxu0 0.0
    %3688 = vmatprep.subr.mxu0 0.0
    %3689 = vmatpush1.msra.mxu0 0.0
    %3690 = vmatprep.mubr.f32.mxu0 0.0
    %3691 = vmatmul.mubr.f32.gmra.mrb[0].mxu0 %v3624
    %v3692 = vpop.f32.mrb[0].mxu0
    %v3693 = vadd.f32 %v61, %v3692
    %v3694 = vpop.f32.mrb[0].mxu0
    %3695 = vdwg.mxu0
    %v3696 = vld [vmem:[%s2] sm:$0xf]
    %v3698 = vrot.slane %v3693, 4
    %vm3700 = vcmask 1043456
    %v3701 = vsel %vm3700, %v3696, %v3698
    %v3702 = vmul.f32 %v3701, %v3701
    %v3703 = vsel %vm111, %v3702, 0.0
    %3704 = vadd.xlane.f32.xlu0 %v3703
    %v3705 = vpop.xlane.xlu0 %3704
    %v3706 = vmul.f32 %v3701, -2.0
    %v3707 = vsel %vm111, %v3706, %v3705
    %vm3708 = vcmask 138240
    %v3709 = vsel %vm3708, %v3707, 1.0
    %v3710 = vsel %vm111, %v3701, 1.0
    %v3711 = vsel %vm3708, %v3710, %v3705
    %vm3712 = vcmask 146432
    %v3714 = vsel %vm3712, %v3709, 0
    %v3717 = vsel %vm3712, %v3711, 0
    %3719 = vmatprep.subr.mxu0 0.0
    %3720 = vmatpush1.xpose.msra.mxu0 %v3717
    %3721 = vmatprep.subr.mxu0 0.0
    %3722 = vmatpush1.xpose.msra.mxu0 0.0
    %3723 = vmatprep.subr.mxu0 0.0
    %3724 = vmatpush1.xpose.msra.mxu0 0.0
    %3725 = vmatprep.subr.mxu0 0.0
    %3726 = vmatpush1.xpose.msra.mxu0 0.0
    %3727 = vmatprep.subr.mxu0 0.0
    %3728 = vmatpush1.xpose.msra.mxu0 0.0
    %3729 = vmatprep.subr.mxu0 0.0
    %3730 = vmatpush1.xpose.msra.mxu0 0.0
    %3731 = vmatprep.subr.mxu0 0.0
    %3732 = vmatpush1.xpose.msra.mxu0 0.0
    %3733 = vmatprep.subr.mxu0 0.0
    %3734 = vmatpush1.xpose.msra.mxu0 0.0
    %3735 = vmatprep.subr.mxu0 0.0
    %3736 = vmatpush1.xpose.msra.mxu0 0.0
    %3737 = vmatprep.subr.mxu0 0.0
    %3738 = vmatpush1.xpose.msra.mxu0 0.0
    %3739 = vmatprep.subr.mxu0 0.0
    %3740 = vmatpush1.xpose.msra.mxu0 0.0
    %3741 = vmatprep.subr.mxu0 0.0
    %3742 = vmatpush1.xpose.msra.mxu0 0.0
    %3743 = vmatprep.subr.mxu0 0.0
    %3744 = vmatpush1.xpose.msra.mxu0 0.0
    %3745 = vmatprep.subr.mxu0 0.0
    %3746 = vmatpush1.xpose.msra.mxu0 0.0
    %3747 = vmatprep.subr.mxu0 0.0
    %3748 = vmatpush1.xpose.msra.mxu0 0.0
    %3749 = vmatprep.subr.mxu0 0.0
    %3750 = vmatpush1.xpose.msra.mxu0 0.0
    %3751 = vmatprep.subr.mxu0 0.0
    %3752 = vmatpush1.xpose.msra.mxu0 0.0
    %3753 = vmatprep.subr.mxu0 0.0
    %3754 = vmatpush1.xpose.msra.mxu0 0.0
    %3755 = vmatprep.subr.mxu0 0.0
    %3756 = vmatpush1.xpose.msra.mxu0 0.0
    %3757 = vmatprep.subr.mxu0 0.0
    %3758 = vmatpush1.xpose.msra.mxu0 0.0
    %3759 = vmatprep.subr.mxu0 0.0
    %3760 = vmatpush1.xpose.msra.mxu0 0.0
    %3761 = vmatprep.subr.mxu0 0.0
    %3762 = vmatpush1.xpose.msra.mxu0 0.0
    %3763 = vmatprep.subr.mxu0 0.0
    %3764 = vmatpush1.xpose.msra.mxu0 0.0
    %3765 = vmatprep.subr.mxu0 0.0
    %3766 = vmatpush1.xpose.msra.mxu0 0.0
    %3767 = vmatprep.subr.mxu0 0.0
    %3768 = vmatpush1.xpose.msra.mxu0 0.0
    %3769 = vmatprep.subr.mxu0 0.0
    %3770 = vmatpush1.xpose.msra.mxu0 0.0
    %3771 = vmatprep.subr.mxu0 0.0
    %3772 = vmatpush1.xpose.msra.mxu0 0.0
    %3773 = vmatprep.subr.mxu0 0.0
    %3774 = vmatpush1.xpose.msra.mxu0 0.0
    %3775 = vmatprep.subr.mxu0 0.0
    %3776 = vmatpush1.xpose.msra.mxu0 0.0
    %3777 = vmatprep.subr.mxu0 0.0
    %3778 = vmatpush1.xpose.msra.mxu0 0.0
    %3779 = vmatprep.subr.mxu0 0.0
    %3780 = vmatpush1.xpose.msra.mxu0 0.0
    %3781 = vmatprep.subr.mxu0 0.0
    %3782 = vmatpush1.xpose.msra.mxu0 0.0
    %3783 = vmatprep.mubr.f32.mxu0 0.0
    %3784 = vmatmul.mubr.f32.gmra.mrb[0].mxu0 %v3714
    %v3785 = vpop.f32.mrb[0].mxu0
    %v3786 = vadd.f32 0.0, %v3785
    %v3787 = vpop.f32.mrb[0].mxu0
    %3788 = vdwg.mxu0
    %v3789 = vmax.f32 %v3786, 0.0
    %v3790 = vmul.f32 %v3789, -0.00390625
    %v3791 = vmul.f32 %v3790, 1.442695
    %v3792 = vpow.pop %v3791
    %vm3793 = vcmask 27648
    %v3794 = vsel %vm3793, %v3792, 0.0
    %3795 = vadd.xlane.f32.xlu0 %v3794
    %v3796 = vpop.xlane.xlu0 %3795
    %v3797 = vrot.slane %v3796, 4
    %v3798 = vadd.f32 %v3796, %v3797
    %v3799 = vrot.slane %v3798, 2
    %v3800 = vadd.f32 %v3798, %v3799
    %v3801 = vrot.slane %v3800, 1
    %v3802 = vadd.f32 %v3800, %v3801
    %s3803 = vtos %v3802
    %v3804 = vrcp.pop 16.0
    %s3805 = vtos %v3804
    %s3806 = smul.f32 %s3803, %s3805
    %v3808 = vrot.slane %v3792, 4
    %3809 = vrot.lane.b32.xlu0 %v3808, 124
    %v3810 = vpop.permute.xlu0 %3809
    %v3812 = vsel %vm3793, %v3810, 0.0
    %3813 = vadd.xlane.f32.xlu0 %v3812
    %v3814 = vpop.xlane.xlu0 %3813
    %v3815 = vrot.slane %v3814, 4
    %v3816 = vadd.f32 %v3814, %v3815
    %v3817 = vrot.slane %v3816, 2
    %v3818 = vadd.f32 %v3816, %v3817
    %v3819 = vrot.slane %v3818, 1
    %v3820 = vadd.f32 %v3818, %v3819
    %s3821 = vtos %v3820
    %v3822 = vrcp.pop 16.0
    %s3823 = vtos %v3822
    %s3824 = smul.f32 %s3821, %s3823
    %3825 = vrot.lane.b32.xlu0 %v3792, 124
    %v3826 = vpop.permute.xlu0 %3825
    %v3828 = vsel %vm3793, %v3826, 0.0
    %3829 = vadd.xlane.f32.xlu0 %v3828
    %v3830 = vpop.xlane.xlu0 %3829
    %v3831 = vrot.slane %v3830, 4
    %v3832 = vadd.f32 %v3830, %v3831
    %v3833 = vrot.slane %v3832, 2
    %v3834 = vadd.f32 %v3832, %v3833
    %v3835 = vrot.slane %v3834, 1
    %v3836 = vadd.f32 %v3834, %v3835
    %s3837 = vtos %v3836
    %v3838 = vrcp.pop 16.0
    %s3839 = vtos %v3838
    %s3840 = smul.f32 %s3837, %s3839
    %s3841 = sadd.f32 %s3806, %s3824
    %s3842 = smul.f32 %s3840, 2.0
    %s3843 = ssub.f32 %s3841, %s3842
    %s3844 = scalar_lea.smem [#allocation2], 0
    %3845 = sst [smem:[%s3844]] %s3843
    %v3846 = vsel %vm111, %v3693, 0
    %3848 = vmatprep.subr.mxu0 0.0
    %3849 = vmatpush1.msra.mxu0 %v62
    %3850 = vmatprep.subr.mxu0 0.0
    %3851 = vmatpush1.msra.mxu0 %v63
    %3852 = vmatprep.subr.mxu0 0.0
    %3853 = vmatpush1.msra.mxu0 0.0
    %3854 = vmatprep.subr.mxu0 0.0
    %3855 = vmatpush1.msra.mxu0 0.0
    %3856 = vmatprep.subr.mxu0 0.0
    %3857 = vmatpush1.msra.mxu0 0.0
    %3858 = vmatprep.subr.mxu0 0.0
    %3859 = vmatpush1.msra.mxu0 0.0
    %3860 = vmatprep.subr.mxu0 0.0
    %3861 = vmatpush1.msra.mxu0 0.0
    %3862 = vmatprep.subr.mxu0 0.0
    %3863 = vmatpush1.msra.mxu0 0.0
    %3864 = vmatprep.subr.mxu0 0.0
    %3865 = vmatpush1.msra.mxu0 0.0
    %3866 = vmatprep.subr.mxu0 0.0
    %3867 = vmatpush1.msra.mxu0 0.0
    %3868 = vmatprep.subr.mxu0 0.0
    %3869 = vmatpush1.msra.mxu0 0.0
    %3870 = vmatprep.subr.mxu0 0.0
    %3871 = vmatpush1.msra.mxu0 0.0
    %3872 = vmatprep.subr.mxu0 0.0
    %3873 = vmatpush1.msra.mxu0 0.0
    %3874 = vmatprep.subr.mxu0 0.0
    %3875 = vmatpush1.msra.mxu0 0.0
    %3876 = vmatprep.subr.mxu0 0.0
    %3877 = vmatpush1.msra.mxu0 0.0
    %3878 = vmatprep.subr.mxu0 0.0
    %3879 = vmatpush1.msra.mxu0 0.0
    %3880 = vmatprep.subr.mxu0 0.0
    %3881 = vmatpush1.msra.mxu0 0.0
    %3882 = vmatprep.subr.mxu0 0.0
    %3883 = vmatpush1.msra.mxu0 0.0
    %3884 = vmatprep.subr.mxu0 0.0
    %3885 = vmatpush1.msra.mxu0 0.0
    %3886 = vmatprep.subr.mxu0 0.0
    %3887 = vmatpush1.msra.mxu0 0.0
    %3888 = vmatprep.subr.mxu0 0.0
    %3889 = vmatpush1.msra.mxu0 0.0
    %3890 = vmatprep.subr.mxu0 0.0
    %3891 = vmatpush1.msra.mxu0 0.0
    %3892 = vmatprep.subr.mxu0 0.0
    %3893 = vmatpush1.msra.mxu0 0.0
    %3894 = vmatprep.subr.mxu0 0.0
    %3895 = vmatpush1.msra.mxu0 0.0
    %3896 = vmatprep.subr.mxu0 0.0
    %3897 = vmatpush1.msra.mxu0 0.0
    %3898 = vmatprep.subr.mxu0 0.0
    %3899 = vmatpush1.msra.mxu0 0.0
    %3900 = vmatprep.subr.mxu0 0.0
    %3901 = vmatpush1.msra.mxu0 0.0
    %3902 = vmatprep.subr.mxu0 0.0
    %3903 = vmatpush1.msra.mxu0 0.0
    %3904 = vmatprep.subr.mxu0 0.0
    %3905 = vmatpush1.msra.mxu0 0.0
    %3906 = vmatprep.subr.mxu0 0.0
    %3907 = vmatpush1.msra.mxu0 0.0
    %3908 = vmatprep.subr.mxu0 0.0
    %3909 = vmatpush1.msra.mxu0 0.0
    %3910 = vmatprep.subr.mxu0 0.0
    %3911 = vmatpush1.msra.mxu0 0.0
    %3912 = vmatprep.mubr.f32.mxu0 0.0
    %3913 = vmatmul.mubr.f32.gmra.mrb[0].mxu0 %v3846
    %v3914 = vpop.f32.mrb[0].mxu0
    %v3915 = vadd.f32 %v64, %v3914
    %v3916 = vpop.f32.mrb[0].mxu0
    %3917 = vdwg.mxu0
    %v3918 = vmax.f32 %v3915, 0.0
    %v3920 = vsel %vm111, %v3918, 0
    %3922 = vmatprep.subr.mxu0 0.0
    %3923 = vmatpush1.msra.mxu0 %v65
    %3924 = vmatprep.subr.mxu0 0.0
    %3925 = vmatpush1.msra.mxu0 %v66
    %3926 = vmatprep.subr.mxu0 0.0
    %3927 = vmatpush1.msra.mxu0 0.0
    %3928 = vmatprep.subr.mxu0 0.0
    %3929 = vmatpush1.msra.mxu0 0.0
    %3930 = vmatprep.subr.mxu0 0.0
    %3931 = vmatpush1.msra.mxu0 0.0
    %3932 = vmatprep.subr.mxu0 0.0
    %3933 = vmatpush1.msra.mxu0 0.0
    %3934 = vmatprep.subr.mxu0 0.0
    %3935 = vmatpush1.msra.mxu0 0.0
    %3936 = vmatprep.subr.mxu0 0.0
    %3937 = vmatpush1.msra.mxu0 0.0
    %3938 = vmatprep.subr.mxu0 0.0
    %3939 = vmatpush1.msra.mxu0 0.0
    %3940 = vmatprep.subr.mxu0 0.0
    %3941 = vmatpush1.msra.mxu0 0.0
    %3942 = vmatprep.subr.mxu0 0.0
    %3943 = vmatpush1.msra.mxu0 0.0
    %3944 = vmatprep.subr.mxu0 0.0
    %3945 = vmatpush1.msra.mxu0 0.0
    %3946 = vmatprep.subr.mxu0 0.0
    %3947 = vmatpush1.msra.mxu0 0.0
    %3948 = vmatprep.subr.mxu0 0.0
    %3949 = vmatpush1.msra.mxu0 0.0
    %3950 = vmatprep.subr.mxu0 0.0
    %3951 = vmatpush1.msra.mxu0 0.0
    %3952 = vmatprep.subr.mxu0 0.0
    %3953 = vmatpush1.msra.mxu0 0.0
    %3954 = vmatprep.subr.mxu0 0.0
    %3955 = vmatpush1.msra.mxu0 0.0
    %3956 = vmatprep.subr.mxu0 0.0
    %3957 = vmatpush1.msra.mxu0 0.0
    %3958 = vmatprep.subr.mxu0 0.0
    %3959 = vmatpush1.msra.mxu0 0.0
    %3960 = vmatprep.subr.mxu0 0.0
    %3961 = vmatpush1.msra.mxu0 0.0
    %3962 = vmatprep.subr.mxu0 0.0
    %3963 = vmatpush1.msra.mxu0 0.0
    %3964 = vmatprep.subr.mxu0 0.0
    %3965 = vmatpush1.msra.mxu0 0.0
    %3966 = vmatprep.subr.mxu0 0.0
    %3967 = vmatpush1.msra.mxu0 0.0
    %3968 = vmatprep.subr.mxu0 0.0
    %3969 = vmatpush1.msra.mxu0 0.0
    %3970 = vmatprep.subr.mxu0 0.0
    %3971 = vmatpush1.msra.mxu0 0.0
    %3972 = vmatprep.subr.mxu0 0.0
    %3973 = vmatpush1.msra.mxu0 0.0
    %3974 = vmatprep.subr.mxu0 0.0
    %3975 = vmatpush1.msra.mxu0 0.0
    %3976 = vmatprep.subr.mxu0 0.0
    %3977 = vmatpush1.msra.mxu0 0.0
    %3978 = vmatprep.subr.mxu0 0.0
    %3979 = vmatpush1.msra.mxu0 0.0
    %3980 = vmatprep.subr.mxu0 0.0
    %3981 = vmatpush1.msra.mxu0 0.0
    %3982 = vmatprep.subr.mxu0 0.0
    %3983 = vmatpush1.msra.mxu0 0.0
    %3984 = vmatprep.subr.mxu0 0.0
    %3985 = vmatpush1.msra.mxu0 0.0
    %3986 = vmatprep.mubr.f32.mxu0 0.0
    %3987 = vmatmul.mubr.f32.gmra.mrb[0].mxu0 %v3920
    %v3988 = vpop.f32.mrb[0].mxu0
    %v3989 = vadd.f32 %v67, %v3988
    %v3990 = vpop.f32.mrb[0].mxu0
    %3991 = vdwg.mxu0
    %v3992 = vmax.f32 %v3989, 0.0
    %v3994 = vsel %vm111, %v3992, 0
    %3996 = vmatprep.subr.mxu0 0.0
    %3997 = vmatpush1.msra.mxu0 %v68
    %3998 = vmatprep.subr.mxu0 0.0
    %3999 = vmatpush1.msra.mxu0 %v69
    %4000 = vmatprep.subr.mxu0 0.0
    %4001 = vmatpush1.msra.mxu0 0.0
    %4002 = vmatprep.subr.mxu0 0.0
    %4003 = vmatpush1.msra.mxu0 0.0
    %4004 = vmatprep.subr.mxu0 0.0
    %4005 = vmatpush1.msra.mxu0 0.0
    %4006 = vmatprep.subr.mxu0 0.0
    %4007 = vmatpush1.msra.mxu0 0.0
    %4008 = vmatprep.subr.mxu0 0.0
    %4009 = vmatpush1.msra.mxu0 0.0
    %4010 = vmatprep.subr.mxu0 0.0
    %4011 = vmatpush1.msra.mxu0 0.0
    %4012 = vmatprep.subr.mxu0 0.0
    %4013 = vmatpush1.msra.mxu0 0.0
    %4014 = vmatprep.subr.mxu0 0.0
    %4015 = vmatpush1.msra.mxu0 0.0
    %4016 = vmatprep.subr.mxu0 0.0
    %4017 = vmatpush1.msra.mxu0 0.0
    %4018 = vmatprep.subr.mxu0 0.0
    %4019 = vmatpush1.msra.mxu0 0.0
    %4020 = vmatprep.subr.mxu0 0.0
    %4021 = vmatpush1.msra.mxu0 0.0
    %4022 = vmatprep.subr.mxu0 0.0
    %4023 = vmatpush1.msra.mxu0 0.0
    %4024 = vmatprep.subr.mxu0 0.0
    %4025 = vmatpush1.msra.mxu0 0.0
    %4026 = vmatprep.subr.mxu0 0.0
    %4027 = vmatpush1.msra.mxu0 0.0
    %4028 = vmatprep.subr.mxu0 0.0
    %4029 = vmatpush1.msra.mxu0 0.0
    %4030 = vmatprep.subr.mxu0 0.0
    %4031 = vmatpush1.msra.mxu0 0.0
    %4032 = vmatprep.subr.mxu0 0.0
    %4033 = vmatpush1.msra.mxu0 0.0
    %4034 = vmatprep.subr.mxu0 0.0
    %4035 = vmatpush1.msra.mxu0 0.0
    %4036 = vmatprep.subr.mxu0 0.0
    %4037 = vmatpush1.msra.mxu0 0.0
    %4038 = vmatprep.subr.mxu0 0.0
    %4039 = vmatpush1.msra.mxu0 0.0
    %4040 = vmatprep.subr.mxu0 0.0
    %4041 = vmatpush1.msra.mxu0 0.0
    %4042 = vmatprep.subr.mxu0 0.0
    %4043 = vmatpush1.msra.mxu0 0.0
    %4044 = vmatprep.subr.mxu0 0.0
    %4045 = vmatpush1.msra.mxu0 0.0
    %4046 = vmatprep.subr.mxu0 0.0
    %4047 = vmatpush1.msra.mxu0 0.0
    %4048 = vmatprep.subr.mxu0 0.0
    %4049 = vmatpush1.msra.mxu0 0.0
    %4050 = vmatprep.subr.mxu0 0.0
    %4051 = vmatpush1.msra.mxu0 0.0
    %4052 = vmatprep.subr.mxu0 0.0
    %4053 = vmatpush1.msra.mxu0 0.0
    %4054 = vmatprep.subr.mxu0 0.0
    %4055 = vmatpush1.msra.mxu0 0.0
    %4056 = vmatprep.subr.mxu0 0.0
    %4057 = vmatpush1.msra.mxu0 0.0
    %4058 = vmatprep.subr.mxu0 0.0
    %4059 = vmatpush1.msra.mxu0 0.0
    %4060 = vmatprep.mubr.f32.mxu0 0.0
    %4061 = vmatmul.mubr.f32.gmra.mrb[0].mxu0 %v3994
    %v4062 = vpop.f32.mrb[0].mxu0
    %v4063 = vadd.f32 %v70, %v4062
    %v4064 = vpop.f32.mrb[0].mxu0
    %4065 = vdwg.mxu0
    %v4066 = vmax.f32 %v4063, 0.0
    %v4068 = vsel %vm111, %v4066, 0
    %4070 = vmatprep.subr.mxu0 0.0
    %4071 = vmatpush1.msra.mxu0 %v71
    %4072 = vmatprep.subr.mxu0 0.0
    %4073 = vmatpush1.msra.mxu0 %v72
    %4074 = vmatprep.subr.mxu0 0.0
    %4075 = vmatpush1.msra.mxu0 0.0
    %4076 = vmatprep.subr.mxu0 0.0
    %4077 = vmatpush1.msra.mxu0 0.0
    %4078 = vmatprep.subr.mxu0 0.0
    %4079 = vmatpush1.msra.mxu0 0.0
    %4080 = vmatprep.subr.mxu0 0.0
    %4081 = vmatpush1.msra.mxu0 0.0
    %4082 = vmatprep.subr.mxu0 0.0
    %4083 = vmatpush1.msra.mxu0 0.0
    %4084 = vmatprep.subr.mxu0 0.0
    %4085 = vmatpush1.msra.mxu0 0.0
    %4086 = vmatprep.subr.mxu0 0.0
    %4087 = vmatpush1.msra.mxu0 0.0
    %4088 = vmatprep.subr.mxu0 0.0
    %4089 = vmatpush1.msra.mxu0 0.0
    %4090 = vmatprep.subr.mxu0 0.0
    %4091 = vmatpush1.msra.mxu0 0.0
    %4092 = vmatprep.subr.mxu0 0.0
    %4093 = vmatpush1.msra.mxu0 0.0
    %4094 = vmatprep.subr.mxu0 0.0
    %4095 = vmatpush1.msra.mxu0 0.0
    %4096 = vmatprep.subr.mxu0 0.0
    %4097 = vmatpush1.msra.mxu0 0.0
    %4098 = vmatprep.subr.mxu0 0.0
    %4099 = vmatpush1.msra.mxu0 0.0
    %4100 = vmatprep.subr.mxu0 0.0
    %4101 = vmatpush1.msra.mxu0 0.0
    %4102 = vmatprep.subr.mxu0 0.0
    %4103 = vmatpush1.msra.mxu0 0.0
    %4104 = vmatprep.subr.mxu0 0.0
    %4105 = vmatpush1.msra.mxu0 0.0
    %4106 = vmatprep.subr.mxu0 0.0
    %4107 = vmatpush1.msra.mxu0 0.0
    %4108 = vmatprep.subr.mxu0 0.0
    %4109 = vmatpush1.msra.mxu0 0.0
    %4110 = vmatprep.subr.mxu0 0.0
    %4111 = vmatpush1.msra.mxu0 0.0
    %4112 = vmatprep.subr.mxu0 0.0
    %4113 = vmatpush1.msra.mxu0 0.0
    %4114 = vmatprep.subr.mxu0 0.0
    %4115 = vmatpush1.msra.mxu0 0.0
    %4116 = vmatprep.subr.mxu0 0.0
    %4117 = vmatpush1.msra.mxu0 0.0
    %4118 = vmatprep.subr.mxu0 0.0
    %4119 = vmatpush1.msra.mxu0 0.0
    %4120 = vmatprep.subr.mxu0 0.0
    %4121 = vmatpush1.msra.mxu0 0.0
    %4122 = vmatprep.subr.mxu0 0.0
    %4123 = vmatpush1.msra.mxu0 0.0
    %4124 = vmatprep.subr.mxu0 0.0
    %4125 = vmatpush1.msra.mxu0 0.0
    %4126 = vmatprep.subr.mxu0 0.0
    %4127 = vmatpush1.msra.mxu0 0.0
    %4128 = vmatprep.subr.mxu0 0.0
    %4129 = vmatpush1.msra.mxu0 0.0
    %4130 = vmatprep.subr.mxu0 0.0
    %4131 = vmatpush1.msra.mxu0 0.0
    %4132 = vmatprep.subr.mxu0 0.0
    %4133 = vmatpush1.msra.mxu0 0.0
    %4134 = vmatprep.mubr.f32.mxu0 0.0
    %4135 = vmatmul.mubr.f32.gmra.mrb[0].mxu0 %v4068
    %v4136 = vpop.f32.mrb[0].mxu0
    %v4137 = vadd.f32 %v73, %v4136
    %v4138 = vpop.f32.mrb[0].mxu0
    %4139 = vdwg.mxu0
    %vm4140 = vcmask 3072
    %4141 = vst.msk [vmem:[%s4] sm:$0xf] %vm4140, %v4137
    %4142 = vmatprep.subr.mxu0 %v75
    %4143 = vmatpush1.msra.mxu0 %v74
    %4144 = vmatprep.subr.mxu0 %v77
    %4145 = vmatpush1.msra.mxu0 %v76
    %4146 = vmatprep.subr.mxu0 0.0
    %4147 = vmatpush1.msra.mxu0 0.0
    %4148 = vmatprep.subr.mxu0 0.0
    %4149 = vmatpush1.msra.mxu0 0.0
    %4150 = vmatprep.subr.mxu0 0.0
    %4151 = vmatpush1.msra.mxu0 0.0
    %4152 = vmatprep.subr.mxu0 0.0
    %4153 = vmatpush1.msra.mxu0 0.0
    %4154 = vmatprep.subr.mxu0 0.0
    %4155 = vmatpush1.msra.mxu0 0.0
    %4156 = vmatprep.subr.mxu0 0.0
    %4157 = vmatpush1.msra.mxu0 0.0
    %4158 = vmatprep.subr.mxu0 0.0
    %4159 = vmatpush1.msra.mxu0 0.0
    %4160 = vmatprep.subr.mxu0 0.0
    %4161 = vmatpush1.msra.mxu0 0.0
    %4162 = vmatprep.subr.mxu0 0.0
    %4163 = vmatpush1.msra.mxu0 0.0
    %4164 = vmatprep.subr.mxu0 0.0
    %4165 = vmatpush1.msra.mxu0 0.0
    %4166 = vmatprep.subr.mxu0 0.0
    %4167 = vmatpush1.msra.mxu0 0.0
    %4168 = vmatprep.subr.mxu0 0.0
    %4169 = vmatpush1.msra.mxu0 0.0
    %4170 = vmatprep.subr.mxu0 0.0
    %4171 = vmatpush1.msra.mxu0 0.0
    %4172 = vmatprep.subr.mxu0 0.0
    %4173 = vmatpush1.msra.mxu0 0.0
    %4174 = vmatprep.subr.mxu0 0.0
    %4175 = vmatpush1.msra.mxu0 0.0
    %4176 = vmatprep.subr.mxu0 0.0
    %4177 = vmatpush1.msra.mxu0 0.0
    %4178 = vmatprep.subr.mxu0 0.0
    %4179 = vmatpush1.msra.mxu0 0.0
    %4180 = vmatprep.subr.mxu0 0.0
    %4181 = vmatpush1.msra.mxu0 0.0
    %4182 = vmatprep.subr.mxu0 0.0
    %4183 = vmatpush1.msra.mxu0 0.0
    %4184 = vmatprep.subr.mxu0 0.0
    %4185 = vmatpush1.msra.mxu0 0.0
    %4186 = vmatprep.subr.mxu0 0.0
    %4187 = vmatpush1.msra.mxu0 0.0
    %4188 = vmatprep.subr.mxu0 0.0
    %4189 = vmatpush1.msra.mxu0 0.0
    %4190 = vmatprep.subr.mxu0 0.0
    %4191 = vmatpush1.msra.mxu0 0.0
    %4192 = vmatprep.subr.mxu0 0.0
    %4193 = vmatpush1.msra.mxu0 0.0
    %4194 = vmatprep.subr.mxu0 0.0
    %4195 = vmatpush1.msra.mxu0 0.0
    %4196 = vmatprep.subr.mxu0 0.0
    %4197 = vmatpush1.msra.mxu0 0.0
    %4198 = vmatprep.subr.mxu0 0.0
    %4199 = vmatpush1.msra.mxu0 0.0
    %4200 = vmatprep.subr.mxu0 0.0
    %4201 = vmatpush1.msra.mxu0 0.0
    %4202 = vmatprep.subr.mxu0 0.0
    %4203 = vmatpush1.msra.mxu0 0.0
    %4204 = vmatprep.subr.mxu0 0.0
    %4205 = vmatpush1.msra.mxu0 0.0
    %4206 = vmatprep.mubr.f32.mxu0 0.0
    %4207 = vmatmul.mubr.f32.gmra.mrb[0].mxu0 %v3994
    %v4208 = vpop.f32.mrb[0].mxu0
    %v4209 = vadd.f32 %v96, %v4208
    %v4210 = vpop.f32.mrb[0].mxu0
    %v4211 = vadd.f32 %v100, %v4210
    %4212 = vdwg.mxu0
    %v4213 = vxor.u32 %v4209, 2147483648
    %v4214 = vxor.u32 %v4211, 2147483648
    %v4215 = vmul.f32 %v4213, 1.442695
    %v4216 = vpow.pop %v4215
    %v4217 = vmul.f32 %v4214, 1.442695
    %v4218 = vpow.pop %v4217
    %v4219 = vadd.f32 %v4216, 1.0
    %v4220 = vadd.f32 %v4218, 1.0
    %v4221 = vrcp.pop %v4219
    %v4222 = vmul.f32 1.0, %v4221
    %v4223 = vrcp.pop %v4220
    %v4224 = vmul.f32 1.0, %v4223
    %v4225 = vtanh.pop %v4211
    %4227 = vrot.lane.b32.xlu0 %v4225, 112
    %v4228 = vpop.permute.xlu0 %4227
    %v4230 = vmul.f32 %v4222, %v4228
    %v4231 = vtanh.pop %v4230
    %4233 = vrot.lane.b32.xlu0 %v4231, 96
    %v4234 = vpop.permute.xlu0 %4233
    %v4236 = vmul.f32 %v4222, %v4234
    %v4237 = vmul.f32 %v4224, %v4234
    %4240 = vrot.lane.b32.xlu0 %v4236, 32
    %v4241 = vpop.permute.xlu0 %4240
    %4242 = vrot.lane.b32.xlu0 %v4237, 32
    %v4243 = vpop.permute.xlu0 %4242
    %v4244 = vsel %vm598, %v4241, %v4243
    %v4245 = vsel %vm213, %v4244, 0
    %4247 = vmatprep.subr.mxu0 %v79
    %4248 = vmatpush1.msra.mxu0 %v78
    %4249 = vmatprep.subr.mxu0 %v81
    %4250 = vmatpush1.msra.mxu0 %v80
    %4251 = vmatprep.subr.mxu0 %v83
    %4252 = vmatpush1.msra.mxu0 %v82
    %4253 = vmatprep.subr.mxu0 %v85
    %4254 = vmatpush1.msra.mxu0 %v84
    %4255 = vmatprep.subr.mxu0 %v87
    %4256 = vmatpush1.msra.mxu0 %v86
    %4257 = vmatprep.subr.mxu0 %v89
    %4258 = vmatpush1.msra.mxu0 %v88
    %4259 = vmatprep.subr.mxu0 0.0
    %4260 = vmatpush1.msra.mxu0 0.0
    %4261 = vmatprep.subr.mxu0 0.0
    %4262 = vmatpush1.msra.mxu0 0.0
    %4263 = vmatprep.subr.mxu0 0.0
    %4264 = vmatpush1.msra.mxu0 0.0
    %4265 = vmatprep.subr.mxu0 0.0
    %4266 = vmatpush1.msra.mxu0 0.0
    %4267 = vmatprep.subr.mxu0 0.0
    %4268 = vmatpush1.msra.mxu0 0.0
    %4269 = vmatprep.subr.mxu0 0.0
    %4270 = vmatpush1.msra.mxu0 0.0
    %4271 = vmatprep.subr.mxu0 0.0
    %4272 = vmatpush1.msra.mxu0 0.0
    %4273 = vmatprep.subr.mxu0 0.0
    %4274 = vmatpush1.msra.mxu0 0.0
    %4275 = vmatprep.subr.mxu0 0.0
    %4276 = vmatpush1.msra.mxu0 0.0
    %4277 = vmatprep.subr.mxu0 0.0
    %4278 = vmatpush1.msra.mxu0 0.0
    %4279 = vmatprep.subr.mxu0 0.0
    %4280 = vmatpush1.msra.mxu0 0.0
    %4281 = vmatprep.subr.mxu0 0.0
    %4282 = vmatpush1.msra.mxu0 0.0
    %4283 = vmatprep.subr.mxu0 0.0
    %4284 = vmatpush1.msra.mxu0 0.0
    %4285 = vmatprep.subr.mxu0 0.0
    %4286 = vmatpush1.msra.mxu0 0.0
    %4287 = vmatprep.subr.mxu0 0.0
    %4288 = vmatpush1.msra.mxu0 0.0
    %4289 = vmatprep.subr.mxu0 0.0
    %4290 = vmatpush1.msra.mxu0 0.0
    %4291 = vmatprep.subr.mxu0 0.0
    %4292 = vmatpush1.msra.mxu0 0.0
    %4293 = vmatprep.subr.mxu0 0.0
    %4294 = vmatpush1.msra.mxu0 0.0
    %4295 = vmatprep.subr.mxu0 0.0
    %4296 = vmatpush1.msra.mxu0 0.0
    %4297 = vmatprep.subr.mxu0 0.0
    %4298 = vmatpush1.msra.mxu0 0.0
    %4299 = vmatprep.subr.mxu0 0.0
    %4300 = vmatpush1.msra.mxu0 0.0
    %4301 = vmatprep.subr.mxu0 0.0
    %4302 = vmatpush1.msra.mxu0 0.0
    %4303 = vmatprep.subr.mxu0 0.0
    %4304 = vmatpush1.msra.mxu0 0.0
    %4305 = vmatprep.subr.mxu0 0.0
    %4306 = vmatpush1.msra.mxu0 0.0
    %4307 = vmatprep.subr.mxu0 0.0
    %4308 = vmatpush1.msra.mxu0 0.0
    %4309 = vmatprep.subr.mxu0 0.0
    %4310 = vmatpush1.msra.mxu0 0.0
    %4311 = vmatprep.mubr.f32.mxu0 0.0
    %4312 = vmatmul.mubr.f32.gmra.mrb[0].mxu0 %v4245
    %v4313 = vpop.f32.mrb[0].mxu0
    %v4314 = vadd.f32 %v96, %v4313
    %v4315 = vpop.f32.mrb[0].mxu0
    %v4316 = vadd.f32 %v100, %v4315
    %4317 = vdwg.mxu0
    %v4318 = vxor.u32 %v4314, 2147483648
    %v4319 = vxor.u32 %v4316, 2147483648
    %v4320 = vmul.f32 %v4318, 1.442695
    %v4321 = vpow.pop %v4320
    %v4322 = vmul.f32 %v4319, 1.442695
    %v4323 = vpow.pop %v4322
    %v4324 = vadd.f32 %v4321, 1.0
    %v4325 = vadd.f32 %v4323, 1.0
    %v4326 = vrcp.pop %v4324
    %v4327 = vmul.f32 1.0, %v4326
    %v4328 = vrcp.pop %v4325
    %v4329 = vmul.f32 1.0, %v4328
    %v4330 = vtanh.pop %v4316
    %4332 = vrot.lane.b32.xlu0 %v4230, 48
    %v4333 = vpop.permute.xlu0 %4332
    %v4335 = vmul.f32 %v4327, %v4333
    %4337 = vrot.lane.b32.xlu0 %v4330, 112
    %v4338 = vpop.permute.xlu0 %4337
    %v4340 = vmul.f32 %v4327, %v4338
    %4342 = vrot.lane.b32.xlu0 %v4340, 48
    %v4343 = vpop.permute.xlu0 %4342
    %v4345 = vadd.f32 %v4335, %v4343
    %v4346 = vtanh.pop %v4345
    %4348 = vrot.lane.b32.xlu0 %v4346, 48
    %v4349 = vpop.permute.xlu0 %4348
    %v4351 = vmul.f32 %v4327, %v4349
    %v4352 = vmul.f32 %v4329, %v4349
    %4355 = vrot.lane.b32.xlu0 %v4351, 32
    %v4356 = vpop.permute.xlu0 %4355
    %4357 = vrot.lane.b32.xlu0 %v4352, 32
    %v4358 = vpop.permute.xlu0 %4357
    %v4359 = vsel %vm598, %v4356, %v4358
    %v4360 = vsel %vm213, %v4359, 0
    %4362 = vmatprep.subr.mxu0 %v79
    %4363 = vmatpush1.msra.mxu0 %v78
    %4364 = vmatprep.subr.mxu0 %v81
    %4365 = vmatpush1.msra.mxu0 %v80
    %4366 = vmatprep.subr.mxu0 %v83
    %4367 = vmatpush1.msra.mxu0 %v82
    %4368 = vmatprep.subr.mxu0 %v85
    %4369 = vmatpush1.msra.mxu0 %v84
    %4370 = vmatprep.subr.mxu0 %v87
    %4371 = vmatpush1.msra.mxu0 %v86
    %4372 = vmatprep.subr.mxu0 %v89
    %4373 = vmatpush1.msra.mxu0 %v88
    %4374 = vmatprep.subr.mxu0 0.0
    %4375 = vmatpush1.msra.mxu0 0.0
    %4376 = vmatprep.subr.mxu0 0.0
    %4377 = vmatpush1.msra.mxu0 0.0
    %4378 = vmatprep.subr.mxu0 0.0
    %4379 = vmatpush1.msra.mxu0 0.0
    %4380 = vmatprep.subr.mxu0 0.0
    %4381 = vmatpush1.msra.mxu0 0.0
    %4382 = vmatprep.subr.mxu0 0.0
    %4383 = vmatpush1.msra.mxu0 0.0
    %4384 = vmatprep.subr.mxu0 0.0
    %4385 = vmatpush1.msra.mxu0 0.0
    %4386 = vmatprep.subr.mxu0 0.0
    %4387 = vmatpush1.msra.mxu0 0.0
    %4388 = vmatprep.subr.mxu0 0.0
    %4389 = vmatpush1.msra.mxu0 0.0
    %4390 = vmatprep.subr.mxu0 0.0
    %4391 = vmatpush1.msra.mxu0 0.0
    %4392 = vmatprep.subr.mxu0 0.0
    %4393 = vmatpush1.msra.mxu0 0.0
    %4394 = vmatprep.subr.mxu0 0.0
    %4395 = vmatpush1.msra.mxu0 0.0
    %4396 = vmatprep.subr.mxu0 0.0
    %4397 = vmatpush1.msra.mxu0 0.0
    %4398 = vmatprep.subr.mxu0 0.0
    %4399 = vmatpush1.msra.mxu0 0.0
    %4400 = vmatprep.subr.mxu0 0.0
    %4401 = vmatpush1.msra.mxu0 0.0
    %4402 = vmatprep.subr.mxu0 0.0
    %4403 = vmatpush1.msra.mxu0 0.0
    %4404 = vmatprep.subr.mxu0 0.0
    %4405 = vmatpush1.msra.mxu0 0.0
    %4406 = vmatprep.subr.mxu0 0.0
    %4407 = vmatpush1.msra.mxu0 0.0
    %4408 = vmatprep.subr.mxu0 0.0
    %4409 = vmatpush1.msra.mxu0 0.0
    %4410 = vmatprep.subr.mxu0 0.0
    %4411 = vmatpush1.msra.mxu0 0.0
    %4412 = vmatprep.subr.mxu0 0.0
    %4413 = vmatpush1.msra.mxu0 0.0
    %4414 = vmatprep.subr.mxu0 0.0
    %4415 = vmatpush1.msra.mxu0 0.0
    %4416 = vmatprep.subr.mxu0 0.0
    %4417 = vmatpush1.msra.mxu0 0.0
    %4418 = vmatprep.subr.mxu0 0.0
    %4419 = vmatpush1.msra.mxu0 0.0
    %4420 = vmatprep.subr.mxu0 0.0
    %4421 = vmatpush1.msra.mxu0 0.0
    %4422 = vmatprep.subr.mxu0 0.0
    %4423 = vmatpush1.msra.mxu0 0.0
    %4424 = vmatprep.subr.mxu0 0.0
    %4425 = vmatpush1.msra.mxu0 0.0
    %4426 = vmatprep.mubr.f32.mxu0 0.0
    %4427 = vmatmul.mubr.f32.gmra.mrb[0].mxu0 %v4360
    %v4428 = vpop.f32.mrb[0].mxu0
    %v4429 = vadd.f32 %v96, %v4428
    %v4430 = vpop.f32.mrb[0].mxu0
    %v4431 = vadd.f32 %v100, %v4430
    %4432 = vdwg.mxu0
    %v4433 = vxor.u32 %v4429, 2147483648
    %v4434 = vxor.u32 %v4431, 2147483648
    %v4435 = vmul.f32 %v4433, 1.442695
    %v4436 = vpow.pop %v4435
    %v4437 = vmul.f32 %v4434, 1.442695
    %v4438 = vpow.pop %v4437
    %v4439 = vadd.f32 %v4436, 1.0
    %v4440 = vadd.f32 %v4438, 1.0
    %v4441 = vrcp.pop %v4439
    %v4442 = vmul.f32 1.0, %v4441
    %v4443 = vrcp.pop %v4440
    %v4444 = vmul.f32 1.0, %v4443
    %v4445 = vtanh.pop %v4431
    %v4446 = vmul.f32 %v4442, %v4345
    %4448 = vrot.lane.b32.xlu0 %v4445, 112
    %v4449 = vpop.permute.xlu0 %4448
    %v4451 = vmul.f32 %v4442, %v4449
    %4453 = vrot.lane.b32.xlu0 %v4451, 48
    %v4454 = vpop.permute.xlu0 %4453
    %v4456 = vadd.f32 %v4446, %v4454
    %v4457 = vtanh.pop %v4456
    %4459 = vrot.lane.b32.xlu0 %v4457, 48
    %v4460 = vpop.permute.xlu0 %4459
    %v4462 = vmul.f32 %v4442, %v4460
    %v4463 = vmul.f32 %v4444, %v4460
    %4466 = vrot.lane.b32.xlu0 %v4462, 32
    %v4467 = vpop.permute.xlu0 %4466
    %4468 = vrot.lane.b32.xlu0 %v4463, 32
    %v4469 = vpop.permute.xlu0 %4468
    %v4470 = vsel %vm598, %v4467, %v4469
    %v4471 = vsel %vm213, %v4470, 0
    %4473 = vmatprep.subr.mxu0 %v79
    %4474 = vmatpush1.msra.mxu0 %v78
    %4475 = vmatprep.subr.mxu0 %v81
    %4476 = vmatpush1.msra.mxu0 %v80
    %4477 = vmatprep.subr.mxu0 %v83
    %4478 = vmatpush1.msra.mxu0 %v82
    %4479 = vmatprep.subr.mxu0 %v85
    %4480 = vmatpush1.msra.mxu0 %v84
    %4481 = vmatprep.subr.mxu0 %v87
    %4482 = vmatpush1.msra.mxu0 %v86
    %4483 = vmatprep.subr.mxu0 %v89
    %4484 = vmatpush1.msra.mxu0 %v88
    %4485 = vmatprep.subr.mxu0 0.0
    %4486 = vmatpush1.msra.mxu0 0.0
    %4487 = vmatprep.subr.mxu0 0.0
    %4488 = vmatpush1.msra.mxu0 0.0
    %4489 = vmatprep.subr.mxu0 0.0
    %4490 = vmatpush1.msra.mxu0 0.0
    %4491 = vmatprep.subr.mxu0 0.0
    %4492 = vmatpush1.msra.mxu0 0.0
    %4493 = vmatprep.subr.mxu0 0.0
    %4494 = vmatpush1.msra.mxu0 0.0
    %4495 = vmatprep.subr.mxu0 0.0
    %4496 = vmatpush1.msra.mxu0 0.0
    %4497 = vmatprep.subr.mxu0 0.0
    %4498 = vmatpush1.msra.mxu0 0.0
    %4499 = vmatprep.subr.mxu0 0.0
    %4500 = vmatpush1.msra.mxu0 0.0
    %4501 = vmatprep.subr.mxu0 0.0
    %4502 = vmatpush1.msra.mxu0 0.0
    %4503 = vmatprep.subr.mxu0 0.0
    %4504 = vmatpush1.msra.mxu0 0.0
    %4505 = vmatprep.subr.mxu0 0.0
    %4506 = vmatpush1.msra.mxu0 0.0
    %4507 = vmatprep.subr.mxu0 0.0
    %4508 = vmatpush1.msra.mxu0 0.0
    %4509 = vmatprep.subr.mxu0 0.0
    %4510 = vmatpush1.msra.mxu0 0.0
    %4511 = vmatprep.subr.mxu0 0.0
    %4512 = vmatpush1.msra.mxu0 0.0
    %4513 = vmatprep.subr.mxu0 0.0
    %4514 = vmatpush1.msra.mxu0 0.0
    %4515 = vmatprep.subr.mxu0 0.0
    %4516 = vmatpush1.msra.mxu0 0.0
    %4517 = vmatprep.subr.mxu0 0.0
    %4518 = vmatpush1.msra.mxu0 0.0
    %4519 = vmatprep.subr.mxu0 0.0
    %4520 = vmatpush1.msra.mxu0 0.0
    %4521 = vmatprep.subr.mxu0 0.0
    %4522 = vmatpush1.msra.mxu0 0.0
    %4523 = vmatprep.subr.mxu0 0.0
    %4524 = vmatpush1.msra.mxu0 0.0
    %4525 = vmatprep.subr.mxu0 0.0
    %4526 = vmatpush1.msra.mxu0 0.0
    %4527 = vmatprep.subr.mxu0 0.0
    %4528 = vmatpush1.msra.mxu0 0.0
    %4529 = vmatprep.subr.mxu0 0.0
    %4530 = vmatpush1.msra.mxu0 0.0
    %4531 = vmatprep.subr.mxu0 0.0
    %4532 = vmatpush1.msra.mxu0 0.0
    %4533 = vmatprep.subr.mxu0 0.0
    %4534 = vmatpush1.msra.mxu0 0.0
    %4535 = vmatprep.subr.mxu0 0.0
    %4536 = vmatpush1.msra.mxu0 0.0
    %4537 = vmatprep.mubr.f32.mxu0 0.0
    %4538 = vmatmul.mubr.f32.gmra.mrb[0].mxu0 %v4471
    %v4539 = vpop.f32.mrb[0].mxu0
    %v4540 = vadd.f32 %v96, %v4539
    %v4541 = vpop.f32.mrb[0].mxu0
    %v4542 = vadd.f32 %v100, %v4541
    %4543 = vdwg.mxu0
    %v4544 = vxor.u32 %v4540, 2147483648
    %v4545 = vxor.u32 %v4542, 2147483648
    %v4546 = vmul.f32 %v4544, 1.442695
    %v4547 = vpow.pop %v4546
    %v4548 = vmul.f32 %v4545, 1.442695
    %v4549 = vpow.pop %v4548
    %v4550 = vadd.f32 %v4547, 1.0
    %v4551 = vadd.f32 %v4549, 1.0
    %v4552 = vrcp.pop %v4550
    %v4553 = vmul.f32 1.0, %v4552
    %v4554 = vrcp.pop %v4551
    %v4555 = vmul.f32 1.0, %v4554
    %v4556 = vtanh.pop %v4542
    %v4557 = vmul.f32 %v4553, %v4456
    %4559 = vrot.lane.b32.xlu0 %v4556, 112
    %v4560 = vpop.permute.xlu0 %4559
    %v4562 = vmul.f32 %v4553, %v4560
    %4564 = vrot.lane.b32.xlu0 %v4562, 48
    %v4565 = vpop.permute.xlu0 %4564
    %v4567 = vadd.f32 %v4557, %v4565
    %v4568 = vtanh.pop %v4567
    %4570 = vrot.lane.b32.xlu0 %v4568, 48
    %v4571 = vpop.permute.xlu0 %4570
    %v4573 = vmul.f32 %v4553, %v4571
    %v4574 = vmul.f32 %v4555, %v4571
    %4577 = vrot.lane.b32.xlu0 %v4573, 32
    %v4578 = vpop.permute.xlu0 %4577
    %4579 = vrot.lane.b32.xlu0 %v4574, 32
    %v4580 = vpop.permute.xlu0 %4579
    %v4581 = vsel %vm598, %v4578, %v4580
    %v4582 = vsel %vm213, %v4581, 0
    %4584 = vmatprep.subr.mxu0 %v79
    %4585 = vmatpush1.msra.mxu0 %v78
    %4586 = vmatprep.subr.mxu0 %v81
    %4587 = vmatpush1.msra.mxu0 %v80
    %4588 = vmatprep.subr.mxu0 %v83
    %4589 = vmatpush1.msra.mxu0 %v82
    %4590 = vmatprep.subr.mxu0 %v85
    %4591 = vmatpush1.msra.mxu0 %v84
    %4592 = vmatprep.subr.mxu0 %v87
    %4593 = vmatpush1.msra.mxu0 %v86
    %4594 = vmatprep.subr.mxu0 %v89
    %4595 = vmatpush1.msra.mxu0 %v88
    %4596 = vmatprep.subr.mxu0 0.0
    %4597 = vmatpush1.msra.mxu0 0.0
    %4598 = vmatprep.subr.mxu0 0.0
    %4599 = vmatpush1.msra.mxu0 0.0
    %4600 = vmatprep.subr.mxu0 0.0
    %4601 = vmatpush1.msra.mxu0 0.0
    %4602 = vmatprep.subr.mxu0 0.0
    %4603 = vmatpush1.msra.mxu0 0.0
    %4604 = vmatprep.subr.mxu0 0.0
    %4605 = vmatpush1.msra.mxu0 0.0
    %4606 = vmatprep.subr.mxu0 0.0
    %4607 = vmatpush1.msra.mxu0 0.0
    %4608 = vmatprep.subr.mxu0 0.0
    %4609 = vmatpush1.msra.mxu0 0.0
    %4610 = vmatprep.subr.mxu0 0.0
    %4611 = vmatpush1.msra.mxu0 0.0
    %4612 = vmatprep.subr.mxu0 0.0
    %4613 = vmatpush1.msra.mxu0 0.0
    %4614 = vmatprep.subr.mxu0 0.0
    %4615 = vmatpush1.msra.mxu0 0.0
    %4616 = vmatprep.subr.mxu0 0.0
    %4617 = vmatpush1.msra.mxu0 0.0
    %4618 = vmatprep.subr.mxu0 0.0
    %4619 = vmatpush1.msra.mxu0 0.0
    %4620 = vmatprep.subr.mxu0 0.0
    %4621 = vmatpush1.msra.mxu0 0.0
    %4622 = vmatprep.subr.mxu0 0.0
    %4623 = vmatpush1.msra.mxu0 0.0
    %4624 = vmatprep.subr.mxu0 0.0
    %4625 = vmatpush1.msra.mxu0 0.0
    %4626 = vmatprep.subr.mxu0 0.0
    %4627 = vmatpush1.msra.mxu0 0.0
    %4628 = vmatprep.subr.mxu0 0.0
    %4629 = vmatpush1.msra.mxu0 0.0
    %4630 = vmatprep.subr.mxu0 0.0
    %4631 = vmatpush1.msra.mxu0 0.0
    %4632 = vmatprep.subr.mxu0 0.0
    %4633 = vmatpush1.msra.mxu0 0.0
    %4634 = vmatprep.subr.mxu0 0.0
    %4635 = vmatpush1.msra.mxu0 0.0
    %4636 = vmatprep.subr.mxu0 0.0
    %4637 = vmatpush1.msra.mxu0 0.0
    %4638 = vmatprep.subr.mxu0 0.0
    %4639 = vmatpush1.msra.mxu0 0.0
    %4640 = vmatprep.subr.mxu0 0.0
    %4641 = vmatpush1.msra.mxu0 0.0
    %4642 = vmatprep.subr.mxu0 0.0
    %4643 = vmatpush1.msra.mxu0 0.0
    %4644 = vmatprep.subr.mxu0 0.0
    %4645 = vmatpush1.msra.mxu0 0.0
    %4646 = vmatprep.subr.mxu0 0.0
    %4647 = vmatpush1.msra.mxu0 0.0
    %4648 = vmatprep.mubr.f32.mxu0 0.0
    %4649 = vmatmul.mubr.f32.gmra.mrb[0].mxu0 %v4582
    %v4650 = vpop.f32.mrb[0].mxu0
    %v4651 = vadd.f32 %v96, %v4650
    %v4652 = vpop.f32.mrb[0].mxu0
    %v4653 = vadd.f32 %v100, %v4652
    %4654 = vdwg.mxu0
    %v4655 = vxor.u32 %v4651, 2147483648
    %v4656 = vxor.u32 %v4653, 2147483648
    %v4657 = vmul.f32 %v4655, 1.442695
    %v4658 = vpow.pop %v4657
    %v4659 = vmul.f32 %v4656, 1.442695
    %v4660 = vpow.pop %v4659
    %v4661 = vadd.f32 %v4658, 1.0
    %v4662 = vadd.f32 %v4660, 1.0
    %v4663 = vrcp.pop %v4661
    %v4664 = vmul.f32 1.0, %v4663
    %v4665 = vrcp.pop %v4662
    %v4666 = vmul.f32 1.0, %v4665
    %v4667 = vtanh.pop %v4653
    %v4668 = vmul.f32 %v4664, %v4567
    %4670 = vrot.lane.b32.xlu0 %v4667, 112
    %v4671 = vpop.permute.xlu0 %4670
    %v4673 = vmul.f32 %v4664, %v4671
    %4675 = vrot.lane.b32.xlu0 %v4673, 48
    %v4676 = vpop.permute.xlu0 %4675
    %v4678 = vadd.f32 %v4668, %v4676
    %v4679 = vtanh.pop %v4678
    %4681 = vrot.lane.b32.xlu0 %v4679, 48
    %v4682 = vpop.permute.xlu0 %4681
    %v4684 = vmul.f32 %v4664, %v4682
    %v4685 = vmul.f32 %v4666, %v4682
    %4688 = vrot.lane.b32.xlu0 %v4684, 32
    %v4689 = vpop.permute.xlu0 %4688
    %4690 = vrot.lane.b32.xlu0 %v4685, 32
    %v4691 = vpop.permute.xlu0 %4690
    %v4692 = vsel %vm598, %v4689, %v4691
    %v4693 = vsel %vm213, %v4692, 0
    %4695 = vmatprep.subr.mxu0 %v79
    %4696 = vmatpush1.msra.mxu0 %v78
    %4697 = vmatprep.subr.mxu0 %v81
    %4698 = vmatpush1.msra.mxu0 %v80
    %4699 = vmatprep.subr.mxu0 %v83
    %4700 = vmatpush1.msra.mxu0 %v82
    %4701 = vmatprep.subr.mxu0 %v85
    %4702 = vmatpush1.msra.mxu0 %v84
    %4703 = vmatprep.subr.mxu0 %v87
    %4704 = vmatpush1.msra.mxu0 %v86
    %4705 = vmatprep.subr.mxu0 %v89
    %4706 = vmatpush1.msra.mxu0 %v88
    %4707 = vmatprep.subr.mxu0 0.0
    %4708 = vmatpush1.msra.mxu0 0.0
    %4709 = vmatprep.subr.mxu0 0.0
    %4710 = vmatpush1.msra.mxu0 0.0
    %4711 = vmatprep.subr.mxu0 0.0
    %4712 = vmatpush1.msra.mxu0 0.0
    %4713 = vmatprep.subr.mxu0 0.0
    %4714 = vmatpush1.msra.mxu0 0.0
    %4715 = vmatprep.subr.mxu0 0.0
    %4716 = vmatpush1.msra.mxu0 0.0
    %4717 = vmatprep.subr.mxu0 0.0
    %4718 = vmatpush1.msra.mxu0 0.0
    %4719 = vmatprep.subr.mxu0 0.0
    %4720 = vmatpush1.msra.mxu0 0.0
    %4721 = vmatprep.subr.mxu0 0.0
    %4722 = vmatpush1.msra.mxu0 0.0
    %4723 = vmatprep.subr.mxu0 0.0
    %4724 = vmatpush1.msra.mxu0 0.0
    %4725 = vmatprep.subr.mxu0 0.0
    %4726 = vmatpush1.msra.mxu0 0.0
    %4727 = vmatprep.subr.mxu0 0.0
    %4728 = vmatpush1.msra.mxu0 0.0
    %4729 = vmatprep.subr.mxu0 0.0
    %4730 = vmatpush1.msra.mxu0 0.0
    %4731 = vmatprep.subr.mxu0 0.0
    %4732 = vmatpush1.msra.mxu0 0.0
    %4733 = vmatprep.subr.mxu0 0.0
    %4734 = vmatpush1.msra.mxu0 0.0
    %4735 = vmatprep.subr.mxu0 0.0
    %4736 = vmatpush1.msra.mxu0 0.0
    %4737 = vmatprep.subr.mxu0 0.0
    %4738 = vmatpush1.msra.mxu0 0.0
    %4739 = vmatprep.subr.mxu0 0.0
    %4740 = vmatpush1.msra.mxu0 0.0
    %4741 = vmatprep.subr.mxu0 0.0
    %4742 = vmatpush1.msra.mxu0 0.0
    %4743 = vmatprep.subr.mxu0 0.0
    %4744 = vmatpush1.msra.mxu0 0.0
    %4745 = vmatprep.subr.mxu0 0.0
    %4746 = vmatpush1.msra.mxu0 0.0
    %4747 = vmatprep.subr.mxu0 0.0
    %4748 = vmatpush1.msra.mxu0 0.0
    %4749 = vmatprep.subr.mxu0 0.0
    %4750 = vmatpush1.msra.mxu0 0.0
    %4751 = vmatprep.subr.mxu0 0.0
    %4752 = vmatpush1.msra.mxu0 0.0
    %4753 = vmatprep.subr.mxu0 0.0
    %4754 = vmatpush1.msra.mxu0 0.0
    %4755 = vmatprep.subr.mxu0 0.0
    %4756 = vmatpush1.msra.mxu0 0.0
    %4757 = vmatprep.subr.mxu0 0.0
    %4758 = vmatpush1.msra.mxu0 0.0
    %4759 = vmatprep.mubr.f32.mxu0 0.0
    %4760 = vmatmul.mubr.f32.gmra.mrb[0].mxu0 %v4693
    %v4761 = vpop.f32.mrb[0].mxu0
    %v4762 = vadd.f32 %v96, %v4761
    %v4763 = vpop.f32.mrb[0].mxu0
    %v4764 = vadd.f32 %v100, %v4763
    %4765 = vdwg.mxu0
    %v4766 = vxor.u32 %v4762, 2147483648
    %v4767 = vxor.u32 %v4764, 2147483648
    %v4768 = vmul.f32 %v4766, 1.442695
    %v4769 = vpow.pop %v4768
    %v4770 = vmul.f32 %v4767, 1.442695
    %v4771 = vpow.pop %v4770
    %v4772 = vadd.f32 %v4769, 1.0
    %v4773 = vadd.f32 %v4771, 1.0
    %v4774 = vrcp.pop %v4772
    %v4775 = vmul.f32 1.0, %v4774
    %v4776 = vrcp.pop %v4773
    %v4777 = vmul.f32 1.0, %v4776
    %v4778 = vtanh.pop %v4764
    %v4779 = vmul.f32 %v4775, %v4678
    %4781 = vrot.lane.b32.xlu0 %v4778, 112
    %v4782 = vpop.permute.xlu0 %4781
    %v4784 = vmul.f32 %v4775, %v4782
    %4786 = vrot.lane.b32.xlu0 %v4784, 48
    %v4787 = vpop.permute.xlu0 %4786
    %v4789 = vadd.f32 %v4779, %v4787
    %v4790 = vtanh.pop %v4789
    %4792 = vrot.lane.b32.xlu0 %v4790, 48
    %v4793 = vpop.permute.xlu0 %4792
    %v4795 = vmul.f32 %v4775, %v4793
    %v4796 = vmul.f32 %v4777, %v4793
    %v4797 = vrot.slane %v4351, 4
    %v4798 = vrot.slane %v4352, 4
    %v4801 = vrot.slane %v4573, 4
    %v4802 = vrot.slane %v4574, 4
    %v4807 = vrot.slane %v4795, 4
    %v4808 = vrot.slane %v4796, 4
    %v4811 = vsel %vm3700, %v4236, %v4797
    %v4812 = vsel %vm3700, %v4237, %v4798
    %v4813 = vsel %vm3700, %v4462, %v4801
    %v4814 = vsel %vm3700, %v4463, %v4802
    %v4815 = vsel %vm3700, %v4684, %v4807
    %v4816 = vsel %vm3700, %v4685, %v4808
    %4823 = vrot.lane.b32.xlu0 %v4811, 32
    %v4824 = vpop.permute.xlu0 %4823
    %4825 = vrot.lane.b32.xlu0 %v4812, 32
    %v4826 = vpop.permute.xlu0 %4825
    %4827 = vrot.lane.b32.xlu0 %v4813, 32
    %v4828 = vpop.permute.xlu0 %4827
    %4829 = vrot.lane.b32.xlu0 %v4814, 32
    %v4830 = vpop.permute.xlu0 %4829
    %4831 = vrot.lane.b32.xlu0 %v4815, 32
    %v4832 = vpop.permute.xlu0 %4831
    %4833 = vrot.lane.b32.xlu0 %v4816, 32
    %v4834 = vpop.permute.xlu0 %4833
    %v4835 = vsel %vm598, %v4824, %v4826
    %v4836 = vsel %vm598, %v4828, %v4830
    %v4837 = vsel %vm598, %v4832, %v4834
    %v4838 = vsel %vm213, %v4835, 0
    %v4840 = vsel %vm213, %v4836, 0
    %v4842 = vsel %vm213, %v4837, 0
    %4844 = vmatprep.subr.mxu0 0.0
    %4845 = vmatpush1.msra.mxu0 %v103
    %4846 = vmatprep.subr.mxu0 0.0
    %4847 = vmatpush1.msra.mxu0 %v104
    %4848 = vmatprep.subr.mxu0 0.0
    %4849 = vmatpush1.msra.mxu0 %v105
    %4850 = vmatprep.subr.mxu0 0.0
    %4851 = vmatpush1.msra.mxu0 %v106
    %4852 = vmatprep.subr.mxu0 0.0
    %4853 = vmatpush1.msra.mxu0 %v107
    %4854 = vmatprep.subr.mxu0 0.0
    %4855 = vmatpush1.msra.mxu0 %v108
    %4856 = vmatprep.subr.mxu0 0.0
    %4857 = vmatpush1.msra.mxu0 0.0
    %4858 = vmatprep.subr.mxu0 0.0
    %4859 = vmatpush1.msra.mxu0 0.0
    %4860 = vmatprep.subr.mxu0 0.0
    %4861 = vmatpush1.msra.mxu0 0.0
    %4862 = vmatprep.subr.mxu0 0.0
    %4863 = vmatpush1.msra.mxu0 0.0
    %4864 = vmatprep.subr.mxu0 0.0
    %4865 = vmatpush1.msra.mxu0 0.0
    %4866 = vmatprep.subr.mxu0 0.0
    %4867 = vmatpush1.msra.mxu0 0.0
    %4868 = vmatprep.subr.mxu0 0.0
    %4869 = vmatpush1.msra.mxu0 0.0
    %4870 = vmatprep.subr.mxu0 0.0
    %4871 = vmatpush1.msra.mxu0 0.0
    %4872 = vmatprep.subr.mxu0 0.0
    %4873 = vmatpush1.msra.mxu0 0.0
    %4874 = vmatprep.subr.mxu0 0.0
    %4875 = vmatpush1.msra.mxu0 0.0
    %4876 = vmatprep.subr.mxu0 0.0
    %4877 = vmatpush1.msra.mxu0 0.0
    %4878 = vmatprep.subr.mxu0 0.0
    %4879 = vmatpush1.msra.mxu0 0.0
    %4880 = vmatprep.subr.mxu0 0.0
    %4881 = vmatpush1.msra.mxu0 0.0
    %4882 = vmatprep.subr.mxu0 0.0
    %4883 = vmatpush1.msra.mxu0 0.0
    %4884 = vmatprep.subr.mxu0 0.0
    %4885 = vmatpush1.msra.mxu0 0.0
    %4886 = vmatprep.subr.mxu0 0.0
    %4887 = vmatpush1.msra.mxu0 0.0
    %4888 = vmatprep.subr.mxu0 0.0
    %4889 = vmatpush1.msra.mxu0 0.0
    %4890 = vmatprep.subr.mxu0 0.0
    %4891 = vmatpush1.msra.mxu0 0.0
    %4892 = vmatprep.subr.mxu0 0.0
    %4893 = vmatpush1.msra.mxu0 0.0
    %4894 = vmatprep.subr.mxu0 0.0
    %4895 = vmatpush1.msra.mxu0 0.0
    %4896 = vmatprep.subr.mxu0 0.0
    %4897 = vmatpush1.msra.mxu0 0.0
    %4898 = vmatprep.subr.mxu0 0.0
    %4899 = vmatpush1.msra.mxu0 0.0
    %4900 = vmatprep.subr.mxu0 0.0
    %4901 = vmatpush1.msra.mxu0 0.0
    %4902 = vmatprep.subr.mxu0 0.0
    %4903 = vmatpush1.msra.mxu0 0.0
    %4904 = vmatprep.subr.mxu0 0.0
    %4905 = vmatpush1.msra.mxu0 0.0
    %4906 = vmatprep.subr.mxu0 0.0
    %4907 = vmatpush1.msra.mxu0 0.0
    %4908 = vmatprep.mubr.f32.mxu0 0.0
    %4909 = vmatmul.mubr.f32.gmra.mrb[0].mxu0 %v4838
    %v4910 = vpop.f32.mrb[0].mxu0
    %v4911 = vadd.f32 %v109, %v4910
    %v4912 = vpop.f32.mrb[0].mxu0
    %4913 = vmatprep.mubr.f32.mxu0 0.0
    %4914 = vmatmul.mubr.f32.gmra.mrb[0].mxu0 %v4840
    %v4915 = vpop.f32.mrb[0].mxu0
    %v4916 = vadd.f32 %v109, %v4915
    %v4917 = vpop.f32.mrb[0].mxu0
    %4918 = vmatprep.mubr.f32.mxu0 0.0
    %4919 = vmatmul.mubr.f32.gmra.mrb[0].mxu0 %v4842
    %v4920 = vpop.f32.mrb[0].mxu0
    %v4921 = vadd.f32 %v109, %v4920
    %v4922 = vpop.f32.mrb[0].mxu0
    %4923 = vdwg.mxu0
    %4924 = vst.msk [vmem:[%s3] sm:$0xff] %vm111, %v4911
    %4925 = vst.msk [vmem:[%s3 + $0x8] sm:$0xff] %vm111, %v4916
    %4926 = vst.msk [vmem:[%s3 + $0x10] sm:$0xff] %vm111, %v4921
    // Predicated region
    $region14: #{tpu_custom_call.1} parent=1 // pred_check
      _
    $region15: #{tpu_custom_call.1} parent=1 // pred_check_branch
      %4928 = sbr.rel (0) target = $region17
    $region16: #{tpu_custom_call.1} parent=1 // pred_region
      _
    $region17: #{tpu_custom_call.1} parent=1 // pred_fallthru
      _
    // Predicated region
    $region18: #{tpu_custom_call.1} parent=1 // pred_check
      _
    $region19: #{tpu_custom_call.1} parent=1 // pred_check_branch
      %4930 = sbr.rel (0) target = $region21
    $region20: #{tpu_custom_call.1} parent=1 // pred_region
      _
    $region21: #{tpu_custom_call.1} parent=1 // pred_fallthru
      _
    // Predicated region
    $region22: #{tpu_custom_call.1} parent=1 // pred_check
      _
    $region23: #{tpu_custom_call.1} parent=1 // pred_check_branch
      %4932 = sbr.rel (0) target = $region25
    $region24: #{tpu_custom_call.1} parent=1 // pred_region
      %s4934 = ssub.s32 16, 16
      %4935 = vsyncadd [#allocation3], %s4934
      %4938 = dma.smem_to_hbm [#allocation2], 16, %s5, [#allocation3]
    $region25: #{tpu_custom_call.1} parent=1 // pred_fallthru
      _
    // Predicated region
    $region26: #{tpu_custom_call.1} parent=1 // pred_check
      _
    $region27: #{tpu_custom_call.1} parent=1 // pred_check_branch
      %4940 = sbr.rel (0) target = $region29
    $region28: #{tpu_custom_call.1} parent=1 // pred_region
      _
    $region29: #{tpu_custom_call.1} parent=1 // pred_fallthru
      _
    // Predicated region
    $region30: #{tpu_custom_call.1} parent=1 // pred_check
      _
    $region31: #{tpu_custom_call.1} parent=1 // pred_check_branch
      %4942 = sbr.rel (0) target = $region33
    $region32: #{tpu_custom_call.1} parent=1 // pred_region
      _
    $region33: #{tpu_custom_call.1} parent=1 // pred_fallthru
      _
    // Predicated region
    $region34: #{tpu_custom_call.1} parent=1 // pred_check
      _
    $region35: #{tpu_custom_call.1} parent=1 // pred_check_branch
      %4944 = sbr.rel (0) target = $region37
    $region36: #{tpu_custom_call.1} parent=1 // pred_region
      %4945 = dma.done [#allocation3], 16
    $region37: #{tpu_custom_call.1} parent=1 // pred_fallthru
      _
    %4946 = sfence
    %4947 = vsyncpa [#allocation3], 1

</llo_original>
